<compile_context>
chip_gen: v7x
topology: tpu7x:2x2x1
jax: 0.10.0
libtpu: 0.0.40
codegen_flags: <defaults>
</compile_context>

<pallas_src>
import math

import jax
import jax.numpy as jnp
from jax.experimental import pallas as pl
from jax.experimental.pallas import tpu as pltpu

# ----------------------------- configuration --------------------------------
STATE_DIM = 32              # raw state feature size (== extractor.out_size, see TODO)
IN_SIZE = 32                # extractor.out_size
ACTION_SIZE = 4
HIDDEN = 400                # nn.Linear(..., 400) width in actor / q1 / q2
HEAD_COLS = 24              # packed head width: actor cols 0..2A-1, q1 col 8, q2 col 16
Q1_COL = 2 * ACTION_SIZE    # = 8
Q2_COL = 16
IN_W = 128                  # lane-dense merged input slab:  [state | noise | zero pad]
OUT_W = 128                 # lane-dense packed output slab: [act | logp | value | zero pad]

STD_MAX = 2.0
STD_MIN = -20.0
TANH_EPS = 1e-6
_LOG_2PI = math.log(2.0 * math.pi)

N_BIAS = 10                 # 3 layers x 3 nets + 1 packed head-bias row
B_HEAD = 9                  # row index of the packed head biases

assert IN_W >= STATE_DIM + ACTION_SIZE
assert OUT_W >= ACTION_SIZE + 2
assert HEAD_COLS > Q2_COL


# ------------------------------- the kernel ---------------------------------
def _sac_kernel(xin_ref, w_ext_ref, b_ext_ref, wa0_ref, wq0_ref, wh_ref,
                whead_ref, b_all_ref, out_ref):
    f32 = jnp.float32
    bf16 = jnp.bfloat16

    xin = xin_ref[...]                                   # [TB, IN_W] f32
    state = xin[:, :STATE_DIM]
    noise = xin[:, STATE_DIM:STATE_DIM + ACTION_SIZE]
    bsz = xin.shape[0]

    w_ext = w_ext_ref[...]                               # [IN, IN] bf16
    b_ext = b_ext_ref[...]                               # [1, IN]  f32
    whead = whead_ref[...]                               # [HIDDEN, HEAD_COLS] bf16
    b_all = b_all_ref[...]                               # [N_BIAS, HIDDEN] f32

    def bias(idx):                                       # lane-dense [1, HIDDEN] row
        return b_all[idx:idx + 1, :]

    b_head = bias(B_HEAD)[:, :HEAD_COLS]                 # [1, HEAD_COLS]

    def dot_bf16(x, w):
        # MXU matmul: bf16 operands, f32 accumulation.
        return jnp.dot(x.astype(bf16), w, preferred_element_type=f32)

    def extract(x):                                      # extractor stand-in: Linear+ReLU
        return jnp.maximum(dot_bf16(x, w_ext) + b_ext, 0.0)

    def hidden(h, net):
        # two Linear(400,400)+ReLU layers; net: 0=actor, 1=q1, 2=q2
        for l in range(2):
            h = dot_bf16(h, wh_ref[2 * net + l]) + bias(3 * net + 1 + l)
            h = jnp.maximum(h, 0.0)
        return h

    def head(h):                                         # shared lane-contiguous head
        return dot_bf16(h, whead) + b_head               # [TB, HEAD_COLS]

    # ---- actor: TanhNormal rsample + log_prob --------------------------------
    latent = extract(state)                              # [TB, IN]
    ha = jnp.maximum(dot_bf16(latent, wa0_ref[...]) + bias(0), 0.0)
    ha = hidden(ha, 0)
    policy = head(ha)[:, :2 * ACTION_SIZE]               # [TB, 2A]
    mean = policy[:, :ACTION_SIZE]
    log_std = jnp.clip(policy[:, ACTION_SIZE:], STD_MIN, STD_MAX)
    std = jnp.exp(log_std)

    pre_tanh = mean + std * noise                        # rsample
    act = jnp.tanh(pre_tanh)
    normal_lp = -0.5 * noise * noise - log_std - 0.5 * _LOG_2PI
    logp = jnp.sum(normal_lp - jnp.log(1.0 - act * act + TANH_EPS),
                   axis=-1, keepdims=True)               # [TB, 1]

    # ---- critics: value = min(q1, q2) on cat(extractor(latent), act) ---------
    latent2 = extract(latent)   # forward() feeds latent back through get_q's extractor
    qin = jnp.concatenate([latent2, act], axis=-1)       # [TB, IN + A]
    hq = dot_bf16(qin, wq0_ref[...])                     # fused q1|q2 layer-0: [TB, 2H]
    h1 = jnp.maximum(hq[:, :HIDDEN] + bias(3), 0.0)      # q1 layer-0
    h2 = jnp.maximum(hq[:, HIDDEN:] + bias(6), 0.0)      # q2 layer-0
    h1 = hidden(h1, 1)
    h2 = hidden(h2, 2)
    q1 = head(h1)[:, Q1_COL:Q1_COL + 1]                  # [TB, 1]
    q2 = head(h2)[:, Q2_COL:Q2_COL + 1]                  # [TB, 1]
    value = jnp.minimum(q1, q2)

    # ---- single lane-dense packed output (epilogue of one grid step) ---------
    pad = jnp.zeros((bsz, OUT_W - (ACTION_SIZE + 2)), f32)
    out_ref[...] = jnp.concatenate([act, logp, value, pad], axis=-1)


# ------------------------------- wrapper -------------------------------------
def _rep_spec(shape):
    # Replicated (grid-invariant) weight block: full array, block index fixed at 0.
    nd = len(shape)
    return pl.BlockSpec(tuple(shape), lambda i, _nd=nd: (0,) * _nd)


def sac_forward(state, noise, params, *, batch_tile=None):
    """Runs the fused SAC forward.  Default: one fat grid step (grid=(1,)).

    Only split the batch (batch_tile < B, and switch dimension_semantics to
    "parallel") at replay-batch scale where per-core compute exceeds the weight
    fetch; at small B a split is pure overhead and on v7x duplicates the whole
    weight DMA on each TensorCore.
    """
    B = state.shape[0]
    if batch_tile is None:
        batch_tile = B            # weight-HBM-bound regime: one fat tile
    assert B % batch_tile == 0
    assert batch_tile == B or batch_tile % 8 == 0
    grid = (B // batch_tile,)

    # Merged lane-dense input slab: [state | noise | zero pad] -> [B, IN_W].
    pad_w = IN_W - STATE_DIM - ACTION_SIZE
    xin = jnp.concatenate(
        [state, noise, jnp.zeros((B, pad_w), jnp.float32)], axis=-1)

    in_specs = ([pl.BlockSpec((batch_tile, IN_W), lambda i: (i, 0))]
                + [_rep_spec(p.shape) for p in params])
    out_specs = pl.BlockSpec((batch_tile, OUT_W), lambda i: (i, 0))
    out_shape = jax.ShapeDtypeStruct((B, OUT_W), jnp.float32)

    packed = pl.pallas_call(
        _sac_kernel,
        grid=grid,
        in_specs=in_specs,
        out_specs=out_specs,
        out_shape=out_shape,
        compiler_params=pltpu.CompilerParams(dimension_semantics=("arbitrary",)),
    )(xin, *params)

    act = packed[:, :ACTION_SIZE]
    act_prob = packed[:, ACTION_SIZE]                    # [B], like .sum(axis=-1)
    value = packed[:, ACTION_SIZE + 1:ACTION_SIZE + 2]   # [B, 1]
    return act, act_prob, value


# ---------------------------- parameter init ---------------------------------
def _linear(key, fan_in, fan_out):
    kw, kb = jax.random.split(key)
    bound = 1.0 / math.sqrt(fan_in)
    w = jax.random.uniform(kw, (fan_in, fan_out), jnp.float32, -bound, bound)
    b = jax.random.uniform(kb, (fan_out,), jnp.float32, -bound, bound)
    return w, b


def init_params(key):
    keys = iter(jax.random.split(key, 16))
    H, A, IN = HIDDEN, ACTION_SIZE, IN_SIZE

    w_ext, b_ext = _linear(next(keys), IN, IN)           # extractor stand-in

    wa0, ba0 = _linear(next(keys), IN, H)                # actor
    wa1, ba1 = _linear(next(keys), H, H)
    wa2, ba2 = _linear(next(keys), H, H)
    wa3, ba3 = _linear(next(keys), H, 2 * A)

    qs = []                                              # q1, q2
    for _ in range(2):
        w0, b0 = _linear(next(keys), IN + A, H)
        w1, b1 = _linear(next(keys), H, H)
        w2, b2 = _linear(next(keys), H, H)
        w3, b3 = _linear(next(keys), H, 1)
        qs.append(dict(w0=w0, b0=b0, w1=w1, b1=b1, w2=w2, b2=b2, w3=w3, b3=b3))

    # Fused q1|q2 layer-0 weights: [IN+A, 2H], q1 in cols 0..H-1, q2 in cols H..2H-1.
    wq0 = jnp.concatenate([qs[0]['w0'], qs[1]['w0']], axis=1)

    # Hidden-layer stack [6, H, H]: (actor l1, actor l2, q1 l1, q1 l2, q2 l1, q2 l2).
    wh = jnp.stack([wa1, wa2, qs[0]['w1'], qs[0]['w2'], qs[1]['w1'], qs[1]['w2']])

    # One lane-contiguous head buffer [H, HEAD_COLS]:
    # actor head in cols 0..2A-1, q1 head in col Q1_COL, q2 head in col Q2_COL.
    whead = jnp.zeros((H, HEAD_COLS), jnp.float32)
    whead = whead.at[:, :2 * A].set(wa3)
    whead = whead.at[:, Q1_COL:Q1_COL + 1].set(qs[0]['w3'])
    whead = whead.at[:, Q2_COL:Q2_COL + 1].set(qs[1]['w3'])

    # Packed head-bias row (width H, only the leading HEAD_COLS lanes are used).
    b_head = jnp.zeros((H,), jnp.float32)
    b_head = b_head.at[:2 * A].set(ba3)
    b_head = b_head.at[Q1_COL].set(qs[0]['b3'][0])
    b_head = b_head.at[Q2_COL].set(qs[1]['b3'][0])

    # Bias stack [N_BIAS, H]: row 3*net + layer (layer 0..2), row 9 = packed head bias.
    b_all = jnp.stack([ba0, ba1, ba2,
                       qs[0]['b0'], qs[0]['b1'], qs[0]['b2'],
                       qs[1]['b0'], qs[1]['b1'], qs[1]['b2'],
                       b_head])

    # TODO(synk): on v5e/v6e, `wh` (the dominant 1.9 MB stream) could be stored int8
    # with a per-tensor scale and dequantized in-kernel; kept bf16 for v7x safety.
    return [w_ext.astype(jnp.bfloat16),
            b_ext[None, :],
            wa0.astype(jnp.bfloat16),
            wq0.astype(jnp.bfloat16),
            wh.astype(jnp.bfloat16),
            whead.astype(jnp.bfloat16),
            b_all]


# --------------------------------- main ---------------------------------------
if __name__ == "__main__":
    key = jax.random.PRNGKey(0)
    k_params, k_state, k_noise = jax.random.split(key, 3)

    params = init_params(k_params)
    B = 32
    state = jax.random.normal(k_state, (B, STATE_DIM), jnp.float32)
    noise = jax.random.normal(k_noise, (B, ACTION_SIZE), jnp.float32)  # rsample noise

    # One fat grid step (grid=(1,)): at this model/batch size the kernel is entirely
    # weight-HBM / overhead bound, so no batch split on any TPU generation.
    act, act_prob, value = sac_forward(state, noise, params)
    jax.block_until_ready((act, act_prob, value))

    assert act.shape == (B, ACTION_SIZE)
    assert act_prob.shape == (B,)
    assert value.shape == (B, 1)
    assert bool(jnp.all(jnp.isfinite(act)))
    assert bool(jnp.all(jnp.isfinite(act_prob)))
    assert bool(jnp.all(jnp.isfinite(value)))
    assert bool(jnp.all(jnp.abs(act) <= 1.0))
    print("KERNEL_OK")
</pallas_src>

<mosaic_0001>
module attributes {stable_mosaic.version = 11 : i64} {
  func.func @_sac_kernel(%arg0: i32, %arg1: memref<32x128xf32, #tpu.memory_space<vmem>>, %arg2: memref<32x32xbf16, #tpu.memory_space<vmem>>, %arg3: memref<1x32xf32, #tpu.memory_space<vmem>>, %arg4: memref<32x400xbf16, #tpu.memory_space<vmem>>, %arg5: memref<36x800xbf16, #tpu.memory_space<vmem>>, %arg6: memref<6x400x400xbf16, #tpu.memory_space<vmem>>, %arg7: memref<400x24xbf16, #tpu.memory_space<vmem>>, %arg8: memref<10x400xf32, #tpu.memory_space<vmem>>, %arg9: memref<32x128xf32, #tpu.memory_space<vmem>>) attributes {dimension_semantics = [#tpu.dimension_semantics<arbitrary>], iteration_bounds = array<i64: 1>, scalar_prefetch = 0 : i64, scratch_operands = 0 : i64, tpu.core_type = #tpu.core_type<tc>, window_params = [{transform_indices = @transform_0, window_bounds = array<i64: 32, 128>}, {pipeline_mode = #tpu.pipeline_mode<synchronous>, transform_indices = @transform_1, window_bounds = array<i64: 32, 32>}, {pipeline_mode = #tpu.pipeline_mode<synchronous>, transform_indices = @transform_2, window_bounds = array<i64: 1, 32>}, {pipeline_mode = #tpu.pipeline_mode<synchronous>, transform_indices = @transform_3, window_bounds = array<i64: 32, 400>}, {pipeline_mode = #tpu.pipeline_mode<synchronous>, transform_indices = @transform_4, window_bounds = array<i64: 36, 800>}, {pipeline_mode = #tpu.pipeline_mode<synchronous>, transform_indices = @transform_5, window_bounds = array<i64: 6, 400, 400>}, {pipeline_mode = #tpu.pipeline_mode<synchronous>, transform_indices = @transform_6, window_bounds = array<i64: 400, 24>}, {pipeline_mode = #tpu.pipeline_mode<synchronous>, transform_indices = @transform_7, window_bounds = array<i64: 10, 400>}, {transform_indices = @transform_8, window_bounds = array<i64: 32, 128>}]} {
    %c0 = arith.constant 0 : index
    %c0_0 = arith.constant 0 : index
    %0 = vector.load %arg1[%c0, %c0_0] : memref<32x128xf32, #tpu.memory_space<vmem>>, vector<32x128xf32>
    %1 = vector.extract_strided_slice %0 {offsets = [0, 0], sizes = [32, 32], strides = [1, 1]} : vector<32x128xf32> to vector<32x32xf32>
    %2 = vector.extract_strided_slice %0 {offsets = [0, 32], sizes = [32, 4], strides = [1, 1]} : vector<32x128xf32> to vector<32x4xf32>
    %c0_1 = arith.constant 0 : index
    %c0_2 = arith.constant 0 : index
    %3 = vector.load %arg2[%c0_1, %c0_2] : memref<32x32xbf16, #tpu.memory_space<vmem>>, vector<32x32xbf16>
    %c0_3 = arith.constant 0 : index
    %c0_4 = arith.constant 0 : index
    %4 = vector.load %arg3[%c0_3, %c0_4] : memref<1x32xf32, #tpu.memory_space<vmem>>, vector<1x32xf32>
    %c0_5 = arith.constant 0 : index
    %c0_6 = arith.constant 0 : index
    %5 = vector.load %arg7[%c0_5, %c0_6] : memref<400x24xbf16, #tpu.memory_space<vmem>>, vector<400x24xbf16>
    %c0_7 = arith.constant 0 : index
    %c0_8 = arith.constant 0 : index
    %6 = vector.load %arg8[%c0_7, %c0_8] : memref<10x400xf32, #tpu.memory_space<vmem>>, vector<10x400xf32>
    %7 = vector.extract_strided_slice %6 {offsets = [9, 0], sizes = [1, 400], strides = [1, 1]} : vector<10x400xf32> to vector<1x400xf32>
    %8 = vector.extract_strided_slice %7 {offsets = [0, 0], sizes = [1, 24], strides = [1, 1]} : vector<1x400xf32> to vector<1x24xf32>
    %9 = arith.truncf %1 : vector<32x32xf32> to vector<32x32xbf16>
    %cst = arith.constant dense<0.000000e+00> : vector<32x32xf32>
    %10 = tpu.matmul %9, %3, %cst {dimension_numbers = #tpu.dot_dimension_numbers<[1], [0], [0], [1], [0, 0, 1, 1], [], []>} : vector<32x32xbf16>, vector<32x32xbf16>, vector<32x32xf32> -> vector<32x32xf32>
    %11 = vector.broadcast %4 : vector<1x32xf32> to vector<32x32xf32>
    %12 = arith.addf %10, %11 : vector<32x32xf32>
    %cst_9 = arith.constant 0.000000e+00 : f32
    %13 = vector.broadcast %cst_9 : f32 to vector<32x32xf32>
    %14 = arith.maximumf %12, %13 : vector<32x32xf32>
    %c0_10 = arith.constant 0 : index
    %c0_11 = arith.constant 0 : index
    %15 = vector.load %arg4[%c0_10, %c0_11] : memref<32x400xbf16, #tpu.memory_space<vmem>>, vector<32x400xbf16>
    %16 = arith.truncf %14 : vector<32x32xf32> to vector<32x32xbf16>
    %cst_12 = arith.constant dense<0.000000e+00> : vector<32x400xf32>
    %17 = tpu.matmul %16, %15, %cst_12 {dimension_numbers = #tpu.dot_dimension_numbers<[1], [0], [0], [1], [0, 0, 1, 1], [], []>} : vector<32x32xbf16>, vector<32x400xbf16>, vector<32x400xf32> -> vector<32x400xf32>
    %18 = vector.extract_strided_slice %6 {offsets = [0, 0], sizes = [1, 400], strides = [1, 1]} : vector<10x400xf32> to vector<1x400xf32>
    %19 = vector.broadcast %18 : vector<1x400xf32> to vector<32x400xf32>
    %20 = arith.addf %17, %19 : vector<32x400xf32>
    %cst_13 = arith.constant 0.000000e+00 : f32
    %21 = vector.broadcast %cst_13 : f32 to vector<32x400xf32>
    %22 = arith.maximumf %20, %21 : vector<32x400xf32>
    %c0_14 = arith.constant 0 : index
    %c0_15 = arith.constant 0 : index
    %c0_16 = arith.constant 0 : index
    %23 = vector.load %arg6[%c0_14, %c0_15, %c0_16] : memref<6x400x400xbf16, #tpu.memory_space<vmem>>, vector<1x400x400xbf16>
    %24 = vector.shape_cast %23 : vector<1x400x400xbf16> to vector<400x400xbf16>
    %25 = arith.truncf %22 : vector<32x400xf32> to vector<32x400xbf16>
    %cst_17 = arith.constant dense<0.000000e+00> : vector<32x400xf32>
    %26 = tpu.matmul %25, %24, %cst_17 {dimension_numbers = #tpu.dot_dimension_numbers<[1], [0], [0], [1], [0, 0, 1, 1], [], []>} : vector<32x400xbf16>, vector<400x400xbf16>, vector<32x400xf32> -> vector<32x400xf32>
    %27 = vector.extract_strided_slice %6 {offsets = [1, 0], sizes = [1, 400], strides = [1, 1]} : vector<10x400xf32> to vector<1x400xf32>
    %28 = vector.broadcast %27 : vector<1x400xf32> to vector<32x400xf32>
    %29 = arith.addf %26, %28 : vector<32x400xf32>
    %cst_18 = arith.constant 0.000000e+00 : f32
    %30 = vector.broadcast %cst_18 : f32 to vector<32x400xf32>
    %31 = arith.maximumf %29, %30 : vector<32x400xf32>
    %c1 = arith.constant 1 : index
    %c0_19 = arith.constant 0 : index
    %c0_20 = arith.constant 0 : index
    %32 = vector.load %arg6[%c1, %c0_19, %c0_20] : memref<6x400x400xbf16, #tpu.memory_space<vmem>>, vector<1x400x400xbf16>
    %33 = vector.shape_cast %32 : vector<1x400x400xbf16> to vector<400x400xbf16>
    %34 = arith.truncf %31 : vector<32x400xf32> to vector<32x400xbf16>
    %cst_21 = arith.constant dense<0.000000e+00> : vector<32x400xf32>
    %35 = tpu.matmul %34, %33, %cst_21 {dimension_numbers = #tpu.dot_dimension_numbers<[1], [0], [0], [1], [0, 0, 1, 1], [], []>} : vector<32x400xbf16>, vector<400x400xbf16>, vector<32x400xf32> -> vector<32x400xf32>
    %36 = vector.extract_strided_slice %6 {offsets = [2, 0], sizes = [1, 400], strides = [1, 1]} : vector<10x400xf32> to vector<1x400xf32>
    %37 = vector.broadcast %36 : vector<1x400xf32> to vector<32x400xf32>
    %38 = arith.addf %35, %37 : vector<32x400xf32>
    %cst_22 = arith.constant 0.000000e+00 : f32
    %39 = vector.broadcast %cst_22 : f32 to vector<32x400xf32>
    %40 = arith.maximumf %38, %39 : vector<32x400xf32>
    %41 = arith.truncf %40 : vector<32x400xf32> to vector<32x400xbf16>
    %cst_23 = arith.constant dense<0.000000e+00> : vector<32x24xf32>
    %42 = tpu.matmul %41, %5, %cst_23 {dimension_numbers = #tpu.dot_dimension_numbers<[1], [0], [0], [1], [0, 0, 1, 1], [], []>} : vector<32x400xbf16>, vector<400x24xbf16>, vector<32x24xf32> -> vector<32x24xf32>
    %43 = vector.broadcast %8 : vector<1x24xf32> to vector<32x24xf32>
    %44 = arith.addf %42, %43 : vector<32x24xf32>
    %45 = vector.extract_strided_slice %44 {offsets = [0, 0], sizes = [32, 8], strides = [1, 1]} : vector<32x24xf32> to vector<32x8xf32>
    %46 = vector.extract_strided_slice %45 {offsets = [0, 0], sizes = [32, 4], strides = [1, 1]} : vector<32x8xf32> to vector<32x4xf32>
    %47 = vector.extract_strided_slice %45 {offsets = [0, 4], sizes = [32, 4], strides = [1, 1]} : vector<32x8xf32> to vector<32x4xf32>
    %cst_24 = arith.constant -2.000000e+01 : f32
    %cst_25 = arith.constant 2.000000e+00 : f32
    %48 = vector.broadcast %cst_24 : f32 to vector<32x4xf32>
    %49 = arith.maximumf %48, %47 : vector<32x4xf32>
    %50 = vector.broadcast %cst_25 : f32 to vector<32x4xf32>
    %51 = arith.minimumf %50, %49 : vector<32x4xf32>
    %52 = math.exp %51 : vector<32x4xf32>
    %53 = arith.mulf %52, %2 : vector<32x4xf32>
    %54 = arith.addf %46, %53 : vector<32x4xf32>
    %55 = math.tanh %54 : vector<32x4xf32>
    %cst_26 = arith.constant -5.000000e-01 : f32
    %56 = vector.broadcast %cst_26 : f32 to vector<32x4xf32>
    %57 = arith.mulf %56, %2 : vector<32x4xf32>
    %58 = arith.mulf %57, %2 : vector<32x4xf32>
    %59 = arith.subf %58, %51 : vector<32x4xf32>
    %cst_27 = arith.constant 0.918938517 : f32
    %60 = vector.broadcast %cst_27 : f32 to vector<32x4xf32>
    %61 = arith.subf %59, %60 : vector<32x4xf32>
    %62 = arith.mulf %55, %55 : vector<32x4xf32>
    %cst_28 = arith.constant 1.000000e+00 : f32
    %63 = vector.broadcast %cst_28 : f32 to vector<32x4xf32>
    %64 = arith.subf %63, %62 : vector<32x4xf32>
    %cst_29 = arith.constant 9.99999997E-7 : f32
    %65 = vector.broadcast %cst_29 : f32 to vector<32x4xf32>
    %66 = arith.addf %64, %65 : vector<32x4xf32>
    %67 = math.log %66 : vector<32x4xf32>
    %68 = arith.subf %61, %67 : vector<32x4xf32>
    %cst_30 = arith.constant dense<0.000000e+00> : vector<32xf32>
    %69 = vector.multi_reduction <add>, %68, %cst_30 [1] : vector<32x4xf32> to vector<32xf32>
    %70 = vector.shape_cast %69 : vector<32xf32> to vector<32x1xf32>
    %71 = arith.truncf %14 : vector<32x32xf32> to vector<32x32xbf16>
    %cst_31 = arith.constant dense<0.000000e+00> : vector<32x32xf32>
    %72 = tpu.matmul %71, %3, %cst_31 {dimension_numbers = #tpu.dot_dimension_numbers<[1], [0], [0], [1], [0, 0, 1, 1], [], []>} : vector<32x32xbf16>, vector<32x32xbf16>, vector<32x32xf32> -> vector<32x32xf32>
    %73 = vector.broadcast %4 : vector<1x32xf32> to vector<32x32xf32>
    %74 = arith.addf %72, %73 : vector<32x32xf32>
    %cst_32 = arith.constant 0.000000e+00 : f32
    %75 = vector.broadcast %cst_32 : f32 to vector<32x32xf32>
    %76 = arith.maximumf %74, %75 : vector<32x32xf32>
    %77 = tpu.concatenate %76, %55 in 1 : vector<32x32xf32>, vector<32x4xf32> -> vector<32x36xf32>
    %c0_33 = arith.constant 0 : index
    %c0_34 = arith.constant 0 : index
    %78 = vector.load %arg5[%c0_33, %c0_34] : memref<36x800xbf16, #tpu.memory_space<vmem>>, vector<36x800xbf16>
    %79 = arith.truncf %77 : vector<32x36xf32> to vector<32x36xbf16>
    %cst_35 = arith.constant dense<0.000000e+00> : vector<32x800xf32>
    %80 = tpu.matmul %79, %78, %cst_35 {dimension_numbers = #tpu.dot_dimension_numbers<[1], [0], [0], [1], [0, 0, 1, 1], [], []>} : vector<32x36xbf16>, vector<36x800xbf16>, vector<32x800xf32> -> vector<32x800xf32>
    %81 = vector.extract_strided_slice %80 {offsets = [0, 0], sizes = [32, 400], strides = [1, 1]} : vector<32x800xf32> to vector<32x400xf32>
    %82 = vector.extract_strided_slice %6 {offsets = [3, 0], sizes = [1, 400], strides = [1, 1]} : vector<10x400xf32> to vector<1x400xf32>
    %83 = vector.broadcast %82 : vector<1x400xf32> to vector<32x400xf32>
    %84 = arith.addf %81, %83 : vector<32x400xf32>
    %cst_36 = arith.constant 0.000000e+00 : f32
    %85 = vector.broadcast %cst_36 : f32 to vector<32x400xf32>
    %86 = arith.maximumf %84, %85 : vector<32x400xf32>
    %87 = vector.extract_strided_slice %80 {offsets = [0, 400], sizes = [32, 400], strides = [1, 1]} : vector<32x800xf32> to vector<32x400xf32>
    %88 = vector.extract_strided_slice %6 {offsets = [6, 0], sizes = [1, 400], strides = [1, 1]} : vector<10x400xf32> to vector<1x400xf32>
    %89 = vector.broadcast %88 : vector<1x400xf32> to vector<32x400xf32>
    %90 = arith.addf %87, %89 : vector<32x400xf32>
    %cst_37 = arith.constant 0.000000e+00 : f32
    %91 = vector.broadcast %cst_37 : f32 to vector<32x400xf32>
    %92 = arith.maximumf %90, %91 : vector<32x400xf32>
    %c2 = arith.constant 2 : index
    %c0_38 = arith.constant 0 : index
    %c0_39 = arith.constant 0 : index
    %93 = vector.load %arg6[%c2, %c0_38, %c0_39] : memref<6x400x400xbf16, #tpu.memory_space<vmem>>, vector<1x400x400xbf16>
    %94 = vector.shape_cast %93 : vector<1x400x400xbf16> to vector<400x400xbf16>
    %95 = arith.truncf %86 : vector<32x400xf32> to vector<32x400xbf16>
    %cst_40 = arith.constant dense<0.000000e+00> : vector<32x400xf32>
    %96 = tpu.matmul %95, %94, %cst_40 {dimension_numbers = #tpu.dot_dimension_numbers<[1], [0], [0], [1], [0, 0, 1, 1], [], []>} : vector<32x400xbf16>, vector<400x400xbf16>, vector<32x400xf32> -> vector<32x400xf32>
    %97 = vector.extract_strided_slice %6 {offsets = [4, 0], sizes = [1, 400], strides = [1, 1]} : vector<10x400xf32> to vector<1x400xf32>
    %98 = vector.broadcast %97 : vector<1x400xf32> to vector<32x400xf32>
    %99 = arith.addf %96, %98 : vector<32x400xf32>
    %cst_41 = arith.constant 0.000000e+00 : f32
    %100 = vector.broadcast %cst_41 : f32 to vector<32x400xf32>
    %101 = arith.maximumf %99, %100 : vector<32x400xf32>
    %c3 = arith.constant 3 : index
    %c0_42 = arith.constant 0 : index
    %c0_43 = arith.constant 0 : index
    %102 = vector.load %arg6[%c3, %c0_42, %c0_43] : memref<6x400x400xbf16, #tpu.memory_space<vmem>>, vector<1x400x400xbf16>
    %103 = vector.shape_cast %102 : vector<1x400x400xbf16> to vector<400x400xbf16>
    %104 = arith.truncf %101 : vector<32x400xf32> to vector<32x400xbf16>
    %cst_44 = arith.constant dense<0.000000e+00> : vector<32x400xf32>
    %105 = tpu.matmul %104, %103, %cst_44 {dimension_numbers = #tpu.dot_dimension_numbers<[1], [0], [0], [1], [0, 0, 1, 1], [], []>} : vector<32x400xbf16>, vector<400x400xbf16>, vector<32x400xf32> -> vector<32x400xf32>
    %106 = vector.extract_strided_slice %6 {offsets = [5, 0], sizes = [1, 400], strides = [1, 1]} : vector<10x400xf32> to vector<1x400xf32>
    %107 = vector.broadcast %106 : vector<1x400xf32> to vector<32x400xf32>
    %108 = arith.addf %105, %107 : vector<32x400xf32>
    %cst_45 = arith.constant 0.000000e+00 : f32
    %109 = vector.broadcast %cst_45 : f32 to vector<32x400xf32>
    %110 = arith.maximumf %108, %109 : vector<32x400xf32>
    %c4 = arith.constant 4 : index
    %c0_46 = arith.constant 0 : index
    %c0_47 = arith.constant 0 : index
    %111 = vector.load %arg6[%c4, %c0_46, %c0_47] : memref<6x400x400xbf16, #tpu.memory_space<vmem>>, vector<1x400x400xbf16>
    %112 = vector.shape_cast %111 : vector<1x400x400xbf16> to vector<400x400xbf16>
    %113 = arith.truncf %92 : vector<32x400xf32> to vector<32x400xbf16>
    %cst_48 = arith.constant dense<0.000000e+00> : vector<32x400xf32>
    %114 = tpu.matmul %113, %112, %cst_48 {dimension_numbers = #tpu.dot_dimension_numbers<[1], [0], [0], [1], [0, 0, 1, 1], [], []>} : vector<32x400xbf16>, vector<400x400xbf16>, vector<32x400xf32> -> vector<32x400xf32>
    %115 = vector.extract_strided_slice %6 {offsets = [7, 0], sizes = [1, 400], strides = [1, 1]} : vector<10x400xf32> to vector<1x400xf32>
    %116 = vector.broadcast %115 : vector<1x400xf32> to vector<32x400xf32>
    %117 = arith.addf %114, %116 : vector<32x400xf32>
    %cst_49 = arith.constant 0.000000e+00 : f32
    %118 = vector.broadcast %cst_49 : f32 to vector<32x400xf32>
    %119 = arith.maximumf %117, %118 : vector<32x400xf32>
    %c5 = arith.constant 5 : index
    %c0_50 = arith.constant 0 : index
    %c0_51 = arith.constant 0 : index
    %120 = vector.load %arg6[%c5, %c0_50, %c0_51] : memref<6x400x400xbf16, #tpu.memory_space<vmem>>, vector<1x400x400xbf16>
    %121 = vector.shape_cast %120 : vector<1x400x400xbf16> to vector<400x400xbf16>
    %122 = arith.truncf %119 : vector<32x400xf32> to vector<32x400xbf16>
    %cst_52 = arith.constant dense<0.000000e+00> : vector<32x400xf32>
    %123 = tpu.matmul %122, %121, %cst_52 {dimension_numbers = #tpu.dot_dimension_numbers<[1], [0], [0], [1], [0, 0, 1, 1], [], []>} : vector<32x400xbf16>, vector<400x400xbf16>, vector<32x400xf32> -> vector<32x400xf32>
    %124 = vector.extract_strided_slice %6 {offsets = [8, 0], sizes = [1, 400], strides = [1, 1]} : vector<10x400xf32> to vector<1x400xf32>
    %125 = vector.broadcast %124 : vector<1x400xf32> to vector<32x400xf32>
    %126 = arith.addf %123, %125 : vector<32x400xf32>
    %cst_53 = arith.constant 0.000000e+00 : f32
    %127 = vector.broadcast %cst_53 : f32 to vector<32x400xf32>
    %128 = arith.maximumf %126, %127 : vector<32x400xf32>
    %129 = arith.truncf %110 : vector<32x400xf32> to vector<32x400xbf16>
    %cst_54 = arith.constant dense<0.000000e+00> : vector<32x24xf32>
    %130 = tpu.matmul %129, %5, %cst_54 {dimension_numbers = #tpu.dot_dimension_numbers<[1], [0], [0], [1], [0, 0, 1, 1], [], []>} : vector<32x400xbf16>, vector<400x24xbf16>, vector<32x24xf32> -> vector<32x24xf32>
    %131 = vector.broadcast %8 : vector<1x24xf32> to vector<32x24xf32>
    %132 = arith.addf %130, %131 : vector<32x24xf32>
    %133 = vector.extract_strided_slice %132 {offsets = [0, 8], sizes = [32, 1], strides = [1, 1]} : vector<32x24xf32> to vector<32x1xf32>
    %134 = arith.truncf %128 : vector<32x400xf32> to vector<32x400xbf16>
    %cst_55 = arith.constant dense<0.000000e+00> : vector<32x24xf32>
    %135 = tpu.matmul %134, %5, %cst_55 {dimension_numbers = #tpu.dot_dimension_numbers<[1], [0], [0], [1], [0, 0, 1, 1], [], []>} : vector<32x400xbf16>, vector<400x24xbf16>, vector<32x24xf32> -> vector<32x24xf32>
    %136 = vector.broadcast %8 : vector<1x24xf32> to vector<32x24xf32>
    %137 = arith.addf %135, %136 : vector<32x24xf32>
    %138 = vector.extract_strided_slice %137 {offsets = [0, 16], sizes = [32, 1], strides = [1, 1]} : vector<32x24xf32> to vector<32x1xf32>
    %139 = arith.minimumf %133, %138 : vector<32x1xf32>
    %cst_56 = arith.constant 0.000000e+00 : f32
    %140 = vector.broadcast %cst_56 : f32 to vector<32x122xf32>
    %141 = tpu.concatenate %55, %70, %139, %140 in 1 : vector<32x4xf32>, vector<32x1xf32>, vector<32x1xf32>, vector<32x122xf32> -> vector<32x128xf32>
    %c0_57 = arith.constant 0 : index
    %c0_58 = arith.constant 0 : index
    %142 = vector.load %arg9[%c0_57, %c0_58] : memref<32x128xf32, #tpu.memory_space<vmem>>, vector<32x128xf32>
    tpu.vector_store %arg9[%c0_57, %c0_58], %141 {strides = array<i32>} : memref<32x128xf32, #tpu.memory_space<vmem>>, vector<32x128xf32>,
    return
  }
  func.func @transform_0(%arg0: i32) -> (i32, i32) {
    %c0_i32 = arith.constant 0 : i32
    %c0_i32_0 = arith.constant 0 : i32
    return %arg0, %c0_i32 : i32, i32
  }
  func.func @transform_1(%arg0: i32) -> (i32, i32) {
    %c0_i32 = arith.constant 0 : i32
    %c0_i32_0 = arith.constant 0 : i32
    %c0_i32_1 = arith.constant 0 : i32
    return %c0_i32, %c0_i32_0 : i32, i32
  }
  func.func @transform_2(%arg0: i32) -> (i32, i32) {
    %c0_i32 = arith.constant 0 : i32
    %c0_i32_0 = arith.constant 0 : i32
    %c0_i32_1 = arith.constant 0 : i32
    return %c0_i32, %c0_i32_0 : i32, i32
  }
  func.func @transform_3(%arg0: i32) -> (i32, i32) {
    %c0_i32 = arith.constant 0 : i32
    %c0_i32_0 = arith.constant 0 : i32
    %c0_i32_1 = arith.constant 0 : i32
    return %c0_i32, %c0_i32_0 : i32, i32
  }
  func.func @transform_4(%arg0: i32) -> (i32, i32) {
    %c0_i32 = arith.constant 0 : i32
    %c0_i32_0 = arith.constant 0 : i32
    %c0_i32_1 = arith.constant 0 : i32
    return %c0_i32, %c0_i32_0 : i32, i32
  }
  func.func @transform_5(%arg0: i32) -> (i32, i32, i32) {
    %c0_i32 = arith.constant 0 : i32
    %c0_i32_0 = arith.constant 0 : i32
    %c0_i32_1 = arith.constant 0 : i32
    %c0_i32_2 = arith.constant 0 : i32
    return %c0_i32, %c0_i32_0, %c0_i32_1 : i32, i32, i32
  }
  func.func @transform_6(%arg0: i32) -> (i32, i32) {
    %c0_i32 = arith.constant 0 : i32
    %c0_i32_0 = arith.constant 0 : i32
    %c0_i32_1 = arith.constant 0 : i32
    return %c0_i32, %c0_i32_0 : i32, i32
  }
  func.func @transform_7(%arg0: i32) -> (i32, i32) {
    %c0_i32 = arith.constant 0 : i32
    %c0_i32_0 = arith.constant 0 : i32
    %c0_i32_1 = arith.constant 0 : i32
    return %c0_i32, %c0_i32_0 : i32, i32
  }
  func.func @transform_8(%arg0: i32) -> (i32, i32) {
    %c0_i32 = arith.constant 0 : i32
    %c0_i32_0 = arith.constant 0 : i32
    return %arg0, %c0_i32 : i32, i32
  }
}

</mosaic_0001>

<llo_original>
// kernel: tpu_custom_call.1
$region0: #{tpu_custom_call.1}
  #allocation0 [shape = 'u32[]', space=smem, size = 0x4, offset = 0x4, fixed_abs, tag = 'smem constant byte address 0x4 - core index']
  #allocation1 [shape = 'u32[144,128]{1,0:T(1,128)}', space=vmem, size = 0x12000, scoped, tag = 'internal scratch']
  %s0 = inlined_call_operand.hbm [shape: f32[32,128], index: 0, kind: input, shape index: {}]
  %s1 = inlined_call_operand.hbm [shape: bf16[32,32], index: 1, kind: input, shape index: {}]
  %s2 = inlined_call_operand.hbm [shape: f32[1,32], index: 2, kind: input, shape index: {}]
  %s3 = inlined_call_operand.hbm [shape: bf16[32,400], index: 3, kind: input, shape index: {}]
  %s4 = inlined_call_operand.hbm [shape: bf16[36,800], index: 4, kind: input, shape index: {}]
  %s5 = inlined_call_operand.hbm [shape: bf16[6,400,400], index: 5, kind: input, shape index: {}]
  %s6 = inlined_call_operand.vmem [shape: bf16[400,24], index: 6, kind: input, shape index: {}]
  %s7 = inlined_call_operand.hbm [shape: f32[10,400], index: 7, kind: input, shape index: {}]
  %s8 = inlined_call_operand.hbm [shape: f32[32,128], index: 8, kind: output, shape index: {}]
  %s9 = sld [smem:[#allocation0]]
  $region70: #{tpu_custom_call.1} parent=0
    _
  %s11 = ssub.s32 1, %s9
  %s12 = scalar_select 0, %s11, %s9
  $region1: #{tpu_custom_call.1} parent=0
    #allocation2 [shape = 'u8[16384]{0}', space=vmem, size = 0x4000, scoped, tag = 'input window, operand 0, single buffered']
    #allocation3 [shape = 's32[1]{0}', space=sflag, size = 0x4, scoped, tag = 'scoped memory for tpu_custom_call.1']
    #allocation4 [shape = 's32[1]{0}', space=sflag, size = 0x4, scoped, tag = 'scoped memory for tpu_custom_call.1']
    #allocation5 [shape = 'u8[8192]{0}', space=vmem, size = 0x2000, scoped, tag = 'input window, operand 1, single buffered']
    #allocation6 [shape = 's32[1]{0}', space=sflag, size = 0x4, scoped, tag = 'scoped memory for tpu_custom_call.1']
    #allocation7 [shape = 'u8[512]{0}', space=vmem, size = 0x400, scoped, tag = 'input window, operand 2, single buffered']
    #allocation8 [shape = 'u8[32768]{0}', space=vmem, size = 0x8000, scoped, tag = 'input window, operand 3, single buffered']
    #allocation9 [shape = 's32[1]{0}', space=sflag, size = 0x4, scoped, tag = 'scoped memory for tpu_custom_call.1']
    #allocation10 [shape = 'u8[71680]{0}', space=vmem, size = 0x11800, scoped, tag = 'input window, operand 4, single buffered']
    #allocation11 [shape = 'u8[2457600]{0}', space=vmem, size = 0x258000, scoped, tag = 'input window, operand 5, single buffered']
    #allocation12 [shape = 's32[1]{0}', space=sflag, size = 0x4, scoped, tag = 'scoped memory for tpu_custom_call.1']
    #allocation13 [shape = 'u8[32768]{0}', space=vmem, size = 0x8000, scoped, tag = 'input window, operand 7, single buffered']
    #allocation14 [shape = 'u8[16384]{0}', space=vmem, size = 0x4000, scoped, tag = 'output window, operand 0, single buffered']
    %13 = vsyncpa [#allocation3], 0
    %14 = vsyncpa [#allocation6], 0
    %15 = vsyncpa [#allocation9], 0
    %16 = vsyncpa [#allocation12], 0
    %17 = vsyncpa [#allocation4], 0
    // Predicated region
    $region2: #{tpu_custom_call.1} parent=1 // pred_check
      _
    $region3: #{tpu_custom_call.1} parent=1 // pred_check_branch
      %19 = sbr.rel (0) target = $region5
    $region4: #{tpu_custom_call.1} parent=1 // pred_region
      %s21 = ssub.s32 512, 512
      %22 = vsyncadd [#allocation3], %s21
      %s23 = sshll.u32 [#allocation2], 4
      %s24 = int_to_ptr.vmem [resolvable:$true] %s23
      %29 = dma.hbm_to_vmem [thread:$0]  %s0, 512, %s24, [#allocation3], 128, 128, 8
    $region5: #{tpu_custom_call.1} parent=1 // pred_fallthru
      _
    // Predicated region
    $region6: #{tpu_custom_call.1} parent=1 // pred_check
      _
    $region7: #{tpu_custom_call.1} parent=1 // pred_check_branch
      %31 = sbr.rel (0) target = $region9
    $region8: #{tpu_custom_call.1} parent=1 // pred_region
      %s33 = ssub.s32 256, 256
      %34 = vsyncadd [#allocation6], %s33
      %s35 = sshll.u32 [#allocation5], 4
      %s36 = int_to_ptr.vmem [resolvable:$true] %s35
      %41 = dma.hbm_to_vmem [thread:$0]  %s1, 256, %s36, [#allocation6], 64, 64, 4
    $region9: #{tpu_custom_call.1} parent=1 // pred_fallthru
      _
    // Predicated region
    $region10: #{tpu_custom_call.1} parent=1 // pred_check
      _
    $region11: #{tpu_custom_call.1} parent=1 // pred_check_branch
      %43 = sbr.rel (0) target = $region13
    $region12: #{tpu_custom_call.1} parent=1 // pred_region
      %s45 = ssub.s32 16, 16
      %46 = vsyncadd [#allocation6], %s45
      %s48 = sshll.u32 [#allocation7], 4
      %s49 = int_to_ptr.vmem [resolvable:$true] %s48
      %51 = dma.hbm_to_vmem [thread:$0]  %s2, 16, %s49, [#allocation6]
    $region13: #{tpu_custom_call.1} parent=1 // pred_fallthru
      _
    // Predicated region
    $region14: #{tpu_custom_call.1} parent=1 // pred_check
      _
    $region15: #{tpu_custom_call.1} parent=1 // pred_check_branch
      %53 = sbr.rel (0) target = $region17
    $region16: #{tpu_custom_call.1} parent=1 // pred_region
      %s55 = ssub.s32 1024, 1024
      %56 = vsyncadd [#allocation9], %s55
      %s57 = sshll.u32 [#allocation8], 4
      %s58 = int_to_ptr.vmem [resolvable:$true] %s57
      %63 = dma.hbm_to_vmem [thread:$0]  %s3, 1024, %s58, [#allocation9], 256, 256, 16
    $region17: #{tpu_custom_call.1} parent=1 // pred_fallthru
      _
    // Predicated region
    $region18: #{tpu_custom_call.1} parent=1 // pred_check
      _
    $region19: #{tpu_custom_call.1} parent=1 // pred_check_branch
      %65 = sbr.rel (0) target = $region21
    $region20: #{tpu_custom_call.1} parent=1 // pred_region
      %s67 = ssub.s32 2240, 2240
      %68 = vsyncadd [#allocation9], %s67
      %s69 = sshll.u32 [#allocation10], 4
      %s70 = int_to_ptr.vmem [resolvable:$true] %s69
      %75 = dma.hbm_to_vmem [thread:$0]  %s4, 2240, %s70, [#allocation9], 448, 448, 28
    $region21: #{tpu_custom_call.1} parent=1 // pred_fallthru
      _
    // Predicated region
    $region22: #{tpu_custom_call.1} parent=1 // pred_check
      _
    $region23: #{tpu_custom_call.1} parent=1 // pred_check_branch
      %77 = sbr.rel (0) target = $region25
    $region24: #{tpu_custom_call.1} parent=1 // pred_region
      %s79 = ssub.s32 76800, 76800
      %80 = vsyncadd [#allocation12], %s79
      %s81 = sshll.u32 [#allocation11], 4
      %s82 = int_to_ptr.vmem [resolvable:$true] %s81
      %87 = dma.hbm_to_vmem [thread:$0]  %s5, 76800, %s82, [#allocation12], 256, 256, 16
    $region25: #{tpu_custom_call.1} parent=1 // pred_fallthru
      _
    // Predicated region
    $region26: #{tpu_custom_call.1} parent=1 // pred_check
      _
    $region27: #{tpu_custom_call.1} parent=1 // pred_check_branch
      %89 = sbr.rel (0) target = $region29
    $region28: #{tpu_custom_call.1} parent=1 // pred_region
      _
    $region29: #{tpu_custom_call.1} parent=1 // pred_fallthru
      _
    // Predicated region
    $region30: #{tpu_custom_call.1} parent=1 // pred_check
      _
    $region31: #{tpu_custom_call.1} parent=1 // pred_check_branch
      %91 = sbr.rel (0) target = $region33
    $region32: #{tpu_custom_call.1} parent=1 // pred_region
      %s93 = ssub.s32 1024, 1024
      %94 = vsyncadd [#allocation12], %s93
      %s95 = sshll.u32 [#allocation13], 4
      %s96 = int_to_ptr.vmem [resolvable:$true] %s95
      %101 = dma.hbm_to_vmem [thread:$0]  %s7, 1024, %s96, [#allocation12], 512, 512, 32
    $region33: #{tpu_custom_call.1} parent=1 // pred_fallthru
      _
    // Predicated region
    $region34: #{tpu_custom_call.1} parent=1 // pred_check
      _
    $region35: #{tpu_custom_call.1} parent=1 // pred_check_branch
      %103 = sbr.rel (0) target = $region37
    $region36: #{tpu_custom_call.1} parent=1 // pred_region
      %104 = dma.done [#allocation3], 512
    $region37: #{tpu_custom_call.1} parent=1 // pred_fallthru
      _
    // Predicated region
    $region38: #{tpu_custom_call.1} parent=1 // pred_check
      _
    $region39: #{tpu_custom_call.1} parent=1 // pred_check_branch
      %106 = sbr.rel (0) target = $region41
    $region40: #{tpu_custom_call.1} parent=1 // pred_region
      %107 = dma.done [#allocation6], 256
    $region41: #{tpu_custom_call.1} parent=1 // pred_fallthru
      _
    // Predicated region
    $region42: #{tpu_custom_call.1} parent=1 // pred_check
      _
    $region43: #{tpu_custom_call.1} parent=1 // pred_check_branch
      %109 = sbr.rel (0) target = $region45
    $region44: #{tpu_custom_call.1} parent=1 // pred_region
      %110 = dma.done [#allocation6], 16
    $region45: #{tpu_custom_call.1} parent=1 // pred_fallthru
      _
    // Predicated region
    $region46: #{tpu_custom_call.1} parent=1 // pred_check
      _
    $region47: #{tpu_custom_call.1} parent=1 // pred_check_branch
      %112 = sbr.rel (0) target = $region49
    $region48: #{tpu_custom_call.1} parent=1 // pred_region
      %113 = dma.done [#allocation9], 1024
    $region49: #{tpu_custom_call.1} parent=1 // pred_fallthru
      _
    // Predicated region
    $region50: #{tpu_custom_call.1} parent=1 // pred_check
      _
    $region51: #{tpu_custom_call.1} parent=1 // pred_check_branch
      %115 = sbr.rel (0) target = $region53
    $region52: #{tpu_custom_call.1} parent=1 // pred_region
      %116 = dma.done [#allocation9], 2240
    $region53: #{tpu_custom_call.1} parent=1 // pred_fallthru
      _
    // Predicated region
    $region54: #{tpu_custom_call.1} parent=1 // pred_check
      _
    $region55: #{tpu_custom_call.1} parent=1 // pred_check_branch
      %118 = sbr.rel (0) target = $region57
    $region56: #{tpu_custom_call.1} parent=1 // pred_region
      %119 = dma.done [#allocation12], 76800
    $region57: #{tpu_custom_call.1} parent=1 // pred_fallthru
      _
    // Predicated region
    $region58: #{tpu_custom_call.1} parent=1 // pred_check
      _
    $region59: #{tpu_custom_call.1} parent=1 // pred_check_branch
      %121 = sbr.rel (0) target = $region61
    $region60: #{tpu_custom_call.1} parent=1 // pred_region
      %122 = dma.done [#allocation12], 1024
    $region61: #{tpu_custom_call.1} parent=1 // pred_fallthru
      _
    %v124 = vld [vmem:[#allocation2] sm:$0xff]
    %v125 = vld [vmem:[#allocation2 + $0x8] sm:$0xff]
    %v126 = vld [vmem:[#allocation2 + $0x10] sm:$0xff]
    %v127 = vld [vmem:[#allocation2 + $0x18] sm:$0xff]
    %v128 = vld [vmem:[#allocation5] sm:$0xf]
    %v129 = vld [vmem:[#allocation5 + $0x4] sm:$0xf]
    %v130 = vld [vmem:[#allocation5 + $0x8] sm:$0xf]
    %v131 = vld [vmem:[#allocation5 + $0xc] sm:$0xf]
    %v132 = vld [vmem:[#allocation7] sm:$0x1]
    %v133 = vld [vmem:[%s6] sm:$0xf]
    %v134 = vld [vmem:[%s6 + $0x4] sm:$0xf]
    %v135 = vld [vmem:[%s6 + $0x8] sm:$0xf]
    %v136 = vld [vmem:[%s6 + $0xc] sm:$0xf]
    %v137 = vld [vmem:[%s6 + $0x10] sm:$0xf]
    %v138 = vld [vmem:[%s6 + $0x14] sm:$0xf]
    %v139 = vld [vmem:[%s6 + $0x18] sm:$0xf]
    %v140 = vld [vmem:[%s6 + $0x1c] sm:$0xf]
    %v141 = vld [vmem:[%s6 + $0x20] sm:$0xf]
    %v142 = vld [vmem:[%s6 + $0x24] sm:$0xf]
    %v143 = vld [vmem:[%s6 + $0x28] sm:$0xf]
    %v144 = vld [vmem:[%s6 + $0x2c] sm:$0xf]
    %v145 = vld [vmem:[%s6 + $0x30] sm:$0xf]
    %v146 = vld [vmem:[%s6 + $0x34] sm:$0xf]
    %v147 = vld [vmem:[%s6 + $0x38] sm:$0xf]
    %v148 = vld [vmem:[%s6 + $0x3c] sm:$0xf]
    %v149 = vld [vmem:[%s6 + $0x40] sm:$0xf]
    %v150 = vld [vmem:[%s6 + $0x44] sm:$0xf]
    %v151 = vld [vmem:[%s6 + $0x48] sm:$0xf]
    %v152 = vld [vmem:[%s6 + $0x4c] sm:$0xf]
    %v153 = vld [vmem:[%s6 + $0x50] sm:$0xf]
    %v154 = vld [vmem:[%s6 + $0x54] sm:$0xf]
    %v155 = vld [vmem:[%s6 + $0x58] sm:$0xf]
    %v156 = vld [vmem:[%s6 + $0x5c] sm:$0xf]
    %v157 = vld [vmem:[%s6 + $0x60] sm:$0xf]
    %v158 = vld [vmem:[%s6 + $0x64] sm:$0xf]
    %v159 = vld [vmem:[%s6 + $0x68] sm:$0xf]
    %v160 = vld [vmem:[%s6 + $0x6c] sm:$0xf]
    %v161 = vld [vmem:[%s6 + $0x70] sm:$0xf]
    %v162 = vld [vmem:[%s6 + $0x74] sm:$0xf]
    %v163 = vld [vmem:[%s6 + $0x78] sm:$0xf]
    %v164 = vld [vmem:[%s6 + $0x7c] sm:$0xf]
    %v165 = vld [vmem:[%s6 + $0x80] sm:$0xf]
    %v166 = vld [vmem:[%s6 + $0x84] sm:$0xf]
    %v167 = vld [vmem:[%s6 + $0x88] sm:$0xf]
    %v168 = vld [vmem:[%s6 + $0x8c] sm:$0xf]
    %v169 = vld [vmem:[%s6 + $0x90] sm:$0xf]
    %v170 = vld [vmem:[%s6 + $0x94] sm:$0xf]
    %v171 = vld [vmem:[%s6 + $0x98] sm:$0xf]
    %v172 = vld [vmem:[%s6 + $0x9c] sm:$0xf]
    %v173 = vld [vmem:[%s6 + $0xa0] sm:$0xf]
    %v174 = vld [vmem:[%s6 + $0xa4] sm:$0xf]
    %v175 = vld [vmem:[%s6 + $0xa8] sm:$0xf]
    %v176 = vld [vmem:[%s6 + $0xac] sm:$0xf]
    %v177 = vld [vmem:[%s6 + $0xb0] sm:$0xf]
    %v178 = vld [vmem:[%s6 + $0xb4] sm:$0xf]
    %v179 = vld [vmem:[%s6 + $0xb8] sm:$0xf]
    %v180 = vld [vmem:[%s6 + $0xbc] sm:$0xf]
    %v181 = vld [vmem:[%s6 + $0xc0] sm:$0xf]
    %v182 = vld [vmem:[%s6 + $0xc4] sm:$0xf]
    %v183 = vld [vmem:[#allocation13] sm:$0xff]
    %v184 = vld [vmem:[#allocation13 + $0x8] sm:$0xff]
    %v185 = vld [vmem:[#allocation13 + $0x10] sm:$0xff]
    %v186 = vld [vmem:[#allocation13 + $0x18] sm:$0xff]
    %v187 = vld [vmem:[#allocation13 + $0x20] sm:$0x3]
    %v188 = vld [vmem:[#allocation13 + $0x28] sm:$0x3]
    %v189 = vld [vmem:[#allocation13 + $0x30] sm:$0x3]
    %v190 = vld [vmem:[#allocation13 + $0x38] sm:$0x3]
    %v191 = vpack.c.bf16 %v125, %v124
    %v192 = vpack.c.bf16 %v127, %v126
    %v194 = vlaneseq
    %v195 = vshrl.u32 %v194, 7
    %v196 = vsub.s32 0, %v195
    %v197 = vrot.slane %v132, %v196
    %v203 = vunpack.c.l.b16 %v128
    %v204 = vunpack.c.l.b16 %v129
    %v205 = vunpack.c.l.b16 %v130
    %v206 = vunpack.c.l.b16 %v131
    %v207 = vpack.c.b16 %v204, %v203
    %v208 = vpack.c.b16 %v206, %v205
    %vm211 = vcmask 261120
    %v213 = vsel %vm211, %v191, 0
    %v216 = vsel %vm211, %v192, 0
    %218 = vmatprep.subr.bf16.mxu0 0
    %219 = vmatpush1.bf16.msra.mxu0 %v207
    %220 = vmatprep.subr.bf16.mxu0 0
    %221 = vmatpush1.bf16.msra.mxu0 %v208
    %222 = vmatprep.subr.bf16.mxu0 0
    %223 = vmatpush1.bf16.msra.mxu0 0
    %224 = vmatprep.subr.bf16.mxu0 0
    %225 = vmatpush1.bf16.msra.mxu0 0
    %226 = vmatprep.subr.bf16.mxu0 0
    %227 = vmatpush1.bf16.msra.mxu0 0
    %228 = vmatprep.subr.bf16.mxu0 0
    %229 = vmatpush1.bf16.msra.mxu0 0
    %230 = vmatprep.subr.bf16.mxu0 0
    %231 = vmatpush1.bf16.msra.mxu0 0
    %232 = vmatprep.subr.bf16.mxu0 0
    %233 = vmatpush1.bf16.msra.mxu0 0
    %234 = vmatprep.subr.bf16.mxu0 0
    %235 = vmatpush1.bf16.msra.mxu0 0
    %236 = vmatprep.subr.bf16.mxu0 0
    %237 = vmatpush1.bf16.msra.mxu0 0
    %238 = vmatprep.subr.bf16.mxu0 0
    %239 = vmatpush1.bf16.msra.mxu0 0
    %240 = vmatprep.subr.bf16.mxu0 0
    %241 = vmatpush1.bf16.msra.mxu0 0
    %242 = vmatprep.subr.bf16.mxu0 0
    %243 = vmatpush1.bf16.msra.mxu0 0
    %244 = vmatprep.subr.bf16.mxu0 0
    %245 = vmatpush1.bf16.msra.mxu0 0
    %246 = vmatprep.subr.bf16.mxu0 0
    %247 = vmatpush1.bf16.msra.mxu0 0
    %248 = vmatprep.subr.bf16.mxu0 0
    %249 = vmatpush1.bf16.msra.mxu0 0
    %250 = vmatprep.mubr.bf16.mxu0 0
    %251 = vmatmul.mubr.bf16.gmra.mrb[0].mxu0 %v213
    %v252 = vpop.f32.mrb[0].mxu0
    %v253 = vadd.f32 %v197, %v252
    %v254 = vpop.f32.mrb[0].mxu0
    %v255 = vpop.f32.mrb[0].mxu0
    %v256 = vadd.f32 %v197, %v255
    %v257 = vpop.f32.mrb[0].mxu0
    %258 = vmatprep.mubr.bf16.mxu0 0
    %259 = vmatmul.mubr.bf16.gmra.mrb[0].mxu0 %v216
    %v260 = vpop.f32.mrb[0].mxu0
    %v261 = vadd.f32 %v197, %v260
    %v262 = vpop.f32.mrb[0].mxu0
    %v263 = vpop.f32.mrb[0].mxu0
    %v264 = vadd.f32 %v197, %v263
    %v265 = vpop.f32.mrb[0].mxu0
    %266 = vdwg.mxu0
    %v267 = vmax.f32 %v253, 0.0
    %v268 = vmax.f32 %v256, 0.0
    %v269 = vmax.f32 %v261, 0.0
    %v270 = vmax.f32 %v264, 0.0
    %v271 = vld [vmem:[#allocation8] sm:$0xff]
    %v272 = vld [vmem:[#allocation8 + $0x8] sm:$0xff]
    %v273 = vld [vmem:[#allocation8 + $0x10] sm:$0xff]
    %v274 = vld [vmem:[#allocation8 + $0x18] sm:$0xff]
    %v275 = vld [vmem:[#allocation8 + $0x20] sm:$0xff]
    %v276 = vld [vmem:[#allocation8 + $0x28] sm:$0xff]
    %v277 = vld [vmem:[#allocation8 + $0x30] sm:$0xff]
    %v278 = vld [vmem:[#allocation8 + $0x38] sm:$0xff]
    %v279 = vpack.c.bf16 %v268, %v267
    %v280 = vpack.c.bf16 %v270, %v269
    %v281 = vlaneseq
    %v282 = vshrl.u32 %v281, 7
    %v283 = vsub.s32 0, %v282
    %v284 = vrot.slane %v183, %v283
    %v285 = vlaneseq
    %v286 = vshrl.u32 %v285, 7
    %v287 = vsub.s32 0, %v286
    %v288 = vrot.slane %v184, %v287
    %v289 = vlaneseq
    %v290 = vshrl.u32 %v289, 7
    %v291 = vsub.s32 0, %v290
    %v292 = vrot.slane %v185, %v291
    %v293 = vlaneseq
    %v294 = vshrl.u32 %v293, 7
    %v295 = vsub.s32 0, %v294
    %v296 = vrot.slane %v186, %v295
    %v305 = vunpack.c.l.b16 %v271
    %v306 = vunpack.c.h.b16 %v271
    %v307 = vunpack.c.l.b16 %v272
    %v308 = vunpack.c.h.b16 %v272
    %v309 = vunpack.c.l.b16 %v273
    %v310 = vunpack.c.h.b16 %v273
    %v311 = vunpack.c.l.b16 %v274
    %v312 = vunpack.c.h.b16 %v274
    %v313 = vunpack.c.l.b16 %v275
    %v314 = vunpack.c.h.b16 %v275
    %v315 = vunpack.c.l.b16 %v276
    %v316 = vunpack.c.h.b16 %v276
    %v317 = vunpack.c.l.b16 %v277
    %v318 = vunpack.c.h.b16 %v277
    %v319 = vunpack.c.l.b16 %v278
    %v320 = vunpack.c.h.b16 %v278
    %v321 = vpack.c.b16 %v309, %v305
    %v322 = vpack.c.b16 %v310, %v306
    %v323 = vpack.c.b16 %v311, %v307
    %v324 = vpack.c.b16 %v312, %v308
    %v325 = vpack.c.b16 %v317, %v313
    %v326 = vpack.c.b16 %v318, %v314
    %v327 = vpack.c.b16 %v319, %v315
    %v328 = vpack.c.b16 %v320, %v316
    %v338 = vsel %vm211, %v279, 0
    %v341 = vsel %vm211, %v280, 0
    %343 = vmatprep.subr.bf16.mxu0 %v322
    %344 = vmatpush1.bf16.msra.mxu0 %v321
    %345 = vmatprep.subr.bf16.mxu0 %v326
    %346 = vmatpush1.bf16.msra.mxu0 %v325
    %347 = vmatprep.subr.bf16.mxu0 0
    %348 = vmatpush1.bf16.msra.mxu0 0
    %349 = vmatprep.subr.bf16.mxu0 0
    %350 = vmatpush1.bf16.msra.mxu0 0
    %351 = vmatprep.subr.bf16.mxu0 0
    %352 = vmatpush1.bf16.msra.mxu0 0
    %353 = vmatprep.subr.bf16.mxu0 0
    %354 = vmatpush1.bf16.msra.mxu0 0
    %355 = vmatprep.subr.bf16.mxu0 0
    %356 = vmatpush1.bf16.msra.mxu0 0
    %357 = vmatprep.subr.bf16.mxu0 0
    %358 = vmatpush1.bf16.msra.mxu0 0
    %359 = vmatprep.subr.bf16.mxu0 0
    %360 = vmatpush1.bf16.msra.mxu0 0
    %361 = vmatprep.subr.bf16.mxu0 0
    %362 = vmatpush1.bf16.msra.mxu0 0
    %363 = vmatprep.subr.bf16.mxu0 0
    %364 = vmatpush1.bf16.msra.mxu0 0
    %365 = vmatprep.subr.bf16.mxu0 0
    %366 = vmatpush1.bf16.msra.mxu0 0
    %367 = vmatprep.subr.bf16.mxu0 0
    %368 = vmatpush1.bf16.msra.mxu0 0
    %369 = vmatprep.subr.bf16.mxu0 0
    %370 = vmatpush1.bf16.msra.mxu0 0
    %371 = vmatprep.subr.bf16.mxu0 0
    %372 = vmatpush1.bf16.msra.mxu0 0
    %373 = vmatprep.subr.bf16.mxu0 0
    %374 = vmatpush1.bf16.msra.mxu0 0
    %375 = vmatprep.mubr.bf16.mxu0 0
    %376 = vmatmul.mubr.bf16.gmra.mrb[0].mxu0 %v338
    %v377 = vpop.f32.mrb[0].mxu0
    %v378 = vadd.f32 %v284, %v377
    %v379 = vpop.f32.mrb[0].mxu0
    %v380 = vadd.f32 %v288, %v379
    %v381 = vpop.f32.mrb[0].mxu0
    %v382 = vadd.f32 %v284, %v381
    %v383 = vpop.f32.mrb[0].mxu0
    %v384 = vadd.f32 %v288, %v383
    %385 = vmatprep.mubr.bf16.mxu0 0
    %386 = vmatmul.mubr.bf16.gmra.mrb[0].mxu0 %v341
    %v387 = vpop.f32.mrb[0].mxu0
    %v388 = vadd.f32 %v284, %v387
    %v389 = vpop.f32.mrb[0].mxu0
    %v390 = vadd.f32 %v288, %v389
    %v391 = vpop.f32.mrb[0].mxu0
    %v392 = vadd.f32 %v284, %v391
    %v393 = vpop.f32.mrb[0].mxu0
    %v394 = vadd.f32 %v288, %v393
    %395 = vdwg.mxu0
    %396 = vmatprep.subr.bf16.mxu0 %v324
    %397 = vmatpush1.bf16.msra.mxu0 %v323
    %398 = vmatprep.subr.bf16.mxu0 %v328
    %399 = vmatpush1.bf16.msra.mxu0 %v327
    %400 = vmatprep.subr.bf16.mxu0 0
    %401 = vmatpush1.bf16.msra.mxu0 0
    %402 = vmatprep.subr.bf16.mxu0 0
    %403 = vmatpush1.bf16.msra.mxu0 0
    %404 = vmatprep.subr.bf16.mxu0 0
    %405 = vmatpush1.bf16.msra.mxu0 0
    %406 = vmatprep.subr.bf16.mxu0 0
    %407 = vmatpush1.bf16.msra.mxu0 0
    %408 = vmatprep.subr.bf16.mxu0 0
    %409 = vmatpush1.bf16.msra.mxu0 0
    %410 = vmatprep.subr.bf16.mxu0 0
    %411 = vmatpush1.bf16.msra.mxu0 0
    %412 = vmatprep.subr.bf16.mxu0 0
    %413 = vmatpush1.bf16.msra.mxu0 0
    %414 = vmatprep.subr.bf16.mxu0 0
    %415 = vmatpush1.bf16.msra.mxu0 0
    %416 = vmatprep.subr.bf16.mxu0 0
    %417 = vmatpush1.bf16.msra.mxu0 0
    %418 = vmatprep.subr.bf16.mxu0 0
    %419 = vmatpush1.bf16.msra.mxu0 0
    %420 = vmatprep.subr.bf16.mxu0 0
    %421 = vmatpush1.bf16.msra.mxu0 0
    %422 = vmatprep.subr.bf16.mxu0 0
    %423 = vmatpush1.bf16.msra.mxu0 0
    %424 = vmatprep.subr.bf16.mxu0 0
    %425 = vmatpush1.bf16.msra.mxu0 0
    %426 = vmatprep.subr.bf16.mxu0 0
    %427 = vmatpush1.bf16.msra.mxu0 0
    %428 = vmatprep.mubr.bf16.mxu0 0
    %429 = vmatmul.mubr.bf16.gmra.mrb[0].mxu0 %v338
    %v430 = vpop.f32.mrb[0].mxu0
    %v431 = vadd.f32 %v292, %v430
    %v432 = vpop.f32.mrb[0].mxu0
    %v433 = vadd.f32 %v296, %v432
    %v434 = vpop.f32.mrb[0].mxu0
    %v435 = vadd.f32 %v292, %v434
    %v436 = vpop.f32.mrb[0].mxu0
    %v437 = vadd.f32 %v296, %v436
    %438 = vmatprep.mubr.bf16.mxu0 0
    %439 = vmatmul.mubr.bf16.gmra.mrb[0].mxu0 %v341
    %v440 = vpop.f32.mrb[0].mxu0
    %v441 = vadd.f32 %v292, %v440
    %v442 = vpop.f32.mrb[0].mxu0
    %v443 = vadd.f32 %v296, %v442
    %v444 = vpop.f32.mrb[0].mxu0
    %v445 = vadd.f32 %v292, %v444
    %v446 = vpop.f32.mrb[0].mxu0
    %v447 = vadd.f32 %v296, %v446
    %448 = vdwg.mxu0
    %v449 = vmax.f32 %v378, 0.0
    %v450 = vmax.f32 %v380, 0.0
    %v451 = vmax.f32 %v431, 0.0
    %v452 = vmax.f32 %v433, 0.0
    %v453 = vmax.f32 %v382, 0.0
    %v454 = vmax.f32 %v384, 0.0
    %v455 = vmax.f32 %v435, 0.0
    %v456 = vmax.f32 %v437, 0.0
    %v457 = vmax.f32 %v388, 0.0
    %v458 = vmax.f32 %v390, 0.0
    %v459 = vmax.f32 %v441, 0.0
    %v460 = vmax.f32 %v443, 0.0
    %v461 = vmax.f32 %v392, 0.0
    %v462 = vmax.f32 %v394, 0.0
    %v463 = vmax.f32 %v445, 0.0
    %v464 = vmax.f32 %v447, 0.0
    %v465 = vld [vmem:[#allocation11] sm:$0xff]
    %v466 = vld [vmem:[#allocation11 + $0x8] sm:$0xff]
    %v467 = vld [vmem:[#allocation11 + $0x10] sm:$0xff]
    %v468 = vld [vmem:[#allocation11 + $0x18] sm:$0xff]
    %v469 = vld [vmem:[#allocation11 + $0x20] sm:$0xff]
    %v470 = vld [vmem:[#allocation11 + $0x28] sm:$0xff]
    %v471 = vld [vmem:[#allocation11 + $0x30] sm:$0xff]
    %v472 = vld [vmem:[#allocation11 + $0x38] sm:$0xff]
    %v473 = vld [vmem:[#allocation11 + $0x40] sm:$0xff]
    %v474 = vld [vmem:[#allocation11 + $0x48] sm:$0xff]
    %v475 = vld [vmem:[#allocation11 + $0x50] sm:$0xff]
    %v476 = vld [vmem:[#allocation11 + $0x58] sm:$0xff]
    %v477 = vld [vmem:[#allocation11 + $0x60] sm:$0xff]
    %v478 = vld [vmem:[#allocation11 + $0x68] sm:$0xff]
    %v479 = vld [vmem:[#allocation11 + $0x70] sm:$0xff]
    %v480 = vld [vmem:[#allocation11 + $0x78] sm:$0xff]
    %v481 = vld [vmem:[#allocation11 + $0x80] sm:$0xff]
    %v482 = vld [vmem:[#allocation11 + $0x88] sm:$0xff]
    %v483 = vld [vmem:[#allocation11 + $0x90] sm:$0xff]
    %v484 = vld [vmem:[#allocation11 + $0x98] sm:$0xff]
    %v485 = vld [vmem:[#allocation11 + $0xa0] sm:$0xff]
    %v486 = vld [vmem:[#allocation11 + $0xa8] sm:$0xff]
    %v487 = vld [vmem:[#allocation11 + $0xb0] sm:$0xff]
    %v488 = vld [vmem:[#allocation11 + $0xb8] sm:$0xff]
    %v489 = vld [vmem:[#allocation11 + $0xc0] sm:$0xff]
    %v490 = vld [vmem:[#allocation11 + $0xc8] sm:$0xff]
    %v491 = vld [vmem:[#allocation11 + $0xd0] sm:$0xff]
    %v492 = vld [vmem:[#allocation11 + $0xd8] sm:$0xff]
    %v493 = vld [vmem:[#allocation11 + $0xe0] sm:$0xff]
    %v494 = vld [vmem:[#allocation11 + $0xe8] sm:$0xff]
    %v495 = vld [vmem:[#allocation11 + $0xf0] sm:$0xff]
    %v496 = vld [vmem:[#allocation11 + $0xf8] sm:$0xff]
    %v497 = vld [vmem:[#allocation11 + $0x100] sm:$0xff]
    %v498 = vld [vmem:[#allocation11 + $0x108] sm:$0xff]
    %v499 = vld [vmem:[#allocation11 + $0x110] sm:$0xff]
    %v500 = vld [vmem:[#allocation11 + $0x118] sm:$0xff]
    %v501 = vld [vmem:[#allocation11 + $0x120] sm:$0xff]
    %v502 = vld [vmem:[#allocation11 + $0x128] sm:$0xff]
    %v503 = vld [vmem:[#allocation11 + $0x130] sm:$0xff]
    %v504 = vld [vmem:[#allocation11 + $0x138] sm:$0xff]
    %v505 = vld [vmem:[#allocation11 + $0x140] sm:$0xff]
    %v506 = vld [vmem:[#allocation11 + $0x148] sm:$0xff]
    %v507 = vld [vmem:[#allocation11 + $0x150] sm:$0xff]
    %v508 = vld [vmem:[#allocation11 + $0x158] sm:$0xff]
    %v509 = vld [vmem:[#allocation11 + $0x160] sm:$0xff]
    %v510 = vld [vmem:[#allocation11 + $0x168] sm:$0xff]
    %v511 = vld [vmem:[#allocation11 + $0x170] sm:$0xff]
    %v512 = vld [vmem:[#allocation11 + $0x178] sm:$0xff]
    %v513 = vld [vmem:[#allocation11 + $0x180] sm:$0xff]
    %v514 = vld [vmem:[#allocation11 + $0x188] sm:$0xff]
    %v515 = vld [vmem:[#allocation11 + $0x190] sm:$0xff]
    %v516 = vld [vmem:[#allocation11 + $0x198] sm:$0xff]
    %v517 = vld [vmem:[#allocation11 + $0x1a0] sm:$0xff]
    %v518 = vld [vmem:[#allocation11 + $0x1a8] sm:$0xff]
    %v519 = vld [vmem:[#allocation11 + $0x1b0] sm:$0xff]
    %v520 = vld [vmem:[#allocation11 + $0x1b8] sm:$0xff]
    %v521 = vld [vmem:[#allocation11 + $0x1c0] sm:$0xff]
    %v522 = vld [vmem:[#allocation11 + $0x1c8] sm:$0xff]
    %v523 = vld [vmem:[#allocation11 + $0x1d0] sm:$0xff]
    %v524 = vld [vmem:[#allocation11 + $0x1d8] sm:$0xff]
    %v525 = vld [vmem:[#allocation11 + $0x1e0] sm:$0xff]
    %v526 = vld [vmem:[#allocation11 + $0x1e8] sm:$0xff]
    %v527 = vld [vmem:[#allocation11 + $0x1f0] sm:$0xff]
    %v528 = vld [vmem:[#allocation11 + $0x1f8] sm:$0xff]
    %v529 = vld [vmem:[#allocation11 + $0x200] sm:$0xff]
    %v530 = vld [vmem:[#allocation11 + $0x208] sm:$0xff]
    %v531 = vld [vmem:[#allocation11 + $0x210] sm:$0xff]
    %v532 = vld [vmem:[#allocation11 + $0x218] sm:$0xff]
    %v533 = vld [vmem:[#allocation11 + $0x220] sm:$0xff]
    %v534 = vld [vmem:[#allocation11 + $0x228] sm:$0xff]
    %v535 = vld [vmem:[#allocation11 + $0x230] sm:$0xff]
    %v536 = vld [vmem:[#allocation11 + $0x238] sm:$0xff]
    %v537 = vld [vmem:[#allocation11 + $0x240] sm:$0xff]
    %v538 = vld [vmem:[#allocation11 + $0x248] sm:$0xff]
    %v539 = vld [vmem:[#allocation11 + $0x250] sm:$0xff]
    %v540 = vld [vmem:[#allocation11 + $0x258] sm:$0xff]
    %v541 = vld [vmem:[#allocation11 + $0x260] sm:$0xff]
    %v542 = vld [vmem:[#allocation11 + $0x268] sm:$0xff]
    %v543 = vld [vmem:[#allocation11 + $0x270] sm:$0xff]
    %v544 = vld [vmem:[#allocation11 + $0x278] sm:$0xff]
    %v545 = vld [vmem:[#allocation11 + $0x280] sm:$0xff]
    %v546 = vld [vmem:[#allocation11 + $0x288] sm:$0xff]
    %v547 = vld [vmem:[#allocation11 + $0x290] sm:$0xff]
    %v548 = vld [vmem:[#allocation11 + $0x298] sm:$0xff]
    %v549 = vld [vmem:[#allocation11 + $0x2a0] sm:$0xff]
    %v550 = vld [vmem:[#allocation11 + $0x2a8] sm:$0xff]
    %v551 = vld [vmem:[#allocation11 + $0x2b0] sm:$0xff]
    %v552 = vld [vmem:[#allocation11 + $0x2b8] sm:$0xff]
    %v553 = vld [vmem:[#allocation11 + $0x2c0] sm:$0xff]
    %v554 = vld [vmem:[#allocation11 + $0x2c8] sm:$0xff]
    %v555 = vld [vmem:[#allocation11 + $0x2d0] sm:$0xff]
    %v556 = vld [vmem:[#allocation11 + $0x2d8] sm:$0xff]
    %v557 = vld [vmem:[#allocation11 + $0x2e0] sm:$0xff]
    %v558 = vld [vmem:[#allocation11 + $0x2e8] sm:$0xff]
    %v559 = vld [vmem:[#allocation11 + $0x2f0] sm:$0xff]
    %v560 = vld [vmem:[#allocation11 + $0x2f8] sm:$0xff]
    %v561 = vld [vmem:[#allocation11 + $0x300] sm:$0xff]
    %v562 = vld [vmem:[#allocation11 + $0x308] sm:$0xff]
    %v563 = vld [vmem:[#allocation11 + $0x310] sm:$0xff]
    %v564 = vld [vmem:[#allocation11 + $0x318] sm:$0xff]
    %v565 = vpack.c.bf16 %v453, %v449
    %v566 = vpack.c.bf16 %v454, %v450
    %v567 = vpack.c.bf16 %v455, %v451
    %v568 = vpack.c.bf16 %v456, %v452
    %v569 = vpack.c.bf16 %v461, %v457
    %v570 = vpack.c.bf16 %v462, %v458
    %v571 = vpack.c.bf16 %v463, %v459
    %v572 = vpack.c.bf16 %v464, %v460
    %v573 = vlaneseq
    %v574 = vshrl.u32 %v573, 7
    %v575 = vsub.s32 1, %v574
    %v576 = vrot.slane %v183, %v575
    %v577 = vlaneseq
    %v578 = vshrl.u32 %v577, 7
    %v579 = vsub.s32 1, %v578
    %v580 = vrot.slane %v184, %v579
    %v581 = vlaneseq
    %v582 = vshrl.u32 %v581, 7
    %v583 = vsub.s32 1, %v582
    %v584 = vrot.slane %v185, %v583
    %v585 = vlaneseq
    %v586 = vshrl.u32 %v585, 7
    %v587 = vsub.s32 1, %v586
    %v588 = vrot.slane %v186, %v587
    %v689 = vunpack.c.l.b16 %v465
    %v690 = vunpack.c.h.b16 %v465
    %v691 = vunpack.c.l.b16 %v466
    %v692 = vunpack.c.h.b16 %v466
    %v693 = vunpack.c.l.b16 %v467
    %v694 = vunpack.c.h.b16 %v467
    %v695 = vunpack.c.l.b16 %v468
    %v696 = vunpack.c.h.b16 %v468
    %v697 = vunpack.c.l.b16 %v469
    %v698 = vunpack.c.h.b16 %v469
    %v699 = vunpack.c.l.b16 %v470
    %v700 = vunpack.c.h.b16 %v470
    %v701 = vunpack.c.l.b16 %v471
    %v702 = vunpack.c.h.b16 %v471
    %v703 = vunpack.c.l.b16 %v472
    %v704 = vunpack.c.h.b16 %v472
    %v705 = vunpack.c.l.b16 %v473
    %v706 = vunpack.c.h.b16 %v473
    %v707 = vunpack.c.l.b16 %v474
    %v708 = vunpack.c.h.b16 %v474
    %v709 = vunpack.c.l.b16 %v475
    %v710 = vunpack.c.h.b16 %v475
    %v711 = vunpack.c.l.b16 %v476
    %v712 = vunpack.c.h.b16 %v476
    %v713 = vunpack.c.l.b16 %v477
    %v714 = vunpack.c.h.b16 %v477
    %v715 = vunpack.c.l.b16 %v478
    %v716 = vunpack.c.h.b16 %v478
    %v717 = vunpack.c.l.b16 %v479
    %v718 = vunpack.c.h.b16 %v479
    %v719 = vunpack.c.l.b16 %v480
    %v720 = vunpack.c.h.b16 %v480
    %v721 = vunpack.c.l.b16 %v481
    %v722 = vunpack.c.h.b16 %v481
    %v723 = vunpack.c.l.b16 %v482
    %v724 = vunpack.c.h.b16 %v482
    %v725 = vunpack.c.l.b16 %v483
    %v726 = vunpack.c.h.b16 %v483
    %v727 = vunpack.c.l.b16 %v484
    %v728 = vunpack.c.h.b16 %v484
    %v729 = vunpack.c.l.b16 %v485
    %v730 = vunpack.c.h.b16 %v485
    %v731 = vunpack.c.l.b16 %v486
    %v732 = vunpack.c.h.b16 %v486
    %v733 = vunpack.c.l.b16 %v487
    %v734 = vunpack.c.h.b16 %v487
    %v735 = vunpack.c.l.b16 %v488
    %v736 = vunpack.c.h.b16 %v488
    %v737 = vunpack.c.l.b16 %v489
    %v738 = vunpack.c.h.b16 %v489
    %v739 = vunpack.c.l.b16 %v490
    %v740 = vunpack.c.h.b16 %v490
    %v741 = vunpack.c.l.b16 %v491
    %v742 = vunpack.c.h.b16 %v491
    %v743 = vunpack.c.l.b16 %v492
    %v744 = vunpack.c.h.b16 %v492
    %v745 = vunpack.c.l.b16 %v493
    %v746 = vunpack.c.h.b16 %v493
    %v747 = vunpack.c.l.b16 %v494
    %v748 = vunpack.c.h.b16 %v494
    %v749 = vunpack.c.l.b16 %v495
    %v750 = vunpack.c.h.b16 %v495
    %v751 = vunpack.c.l.b16 %v496
    %v752 = vunpack.c.h.b16 %v496
    %v753 = vunpack.c.l.b16 %v497
    %v754 = vunpack.c.h.b16 %v497
    %v755 = vunpack.c.l.b16 %v498
    %v756 = vunpack.c.h.b16 %v498
    %v757 = vunpack.c.l.b16 %v499
    %v758 = vunpack.c.h.b16 %v499
    %v759 = vunpack.c.l.b16 %v500
    %v760 = vunpack.c.h.b16 %v500
    %v761 = vunpack.c.l.b16 %v501
    %v762 = vunpack.c.h.b16 %v501
    %v763 = vunpack.c.l.b16 %v502
    %v764 = vunpack.c.h.b16 %v502
    %v765 = vunpack.c.l.b16 %v503
    %v766 = vunpack.c.h.b16 %v503
    %v767 = vunpack.c.l.b16 %v504
    %v768 = vunpack.c.h.b16 %v504
    %v769 = vunpack.c.l.b16 %v505
    %v770 = vunpack.c.h.b16 %v505
    %v771 = vunpack.c.l.b16 %v506
    %v772 = vunpack.c.h.b16 %v506
    %v773 = vunpack.c.l.b16 %v507
    %v774 = vunpack.c.h.b16 %v507
    %v775 = vunpack.c.l.b16 %v508
    %v776 = vunpack.c.h.b16 %v508
    %v777 = vunpack.c.l.b16 %v509
    %v778 = vunpack.c.h.b16 %v509
    %v779 = vunpack.c.l.b16 %v510
    %v780 = vunpack.c.h.b16 %v510
    %v781 = vunpack.c.l.b16 %v511
    %v782 = vunpack.c.h.b16 %v511
    %v783 = vunpack.c.l.b16 %v512
    %v784 = vunpack.c.h.b16 %v512
    %v785 = vunpack.c.l.b16 %v513
    %v786 = vunpack.c.h.b16 %v513
    %v787 = vunpack.c.l.b16 %v514
    %v788 = vunpack.c.h.b16 %v514
    %v789 = vunpack.c.l.b16 %v515
    %v790 = vunpack.c.h.b16 %v515
    %v791 = vunpack.c.l.b16 %v516
    %v792 = vunpack.c.h.b16 %v516
    %v793 = vunpack.c.l.b16 %v517
    %v794 = vunpack.c.h.b16 %v517
    %v795 = vunpack.c.l.b16 %v518
    %v796 = vunpack.c.h.b16 %v518
    %v797 = vunpack.c.l.b16 %v519
    %v798 = vunpack.c.h.b16 %v519
    %v799 = vunpack.c.l.b16 %v520
    %v800 = vunpack.c.h.b16 %v520
    %v801 = vunpack.c.l.b16 %v521
    %v802 = vunpack.c.h.b16 %v521
    %v803 = vunpack.c.l.b16 %v522
    %v804 = vunpack.c.h.b16 %v522
    %v805 = vunpack.c.l.b16 %v523
    %v806 = vunpack.c.h.b16 %v523
    %v807 = vunpack.c.l.b16 %v524
    %v808 = vunpack.c.h.b16 %v524
    %v809 = vunpack.c.l.b16 %v525
    %v810 = vunpack.c.h.b16 %v525
    %v811 = vunpack.c.l.b16 %v526
    %v812 = vunpack.c.h.b16 %v526
    %v813 = vunpack.c.l.b16 %v527
    %v814 = vunpack.c.h.b16 %v527
    %v815 = vunpack.c.l.b16 %v528
    %v816 = vunpack.c.h.b16 %v528
    %v817 = vunpack.c.l.b16 %v529
    %v818 = vunpack.c.h.b16 %v529
    %v819 = vunpack.c.l.b16 %v530
    %v820 = vunpack.c.h.b16 %v530
    %v821 = vunpack.c.l.b16 %v531
    %v822 = vunpack.c.h.b16 %v531
    %v823 = vunpack.c.l.b16 %v532
    %v824 = vunpack.c.h.b16 %v532
    %v825 = vunpack.c.l.b16 %v533
    %v826 = vunpack.c.h.b16 %v533
    %v827 = vunpack.c.l.b16 %v534
    %v828 = vunpack.c.h.b16 %v534
    %v829 = vunpack.c.l.b16 %v535
    %v830 = vunpack.c.h.b16 %v535
    %v831 = vunpack.c.l.b16 %v536
    %v832 = vunpack.c.h.b16 %v536
    %v833 = vunpack.c.l.b16 %v537
    %v834 = vunpack.c.h.b16 %v537
    %v835 = vunpack.c.l.b16 %v538
    %v836 = vunpack.c.h.b16 %v538
    %v837 = vunpack.c.l.b16 %v539
    %v838 = vunpack.c.h.b16 %v539
    %v839 = vunpack.c.l.b16 %v540
    %v840 = vunpack.c.h.b16 %v540
    %v841 = vunpack.c.l.b16 %v541
    %v842 = vunpack.c.h.b16 %v541
    %v843 = vunpack.c.l.b16 %v542
    %v844 = vunpack.c.h.b16 %v542
    %v845 = vunpack.c.l.b16 %v543
    %v846 = vunpack.c.h.b16 %v543
    %v847 = vunpack.c.l.b16 %v544
    %v848 = vunpack.c.h.b16 %v544
    %v849 = vunpack.c.l.b16 %v545
    %v850 = vunpack.c.h.b16 %v545
    %v851 = vunpack.c.l.b16 %v546
    %v852 = vunpack.c.h.b16 %v546
    %v853 = vunpack.c.l.b16 %v547
    %v854 = vunpack.c.h.b16 %v547
    %v855 = vunpack.c.l.b16 %v548
    %v856 = vunpack.c.h.b16 %v548
    %v857 = vunpack.c.l.b16 %v549
    %v858 = vunpack.c.h.b16 %v549
    %v859 = vunpack.c.l.b16 %v550
    %v860 = vunpack.c.h.b16 %v550
    %v861 = vunpack.c.l.b16 %v551
    %v862 = vunpack.c.h.b16 %v551
    %v863 = vunpack.c.l.b16 %v552
    %v864 = vunpack.c.h.b16 %v552
    %v865 = vunpack.c.l.b16 %v553
    %v866 = vunpack.c.h.b16 %v553
    %v867 = vunpack.c.l.b16 %v554
    %v868 = vunpack.c.h.b16 %v554
    %v869 = vunpack.c.l.b16 %v555
    %v870 = vunpack.c.h.b16 %v555
    %v871 = vunpack.c.l.b16 %v556
    %v872 = vunpack.c.h.b16 %v556
    %v873 = vunpack.c.l.b16 %v557
    %v874 = vunpack.c.h.b16 %v557
    %v875 = vunpack.c.l.b16 %v558
    %v876 = vunpack.c.h.b16 %v558
    %v877 = vunpack.c.l.b16 %v559
    %v878 = vunpack.c.h.b16 %v559
    %v879 = vunpack.c.l.b16 %v560
    %v880 = vunpack.c.h.b16 %v560
    %v881 = vunpack.c.l.b16 %v561
    %v882 = vunpack.c.h.b16 %v561
    %v883 = vunpack.c.l.b16 %v562
    %v884 = vunpack.c.h.b16 %v562
    %v885 = vunpack.c.l.b16 %v563
    %v886 = vunpack.c.h.b16 %v563
    %v887 = vunpack.c.l.b16 %v564
    %v888 = vunpack.c.h.b16 %v564
    %v889 = vpack.c.b16 %v693, %v689
    %v890 = vpack.c.b16 %v694, %v690
    %v891 = vpack.c.b16 %v695, %v691
    %v892 = vpack.c.b16 %v696, %v692
    %v893 = vpack.c.b16 %v701, %v697
    %v894 = vpack.c.b16 %v702, %v698
    %v895 = vpack.c.b16 %v703, %v699
    %v896 = vpack.c.b16 %v704, %v700
    %v897 = vpack.c.b16 %v709, %v705
    %v898 = vpack.c.b16 %v710, %v706
    %v899 = vpack.c.b16 %v711, %v707
    %v900 = vpack.c.b16 %v712, %v708
    %v901 = vpack.c.b16 %v717, %v713
    %v902 = vpack.c.b16 %v718, %v714
    %v903 = vpack.c.b16 %v719, %v715
    %v904 = vpack.c.b16 %v720, %v716
    %v905 = vpack.c.b16 %v725, %v721
    %v906 = vpack.c.b16 %v726, %v722
    %v907 = vpack.c.b16 %v727, %v723
    %v908 = vpack.c.b16 %v728, %v724
    %v909 = vpack.c.b16 %v733, %v729
    %v910 = vpack.c.b16 %v734, %v730
    %v911 = vpack.c.b16 %v735, %v731
    %v912 = vpack.c.b16 %v736, %v732
    %v913 = vpack.c.b16 %v741, %v737
    %v914 = vpack.c.b16 %v742, %v738
    %v915 = vpack.c.b16 %v743, %v739
    %v916 = vpack.c.b16 %v744, %v740
    %v917 = vpack.c.b16 %v749, %v745
    %v918 = vpack.c.b16 %v750, %v746
    %v919 = vpack.c.b16 %v751, %v747
    %v920 = vpack.c.b16 %v752, %v748
    %v921 = vpack.c.b16 %v757, %v753
    %v922 = vpack.c.b16 %v758, %v754
    %v923 = vpack.c.b16 %v759, %v755
    %v924 = vpack.c.b16 %v760, %v756
    %v925 = vpack.c.b16 %v765, %v761
    %v926 = vpack.c.b16 %v766, %v762
    %v927 = vpack.c.b16 %v767, %v763
    %v928 = vpack.c.b16 %v768, %v764
    %v929 = vpack.c.b16 %v773, %v769
    %v930 = vpack.c.b16 %v774, %v770
    %v931 = vpack.c.b16 %v775, %v771
    %v932 = vpack.c.b16 %v776, %v772
    %v933 = vpack.c.b16 %v781, %v777
    %v934 = vpack.c.b16 %v782, %v778
    %v935 = vpack.c.b16 %v783, %v779
    %v936 = vpack.c.b16 %v784, %v780
    %v937 = vpack.c.b16 %v789, %v785
    %v938 = vpack.c.b16 %v790, %v786
    %v939 = vpack.c.b16 %v791, %v787
    %v940 = vpack.c.b16 %v792, %v788
    %v941 = vpack.c.b16 %v797, %v793
    %v942 = vpack.c.b16 %v798, %v794
    %v943 = vpack.c.b16 %v799, %v795
    %v944 = vpack.c.b16 %v800, %v796
    %v945 = vpack.c.b16 %v805, %v801
    %v946 = vpack.c.b16 %v806, %v802
    %v947 = vpack.c.b16 %v807, %v803
    %v948 = vpack.c.b16 %v808, %v804
    %v949 = vpack.c.b16 %v813, %v809
    %v950 = vpack.c.b16 %v814, %v810
    %v951 = vpack.c.b16 %v815, %v811
    %v952 = vpack.c.b16 %v816, %v812
    %v953 = vpack.c.b16 %v821, %v817
    %v954 = vpack.c.b16 %v822, %v818
    %v955 = vpack.c.b16 %v823, %v819
    %v956 = vpack.c.b16 %v824, %v820
    %v957 = vpack.c.b16 %v829, %v825
    %v958 = vpack.c.b16 %v830, %v826
    %v959 = vpack.c.b16 %v831, %v827
    %v960 = vpack.c.b16 %v832, %v828
    %v961 = vpack.c.b16 %v837, %v833
    %v962 = vpack.c.b16 %v838, %v834
    %v963 = vpack.c.b16 %v839, %v835
    %v964 = vpack.c.b16 %v840, %v836
    %v965 = vpack.c.b16 %v845, %v841
    %v966 = vpack.c.b16 %v846, %v842
    %v967 = vpack.c.b16 %v847, %v843
    %v968 = vpack.c.b16 %v848, %v844
    %v969 = vpack.c.b16 %v853, %v849
    %v970 = vpack.c.b16 %v854, %v850
    %v971 = vpack.c.b16 %v855, %v851
    %v972 = vpack.c.b16 %v856, %v852
    %v973 = vpack.c.b16 %v861, %v857
    %v974 = vpack.c.b16 %v862, %v858
    %v975 = vpack.c.b16 %v863, %v859
    %v976 = vpack.c.b16 %v864, %v860
    %v977 = vpack.c.b16 %v869, %v865
    %v978 = vpack.c.b16 %v870, %v866
    %v979 = vpack.c.b16 %v871, %v867
    %v980 = vpack.c.b16 %v872, %v868
    %v981 = vpack.c.b16 %v877, %v873
    %v982 = vpack.c.b16 %v878, %v874
    %v983 = vpack.c.b16 %v879, %v875
    %v984 = vpack.c.b16 %v880, %v876
    %v985 = vpack.c.b16 %v885, %v881
    %v986 = vpack.c.b16 %v886, %v882
    %v987 = vpack.c.b16 %v887, %v883
    %v988 = vpack.c.b16 %v888, %v884
    %vm1089 = vcmask 130048
    %v1091 = vsel %vm1089, %v568, 0
    %v1094 = vsel %vm1089, %v572, 0
    %1096 = vmatprep.subr.bf16.mxu0 %v890
    %1097 = vmatpush1.bf16.msra.mxu0 %v889
    %1098 = vmatprep.subr.bf16.mxu0 %v894
    %1099 = vmatpush1.bf16.msra.mxu0 %v893
    %1100 = vmatprep.subr.bf16.mxu0 %v898
    %1101 = vmatpush1.bf16.msra.mxu0 %v897
    %1102 = vmatprep.subr.bf16.mxu0 %v902
    %1103 = vmatpush1.bf16.msra.mxu0 %v901
    %1104 = vmatprep.subr.bf16.mxu0 %v906
    %1105 = vmatpush1.bf16.msra.mxu0 %v905
    %1106 = vmatprep.subr.bf16.mxu0 %v910
    %1107 = vmatpush1.bf16.msra.mxu0 %v909
    %1108 = vmatprep.subr.bf16.mxu0 %v914
    %1109 = vmatpush1.bf16.msra.mxu0 %v913
    %1110 = vmatprep.subr.bf16.mxu0 %v918
    %1111 = vmatpush1.bf16.msra.mxu0 %v917
    %1112 = vmatprep.subr.bf16.mxu0 %v922
    %1113 = vmatpush1.bf16.msra.mxu0 %v921
    %1114 = vmatprep.subr.bf16.mxu0 %v926
    %1115 = vmatpush1.bf16.msra.mxu0 %v925
    %1116 = vmatprep.subr.bf16.mxu0 %v930
    %1117 = vmatpush1.bf16.msra.mxu0 %v929
    %1118 = vmatprep.subr.bf16.mxu0 %v934
    %1119 = vmatpush1.bf16.msra.mxu0 %v933
    %1120 = vmatprep.subr.bf16.mxu0 %v938
    %1121 = vmatpush1.bf16.msra.mxu0 %v937
    %1122 = vmatprep.subr.bf16.mxu0 %v942
    %1123 = vmatpush1.bf16.msra.mxu0 %v941
    %1124 = vmatprep.subr.bf16.mxu0 %v946
    %1125 = vmatpush1.bf16.msra.mxu0 %v945
    %1126 = vmatprep.subr.bf16.mxu0 %v950
    %1127 = vmatpush1.bf16.msra.mxu0 %v949
    %1128 = vmatprep.mubr.bf16.mxu0 %v566
    %1129 = vmatmul.mubr.bf16.gmra.mrb[0].mxu0 %v565
    %v1130 = vpop.f32.mrb[0].mxu0
    %v1131 = vadd.f32 %v576, %v1130
    %v1132 = vpop.f32.mrb[0].mxu0
    %v1133 = vadd.f32 %v580, %v1132
    %v1134 = vpop.f32.mrb[0].mxu0
    %v1135 = vadd.f32 %v576, %v1134
    %v1136 = vpop.f32.mrb[0].mxu0
    %v1137 = vadd.f32 %v580, %v1136
    %1138 = vmatprep.mubr.bf16.mxu0 %v570
    %1139 = vmatmul.mubr.bf16.gmra.mrb[0].mxu0 %v569
    %v1140 = vpop.f32.mrb[0].mxu0
    %v1141 = vadd.f32 %v576, %v1140
    %v1142 = vpop.f32.mrb[0].mxu0
    %v1143 = vadd.f32 %v580, %v1142
    %v1144 = vpop.f32.mrb[0].mxu0
    %v1145 = vadd.f32 %v576, %v1144
    %v1146 = vpop.f32.mrb[0].mxu0
    %v1147 = vadd.f32 %v580, %v1146
    %1148 = vdwg.mxu0
    %1149 = vmatprep.subr.bf16.mxu0 %v954
    %1150 = vmatpush1.bf16.msra.mxu0 %v953
    %1151 = vmatprep.subr.bf16.mxu0 %v958
    %1152 = vmatpush1.bf16.msra.mxu0 %v957
    %1153 = vmatprep.subr.bf16.mxu0 %v962
    %1154 = vmatpush1.bf16.msra.mxu0 %v961
    %1155 = vmatprep.subr.bf16.mxu0 %v966
    %1156 = vmatpush1.bf16.msra.mxu0 %v965
    %1157 = vmatprep.subr.bf16.mxu0 %v970
    %1158 = vmatpush1.bf16.msra.mxu0 %v969
    %1159 = vmatprep.subr.bf16.mxu0 %v974
    %1160 = vmatpush1.bf16.msra.mxu0 %v973
    %1161 = vmatprep.subr.bf16.mxu0 %v978
    %1162 = vmatpush1.bf16.msra.mxu0 %v977
    %1163 = vmatprep.subr.bf16.mxu0 %v982
    %1164 = vmatpush1.bf16.msra.mxu0 %v981
    %1165 = vmatprep.subr.bf16.mxu0 %v986
    %1166 = vmatpush1.bf16.msra.mxu0 %v985
    %1167 = vmatprep.subr.bf16.mxu0 0
    %1168 = vmatpush1.bf16.msra.mxu0 0
    %1169 = vmatprep.subr.bf16.mxu0 0
    %1170 = vmatpush1.bf16.msra.mxu0 0
    %1171 = vmatprep.subr.bf16.mxu0 0
    %1172 = vmatpush1.bf16.msra.mxu0 0
    %1173 = vmatprep.subr.bf16.mxu0 0
    %1174 = vmatpush1.bf16.msra.mxu0 0
    %1175 = vmatprep.subr.bf16.mxu0 0
    %1176 = vmatpush1.bf16.msra.mxu0 0
    %1177 = vmatprep.subr.bf16.mxu0 0
    %1178 = vmatpush1.bf16.msra.mxu0 0
    %1179 = vmatprep.subr.bf16.mxu0 0
    %1180 = vmatpush1.bf16.msra.mxu0 0
    %1181 = vmatprep.mubr.bf16.mxu0 %v1091
    %1182 = vmatmul.mubr.bf16.gmra.mrb[0].mxu0 %v567
    %v1183 = vpop.f32.mrb[0].mxu0
    %v1184 = vadd.f32 %v1131, %v1183
    %v1185 = vpop.f32.mrb[0].mxu0
    %v1186 = vadd.f32 %v1133, %v1185
    %v1187 = vpop.f32.mrb[0].mxu0
    %v1188 = vadd.f32 %v1135, %v1187
    %v1189 = vpop.f32.mrb[0].mxu0
    %v1190 = vadd.f32 %v1137, %v1189
    %1191 = vmatprep.mubr.bf16.mxu0 %v1094
    %1192 = vmatmul.mubr.bf16.gmra.mrb[0].mxu0 %v571
    %v1193 = vpop.f32.mrb[0].mxu0
    %v1194 = vadd.f32 %v1141, %v1193
    %v1195 = vpop.f32.mrb[0].mxu0
    %v1196 = vadd.f32 %v1143, %v1195
    %v1197 = vpop.f32.mrb[0].mxu0
    %v1198 = vadd.f32 %v1145, %v1197
    %v1199 = vpop.f32.mrb[0].mxu0
    %v1200 = vadd.f32 %v1147, %v1199
    %1201 = vdwg.mxu0
    %1202 = vmatprep.subr.bf16.mxu0 %v892
    %1203 = vmatpush1.bf16.msra.mxu0 %v891
    %1204 = vmatprep.subr.bf16.mxu0 %v896
    %1205 = vmatpush1.bf16.msra.mxu0 %v895
    %1206 = vmatprep.subr.bf16.mxu0 %v900
    %1207 = vmatpush1.bf16.msra.mxu0 %v899
    %1208 = vmatprep.subr.bf16.mxu0 %v904
    %1209 = vmatpush1.bf16.msra.mxu0 %v903
    %1210 = vmatprep.subr.bf16.mxu0 %v908
    %1211 = vmatpush1.bf16.msra.mxu0 %v907
    %1212 = vmatprep.subr.bf16.mxu0 %v912
    %1213 = vmatpush1.bf16.msra.mxu0 %v911
    %1214 = vmatprep.subr.bf16.mxu0 %v916
    %1215 = vmatpush1.bf16.msra.mxu0 %v915
    %1216 = vmatprep.subr.bf16.mxu0 %v920
    %1217 = vmatpush1.bf16.msra.mxu0 %v919
    %1218 = vmatprep.subr.bf16.mxu0 %v924
    %1219 = vmatpush1.bf16.msra.mxu0 %v923
    %1220 = vmatprep.subr.bf16.mxu0 %v928
    %1221 = vmatpush1.bf16.msra.mxu0 %v927
    %1222 = vmatprep.subr.bf16.mxu0 %v932
    %1223 = vmatpush1.bf16.msra.mxu0 %v931
    %1224 = vmatprep.subr.bf16.mxu0 %v936
    %1225 = vmatpush1.bf16.msra.mxu0 %v935
    %1226 = vmatprep.subr.bf16.mxu0 %v940
    %1227 = vmatpush1.bf16.msra.mxu0 %v939
    %1228 = vmatprep.subr.bf16.mxu0 %v944
    %1229 = vmatpush1.bf16.msra.mxu0 %v943
    %1230 = vmatprep.subr.bf16.mxu0 %v948
    %1231 = vmatpush1.bf16.msra.mxu0 %v947
    %1232 = vmatprep.subr.bf16.mxu0 %v952
    %1233 = vmatpush1.bf16.msra.mxu0 %v951
    %1234 = vmatprep.mubr.bf16.mxu0 %v566
    %1235 = vmatmul.mubr.bf16.gmra.mrb[0].mxu0 %v565
    %v1236 = vpop.f32.mrb[0].mxu0
    %v1237 = vadd.f32 %v584, %v1236
    %v1238 = vpop.f32.mrb[0].mxu0
    %v1239 = vadd.f32 %v588, %v1238
    %v1240 = vpop.f32.mrb[0].mxu0
    %v1241 = vadd.f32 %v584, %v1240
    %v1242 = vpop.f32.mrb[0].mxu0
    %v1243 = vadd.f32 %v588, %v1242
    %1244 = vmatprep.mubr.bf16.mxu0 %v570
    %1245 = vmatmul.mubr.bf16.gmra.mrb[0].mxu0 %v569
    %v1246 = vpop.f32.mrb[0].mxu0
    %v1247 = vadd.f32 %v584, %v1246
    %v1248 = vpop.f32.mrb[0].mxu0
    %v1249 = vadd.f32 %v588, %v1248
    %v1250 = vpop.f32.mrb[0].mxu0
    %v1251 = vadd.f32 %v584, %v1250
    %v1252 = vpop.f32.mrb[0].mxu0
    %v1253 = vadd.f32 %v588, %v1252
    %1254 = vdwg.mxu0
    %1255 = vmatprep.subr.bf16.mxu0 %v956
    %1256 = vmatpush1.bf16.msra.mxu0 %v955
    %1257 = vmatprep.subr.bf16.mxu0 %v960
    %1258 = vmatpush1.bf16.msra.mxu0 %v959
    %1259 = vmatprep.subr.bf16.mxu0 %v964
    %1260 = vmatpush1.bf16.msra.mxu0 %v963
    %1261 = vmatprep.subr.bf16.mxu0 %v968
    %1262 = vmatpush1.bf16.msra.mxu0 %v967
    %1263 = vmatprep.subr.bf16.mxu0 %v972
    %1264 = vmatpush1.bf16.msra.mxu0 %v971
    %1265 = vmatprep.subr.bf16.mxu0 %v976
    %1266 = vmatpush1.bf16.msra.mxu0 %v975
    %1267 = vmatprep.subr.bf16.mxu0 %v980
    %1268 = vmatpush1.bf16.msra.mxu0 %v979
    %1269 = vmatprep.subr.bf16.mxu0 %v984
    %1270 = vmatpush1.bf16.msra.mxu0 %v983
    %1271 = vmatprep.subr.bf16.mxu0 %v988
    %1272 = vmatpush1.bf16.msra.mxu0 %v987
    %1273 = vmatprep.subr.bf16.mxu0 0
    %1274 = vmatpush1.bf16.msra.mxu0 0
    %1275 = vmatprep.subr.bf16.mxu0 0
    %1276 = vmatpush1.bf16.msra.mxu0 0
    %1277 = vmatprep.subr.bf16.mxu0 0
    %1278 = vmatpush1.bf16.msra.mxu0 0
    %1279 = vmatprep.subr.bf16.mxu0 0
    %1280 = vmatpush1.bf16.msra.mxu0 0
    %1281 = vmatprep.subr.bf16.mxu0 0
    %1282 = vmatpush1.bf16.msra.mxu0 0
    %1283 = vmatprep.subr.bf16.mxu0 0
    %1284 = vmatpush1.bf16.msra.mxu0 0
    %1285 = vmatprep.subr.bf16.mxu0 0
    %1286 = vmatpush1.bf16.msra.mxu0 0
    %1287 = vmatprep.mubr.bf16.mxu0 %v1091
    %1288 = vmatmul.mubr.bf16.gmra.mrb[0].mxu0 %v567
    %v1289 = vpop.f32.mrb[0].mxu0
    %v1290 = vadd.f32 %v1237, %v1289
    %v1291 = vpop.f32.mrb[0].mxu0
    %v1292 = vadd.f32 %v1239, %v1291
    %v1293 = vpop.f32.mrb[0].mxu0
    %v1294 = vadd.f32 %v1241, %v1293
    %v1295 = vpop.f32.mrb[0].mxu0
    %v1296 = vadd.f32 %v1243, %v1295
    %1297 = vmatprep.mubr.bf16.mxu0 %v1094
    %1298 = vmatmul.mubr.bf16.gmra.mrb[0].mxu0 %v571
    %v1299 = vpop.f32.mrb[0].mxu0
    %v1300 = vadd.f32 %v1247, %v1299
    %v1301 = vpop.f32.mrb[0].mxu0
    %v1302 = vadd.f32 %v1249, %v1301
    %v1303 = vpop.f32.mrb[0].mxu0
    %v1304 = vadd.f32 %v1251, %v1303
    %v1305 = vpop.f32.mrb[0].mxu0
    %v1306 = vadd.f32 %v1253, %v1305
    %1307 = vdwg.mxu0
    %v1308 = vmax.f32 %v1184, 0.0
    %v1309 = vmax.f32 %v1186, 0.0
    %v1310 = vmax.f32 %v1290, 0.0
    %v1311 = vmax.f32 %v1292, 0.0
    %v1312 = vmax.f32 %v1188, 0.0
    %v1313 = vmax.f32 %v1190, 0.0
    %v1314 = vmax.f32 %v1294, 0.0
    %v1315 = vmax.f32 %v1296, 0.0
    %v1316 = vmax.f32 %v1194, 0.0
    %v1317 = vmax.f32 %v1196, 0.0
    %v1318 = vmax.f32 %v1300, 0.0
    %v1319 = vmax.f32 %v1302, 0.0
    %v1320 = vmax.f32 %v1198, 0.0
    %v1321 = vmax.f32 %v1200, 0.0
    %v1322 = vmax.f32 %v1304, 0.0
    %v1323 = vmax.f32 %v1306, 0.0
    %s1324 = scalar_lea.vmem [#allocation11], 800
    %v1325 = vld [vmem:[%s1324] sm:$0xff]
    %v1326 = vld [vmem:[%s1324 + $0x8] sm:$0xff]
    %v1327 = vld [vmem:[%s1324 + $0x10] sm:$0xff]
    %v1328 = vld [vmem:[%s1324 + $0x18] sm:$0xff]
    %v1329 = vld [vmem:[%s1324 + $0x20] sm:$0xff]
    %v1330 = vld [vmem:[%s1324 + $0x28] sm:$0xff]
    %v1331 = vld [vmem:[%s1324 + $0x30] sm:$0xff]
    %v1332 = vld [vmem:[%s1324 + $0x38] sm:$0xff]
    %v1333 = vld [vmem:[%s1324 + $0x40] sm:$0xff]
    %v1334 = vld [vmem:[%s1324 + $0x48] sm:$0xff]
    %v1335 = vld [vmem:[%s1324 + $0x50] sm:$0xff]
    %v1336 = vld [vmem:[%s1324 + $0x58] sm:$0xff]
    %v1337 = vld [vmem:[%s1324 + $0x60] sm:$0xff]
    %v1338 = vld [vmem:[%s1324 + $0x68] sm:$0xff]
    %v1339 = vld [vmem:[%s1324 + $0x70] sm:$0xff]
    %v1340 = vld [vmem:[%s1324 + $0x78] sm:$0xff]
    %v1341 = vld [vmem:[%s1324 + $0x80] sm:$0xff]
    %v1342 = vld [vmem:[%s1324 + $0x88] sm:$0xff]
    %v1343 = vld [vmem:[%s1324 + $0x90] sm:$0xff]
    %v1344 = vld [vmem:[%s1324 + $0x98] sm:$0xff]
    %v1345 = vld [vmem:[%s1324 + $0xa0] sm:$0xff]
    %v1346 = vld [vmem:[%s1324 + $0xa8] sm:$0xff]
    %v1347 = vld [vmem:[%s1324 + $0xb0] sm:$0xff]
    %v1348 = vld [vmem:[%s1324 + $0xb8] sm:$0xff]
    %v1349 = vld [vmem:[%s1324 + $0xc0] sm:$0xff]
    %v1350 = vld [vmem:[%s1324 + $0xc8] sm:$0xff]
    %v1351 = vld [vmem:[%s1324 + $0xd0] sm:$0xff]
    %v1352 = vld [vmem:[%s1324 + $0xd8] sm:$0xff]
    %v1353 = vld [vmem:[%s1324 + $0xe0] sm:$0xff]
    %v1354 = vld [vmem:[%s1324 + $0xe8] sm:$0xff]
    %v1355 = vld [vmem:[%s1324 + $0xf0] sm:$0xff]
    %v1356 = vld [vmem:[%s1324 + $0xf8] sm:$0xff]
    %v1357 = vld [vmem:[%s1324 + $0x100] sm:$0xff]
    %v1358 = vld [vmem:[%s1324 + $0x108] sm:$0xff]
    %v1359 = vld [vmem:[%s1324 + $0x110] sm:$0xff]
    %v1360 = vld [vmem:[%s1324 + $0x118] sm:$0xff]
    %v1361 = vld [vmem:[%s1324 + $0x120] sm:$0xff]
    %v1362 = vld [vmem:[%s1324 + $0x128] sm:$0xff]
    %v1363 = vld [vmem:[%s1324 + $0x130] sm:$0xff]
    %v1364 = vld [vmem:[%s1324 + $0x138] sm:$0xff]
    %v1365 = vld [vmem:[%s1324 + $0x140] sm:$0xff]
    %v1366 = vld [vmem:[%s1324 + $0x148] sm:$0xff]
    %v1367 = vld [vmem:[%s1324 + $0x150] sm:$0xff]
    %v1368 = vld [vmem:[%s1324 + $0x158] sm:$0xff]
    %v1369 = vld [vmem:[%s1324 + $0x160] sm:$0xff]
    %v1370 = vld [vmem:[%s1324 + $0x168] sm:$0xff]
    %v1371 = vld [vmem:[%s1324 + $0x170] sm:$0xff]
    %v1372 = vld [vmem:[%s1324 + $0x178] sm:$0xff]
    %v1373 = vld [vmem:[%s1324 + $0x180] sm:$0xff]
    %v1374 = vld [vmem:[%s1324 + $0x188] sm:$0xff]
    %v1375 = vld [vmem:[%s1324 + $0x190] sm:$0xff]
    %v1376 = vld [vmem:[%s1324 + $0x198] sm:$0xff]
    %v1377 = vld [vmem:[%s1324 + $0x1a0] sm:$0xff]
    %v1378 = vld [vmem:[%s1324 + $0x1a8] sm:$0xff]
    %v1379 = vld [vmem:[%s1324 + $0x1b0] sm:$0xff]
    %v1380 = vld [vmem:[%s1324 + $0x1b8] sm:$0xff]
    %v1381 = vld [vmem:[%s1324 + $0x1c0] sm:$0xff]
    %v1382 = vld [vmem:[%s1324 + $0x1c8] sm:$0xff]
    %v1383 = vld [vmem:[%s1324 + $0x1d0] sm:$0xff]
    %v1384 = vld [vmem:[%s1324 + $0x1d8] sm:$0xff]
    %v1385 = vld [vmem:[%s1324 + $0x1e0] sm:$0xff]
    %v1386 = vld [vmem:[%s1324 + $0x1e8] sm:$0xff]
    %v1387 = vld [vmem:[%s1324 + $0x1f0] sm:$0xff]
    %v1388 = vld [vmem:[%s1324 + $0x1f8] sm:$0xff]
    %v1389 = vld [vmem:[%s1324 + $0x200] sm:$0xff]
    %v1390 = vld [vmem:[%s1324 + $0x208] sm:$0xff]
    %v1391 = vld [vmem:[%s1324 + $0x210] sm:$0xff]
    %v1392 = vld [vmem:[%s1324 + $0x218] sm:$0xff]
    %v1393 = vld [vmem:[%s1324 + $0x220] sm:$0xff]
    %v1394 = vld [vmem:[%s1324 + $0x228] sm:$0xff]
    %v1395 = vld [vmem:[%s1324 + $0x230] sm:$0xff]
    %v1396 = vld [vmem:[%s1324 + $0x238] sm:$0xff]
    %v1397 = vld [vmem:[%s1324 + $0x240] sm:$0xff]
    %v1398 = vld [vmem:[%s1324 + $0x248] sm:$0xff]
    %v1399 = vld [vmem:[%s1324 + $0x250] sm:$0xff]
    %v1400 = vld [vmem:[%s1324 + $0x258] sm:$0xff]
    %v1401 = vld [vmem:[%s1324 + $0x260] sm:$0xff]
    %v1402 = vld [vmem:[%s1324 + $0x268] sm:$0xff]
    %v1403 = vld [vmem:[%s1324 + $0x270] sm:$0xff]
    %v1404 = vld [vmem:[%s1324 + $0x278] sm:$0xff]
    %v1405 = vld [vmem:[%s1324 + $0x280] sm:$0xff]
    %v1406 = vld [vmem:[%s1324 + $0x288] sm:$0xff]
    %v1407 = vld [vmem:[%s1324 + $0x290] sm:$0xff]
    %v1408 = vld [vmem:[%s1324 + $0x298] sm:$0xff]
    %v1409 = vld [vmem:[%s1324 + $0x2a0] sm:$0xff]
    %v1410 = vld [vmem:[%s1324 + $0x2a8] sm:$0xff]
    %v1411 = vld [vmem:[%s1324 + $0x2b0] sm:$0xff]
    %v1412 = vld [vmem:[%s1324 + $0x2b8] sm:$0xff]
    %v1413 = vld [vmem:[%s1324 + $0x2c0] sm:$0xff]
    %v1414 = vld [vmem:[%s1324 + $0x2c8] sm:$0xff]
    %v1415 = vld [vmem:[%s1324 + $0x2d0] sm:$0xff]
    %v1416 = vld [vmem:[%s1324 + $0x2d8] sm:$0xff]
    %v1417 = vld [vmem:[%s1324 + $0x2e0] sm:$0xff]
    %v1418 = vld [vmem:[%s1324 + $0x2e8] sm:$0xff]
    %v1419 = vld [vmem:[%s1324 + $0x2f0] sm:$0xff]
    %v1420 = vld [vmem:[%s1324 + $0x2f8] sm:$0xff]
    %v1421 = vld [vmem:[%s1324 + $0x300] sm:$0xff]
    %v1422 = vld [vmem:[%s1324 + $0x308] sm:$0xff]
    %v1423 = vld [vmem:[%s1324 + $0x310] sm:$0xff]
    %v1424 = vld [vmem:[%s1324 + $0x318] sm:$0xff]
    %v1425 = vpack.c.bf16 %v1312, %v1308
    %v1426 = vpack.c.bf16 %v1313, %v1309
    %v1427 = vpack.c.bf16 %v1314, %v1310
    %v1428 = vpack.c.bf16 %v1315, %v1311
    %v1429 = vpack.c.bf16 %v1320, %v1316
    %v1430 = vpack.c.bf16 %v1321, %v1317
    %v1431 = vpack.c.bf16 %v1322, %v1318
    %v1432 = vpack.c.bf16 %v1323, %v1319
    %v1433 = vlaneseq
    %v1434 = vshrl.u32 %v1433, 7
    %v1435 = vsub.s32 2, %v1434
    %v1436 = vrot.slane %v183, %v1435
    %v1437 = vlaneseq
    %v1438 = vshrl.u32 %v1437, 7
    %v1439 = vsub.s32 2, %v1438
    %v1440 = vrot.slane %v184, %v1439
    %v1441 = vlaneseq
    %v1442 = vshrl.u32 %v1441, 7
    %v1443 = vsub.s32 2, %v1442
    %v1444 = vrot.slane %v185, %v1443
    %v1445 = vlaneseq
    %v1446 = vshrl.u32 %v1445, 7
    %v1447 = vsub.s32 2, %v1446
    %v1448 = vrot.slane %v186, %v1447
    %v1549 = vunpack.c.l.b16 %v1325
    %v1550 = vunpack.c.h.b16 %v1325
    %v1551 = vunpack.c.l.b16 %v1326
    %v1552 = vunpack.c.h.b16 %v1326
    %v1553 = vunpack.c.l.b16 %v1327
    %v1554 = vunpack.c.h.b16 %v1327
    %v1555 = vunpack.c.l.b16 %v1328
    %v1556 = vunpack.c.h.b16 %v1328
    %v1557 = vunpack.c.l.b16 %v1329
    %v1558 = vunpack.c.h.b16 %v1329
    %v1559 = vunpack.c.l.b16 %v1330
    %v1560 = vunpack.c.h.b16 %v1330
    %v1561 = vunpack.c.l.b16 %v1331
    %v1562 = vunpack.c.h.b16 %v1331
    %v1563 = vunpack.c.l.b16 %v1332
    %v1564 = vunpack.c.h.b16 %v1332
    %v1565 = vunpack.c.l.b16 %v1333
    %v1566 = vunpack.c.h.b16 %v1333
    %v1567 = vunpack.c.l.b16 %v1334
    %v1568 = vunpack.c.h.b16 %v1334
    %v1569 = vunpack.c.l.b16 %v1335
    %v1570 = vunpack.c.h.b16 %v1335
    %v1571 = vunpack.c.l.b16 %v1336
    %v1572 = vunpack.c.h.b16 %v1336
    %v1573 = vunpack.c.l.b16 %v1337
    %v1574 = vunpack.c.h.b16 %v1337
    %v1575 = vunpack.c.l.b16 %v1338
    %v1576 = vunpack.c.h.b16 %v1338
    %v1577 = vunpack.c.l.b16 %v1339
    %v1578 = vunpack.c.h.b16 %v1339
    %v1579 = vunpack.c.l.b16 %v1340
    %v1580 = vunpack.c.h.b16 %v1340
    %v1581 = vunpack.c.l.b16 %v1341
    %v1582 = vunpack.c.h.b16 %v1341
    %v1583 = vunpack.c.l.b16 %v1342
    %v1584 = vunpack.c.h.b16 %v1342
    %v1585 = vunpack.c.l.b16 %v1343
    %v1586 = vunpack.c.h.b16 %v1343
    %v1587 = vunpack.c.l.b16 %v1344
    %v1588 = vunpack.c.h.b16 %v1344
    %v1589 = vunpack.c.l.b16 %v1345
    %v1590 = vunpack.c.h.b16 %v1345
    %v1591 = vunpack.c.l.b16 %v1346
    %v1592 = vunpack.c.h.b16 %v1346
    %v1593 = vunpack.c.l.b16 %v1347
    %v1594 = vunpack.c.h.b16 %v1347
    %v1595 = vunpack.c.l.b16 %v1348
    %v1596 = vunpack.c.h.b16 %v1348
    %v1597 = vunpack.c.l.b16 %v1349
    %v1598 = vunpack.c.h.b16 %v1349
    %v1599 = vunpack.c.l.b16 %v1350
    %v1600 = vunpack.c.h.b16 %v1350
    %v1601 = vunpack.c.l.b16 %v1351
    %v1602 = vunpack.c.h.b16 %v1351
    %v1603 = vunpack.c.l.b16 %v1352
    %v1604 = vunpack.c.h.b16 %v1352
    %v1605 = vunpack.c.l.b16 %v1353
    %v1606 = vunpack.c.h.b16 %v1353
    %v1607 = vunpack.c.l.b16 %v1354
    %v1608 = vunpack.c.h.b16 %v1354
    %v1609 = vunpack.c.l.b16 %v1355
    %v1610 = vunpack.c.h.b16 %v1355
    %v1611 = vunpack.c.l.b16 %v1356
    %v1612 = vunpack.c.h.b16 %v1356
    %v1613 = vunpack.c.l.b16 %v1357
    %v1614 = vunpack.c.h.b16 %v1357
    %v1615 = vunpack.c.l.b16 %v1358
    %v1616 = vunpack.c.h.b16 %v1358
    %v1617 = vunpack.c.l.b16 %v1359
    %v1618 = vunpack.c.h.b16 %v1359
    %v1619 = vunpack.c.l.b16 %v1360
    %v1620 = vunpack.c.h.b16 %v1360
    %v1621 = vunpack.c.l.b16 %v1361
    %v1622 = vunpack.c.h.b16 %v1361
    %v1623 = vunpack.c.l.b16 %v1362
    %v1624 = vunpack.c.h.b16 %v1362
    %v1625 = vunpack.c.l.b16 %v1363
    %v1626 = vunpack.c.h.b16 %v1363
    %v1627 = vunpack.c.l.b16 %v1364
    %v1628 = vunpack.c.h.b16 %v1364
    %v1629 = vunpack.c.l.b16 %v1365
    %v1630 = vunpack.c.h.b16 %v1365
    %v1631 = vunpack.c.l.b16 %v1366
    %v1632 = vunpack.c.h.b16 %v1366
    %v1633 = vunpack.c.l.b16 %v1367
    %v1634 = vunpack.c.h.b16 %v1367
    %v1635 = vunpack.c.l.b16 %v1368
    %v1636 = vunpack.c.h.b16 %v1368
    %v1637 = vunpack.c.l.b16 %v1369
    %v1638 = vunpack.c.h.b16 %v1369
    %v1639 = vunpack.c.l.b16 %v1370
    %v1640 = vunpack.c.h.b16 %v1370
    %v1641 = vunpack.c.l.b16 %v1371
    %v1642 = vunpack.c.h.b16 %v1371
    %v1643 = vunpack.c.l.b16 %v1372
    %v1644 = vunpack.c.h.b16 %v1372
    %v1645 = vunpack.c.l.b16 %v1373
    %v1646 = vunpack.c.h.b16 %v1373
    %v1647 = vunpack.c.l.b16 %v1374
    %v1648 = vunpack.c.h.b16 %v1374
    %v1649 = vunpack.c.l.b16 %v1375
    %v1650 = vunpack.c.h.b16 %v1375
    %v1651 = vunpack.c.l.b16 %v1376
    %v1652 = vunpack.c.h.b16 %v1376
    %v1653 = vunpack.c.l.b16 %v1377
    %v1654 = vunpack.c.h.b16 %v1377
    %v1655 = vunpack.c.l.b16 %v1378
    %v1656 = vunpack.c.h.b16 %v1378
    %v1657 = vunpack.c.l.b16 %v1379
    %v1658 = vunpack.c.h.b16 %v1379
    %v1659 = vunpack.c.l.b16 %v1380
    %v1660 = vunpack.c.h.b16 %v1380
    %v1661 = vunpack.c.l.b16 %v1381
    %v1662 = vunpack.c.h.b16 %v1381
    %v1663 = vunpack.c.l.b16 %v1382
    %v1664 = vunpack.c.h.b16 %v1382
    %v1665 = vunpack.c.l.b16 %v1383
    %v1666 = vunpack.c.h.b16 %v1383
    %v1667 = vunpack.c.l.b16 %v1384
    %v1668 = vunpack.c.h.b16 %v1384
    %v1669 = vunpack.c.l.b16 %v1385
    %v1670 = vunpack.c.h.b16 %v1385
    %v1671 = vunpack.c.l.b16 %v1386
    %v1672 = vunpack.c.h.b16 %v1386
    %v1673 = vunpack.c.l.b16 %v1387
    %v1674 = vunpack.c.h.b16 %v1387
    %v1675 = vunpack.c.l.b16 %v1388
    %v1676 = vunpack.c.h.b16 %v1388
    %v1677 = vunpack.c.l.b16 %v1389
    %v1678 = vunpack.c.h.b16 %v1389
    %v1679 = vunpack.c.l.b16 %v1390
    %v1680 = vunpack.c.h.b16 %v1390
    %v1681 = vunpack.c.l.b16 %v1391
    %v1682 = vunpack.c.h.b16 %v1391
    %v1683 = vunpack.c.l.b16 %v1392
    %v1684 = vunpack.c.h.b16 %v1392
    %v1685 = vunpack.c.l.b16 %v1393
    %v1686 = vunpack.c.h.b16 %v1393
    %v1687 = vunpack.c.l.b16 %v1394
    %v1688 = vunpack.c.h.b16 %v1394
    %v1689 = vunpack.c.l.b16 %v1395
    %v1690 = vunpack.c.h.b16 %v1395
    %v1691 = vunpack.c.l.b16 %v1396
    %v1692 = vunpack.c.h.b16 %v1396
    %v1693 = vunpack.c.l.b16 %v1397
    %v1694 = vunpack.c.h.b16 %v1397
    %v1695 = vunpack.c.l.b16 %v1398
    %v1696 = vunpack.c.h.b16 %v1398
    %v1697 = vunpack.c.l.b16 %v1399
    %v1698 = vunpack.c.h.b16 %v1399
    %v1699 = vunpack.c.l.b16 %v1400
    %v1700 = vunpack.c.h.b16 %v1400
    %v1701 = vunpack.c.l.b16 %v1401
    %v1702 = vunpack.c.h.b16 %v1401
    %v1703 = vunpack.c.l.b16 %v1402
    %v1704 = vunpack.c.h.b16 %v1402
    %v1705 = vunpack.c.l.b16 %v1403
    %v1706 = vunpack.c.h.b16 %v1403
    %v1707 = vunpack.c.l.b16 %v1404
    %v1708 = vunpack.c.h.b16 %v1404
    %v1709 = vunpack.c.l.b16 %v1405
    %v1710 = vunpack.c.h.b16 %v1405
    %v1711 = vunpack.c.l.b16 %v1406
    %v1712 = vunpack.c.h.b16 %v1406
    %v1713 = vunpack.c.l.b16 %v1407
    %v1714 = vunpack.c.h.b16 %v1407
    %v1715 = vunpack.c.l.b16 %v1408
    %v1716 = vunpack.c.h.b16 %v1408
    %v1717 = vunpack.c.l.b16 %v1409
    %v1718 = vunpack.c.h.b16 %v1409
    %v1719 = vunpack.c.l.b16 %v1410
    %v1720 = vunpack.c.h.b16 %v1410
    %v1721 = vunpack.c.l.b16 %v1411
    %v1722 = vunpack.c.h.b16 %v1411
    %v1723 = vunpack.c.l.b16 %v1412
    %v1724 = vunpack.c.h.b16 %v1412
    %v1725 = vunpack.c.l.b16 %v1413
    %v1726 = vunpack.c.h.b16 %v1413
    %v1727 = vunpack.c.l.b16 %v1414
    %v1728 = vunpack.c.h.b16 %v1414
    %v1729 = vunpack.c.l.b16 %v1415
    %v1730 = vunpack.c.h.b16 %v1415
    %v1731 = vunpack.c.l.b16 %v1416
    %v1732 = vunpack.c.h.b16 %v1416
    %v1733 = vunpack.c.l.b16 %v1417
    %v1734 = vunpack.c.h.b16 %v1417
    %v1735 = vunpack.c.l.b16 %v1418
    %v1736 = vunpack.c.h.b16 %v1418
    %v1737 = vunpack.c.l.b16 %v1419
    %v1738 = vunpack.c.h.b16 %v1419
    %v1739 = vunpack.c.l.b16 %v1420
    %v1740 = vunpack.c.h.b16 %v1420
    %v1741 = vunpack.c.l.b16 %v1421
    %v1742 = vunpack.c.h.b16 %v1421
    %v1743 = vunpack.c.l.b16 %v1422
    %v1744 = vunpack.c.h.b16 %v1422
    %v1745 = vunpack.c.l.b16 %v1423
    %v1746 = vunpack.c.h.b16 %v1423
    %v1747 = vunpack.c.l.b16 %v1424
    %v1748 = vunpack.c.h.b16 %v1424
    %v1749 = vpack.c.b16 %v1553, %v1549
    %v1750 = vpack.c.b16 %v1554, %v1550
    %v1751 = vpack.c.b16 %v1555, %v1551
    %v1752 = vpack.c.b16 %v1556, %v1552
    %v1753 = vpack.c.b16 %v1561, %v1557
    %v1754 = vpack.c.b16 %v1562, %v1558
    %v1755 = vpack.c.b16 %v1563, %v1559
    %v1756 = vpack.c.b16 %v1564, %v1560
    %v1757 = vpack.c.b16 %v1569, %v1565
    %v1758 = vpack.c.b16 %v1570, %v1566
    %v1759 = vpack.c.b16 %v1571, %v1567
    %v1760 = vpack.c.b16 %v1572, %v1568
    %v1761 = vpack.c.b16 %v1577, %v1573
    %v1762 = vpack.c.b16 %v1578, %v1574
    %v1763 = vpack.c.b16 %v1579, %v1575
    %v1764 = vpack.c.b16 %v1580, %v1576
    %v1765 = vpack.c.b16 %v1585, %v1581
    %v1766 = vpack.c.b16 %v1586, %v1582
    %v1767 = vpack.c.b16 %v1587, %v1583
    %v1768 = vpack.c.b16 %v1588, %v1584
    %v1769 = vpack.c.b16 %v1593, %v1589
    %v1770 = vpack.c.b16 %v1594, %v1590
    %v1771 = vpack.c.b16 %v1595, %v1591
    %v1772 = vpack.c.b16 %v1596, %v1592
    %v1773 = vpack.c.b16 %v1601, %v1597
    %v1774 = vpack.c.b16 %v1602, %v1598
    %v1775 = vpack.c.b16 %v1603, %v1599
    %v1776 = vpack.c.b16 %v1604, %v1600
    %v1777 = vpack.c.b16 %v1609, %v1605
    %v1778 = vpack.c.b16 %v1610, %v1606
    %v1779 = vpack.c.b16 %v1611, %v1607
    %v1780 = vpack.c.b16 %v1612, %v1608
    %v1781 = vpack.c.b16 %v1617, %v1613
    %v1782 = vpack.c.b16 %v1618, %v1614
    %v1783 = vpack.c.b16 %v1619, %v1615
    %v1784 = vpack.c.b16 %v1620, %v1616
    %v1785 = vpack.c.b16 %v1625, %v1621
    %v1786 = vpack.c.b16 %v1626, %v1622
    %v1787 = vpack.c.b16 %v1627, %v1623
    %v1788 = vpack.c.b16 %v1628, %v1624
    %v1789 = vpack.c.b16 %v1633, %v1629
    %v1790 = vpack.c.b16 %v1634, %v1630
    %v1791 = vpack.c.b16 %v1635, %v1631
    %v1792 = vpack.c.b16 %v1636, %v1632
    %v1793 = vpack.c.b16 %v1641, %v1637
    %v1794 = vpack.c.b16 %v1642, %v1638
    %v1795 = vpack.c.b16 %v1643, %v1639
    %v1796 = vpack.c.b16 %v1644, %v1640
    %v1797 = vpack.c.b16 %v1649, %v1645
    %v1798 = vpack.c.b16 %v1650, %v1646
    %v1799 = vpack.c.b16 %v1651, %v1647
    %v1800 = vpack.c.b16 %v1652, %v1648
    %v1801 = vpack.c.b16 %v1657, %v1653
    %v1802 = vpack.c.b16 %v1658, %v1654
    %v1803 = vpack.c.b16 %v1659, %v1655
    %v1804 = vpack.c.b16 %v1660, %v1656
    %v1805 = vpack.c.b16 %v1665, %v1661
    %v1806 = vpack.c.b16 %v1666, %v1662
    %v1807 = vpack.c.b16 %v1667, %v1663
    %v1808 = vpack.c.b16 %v1668, %v1664
    %v1809 = vpack.c.b16 %v1673, %v1669
    %v1810 = vpack.c.b16 %v1674, %v1670
    %v1811 = vpack.c.b16 %v1675, %v1671
    %v1812 = vpack.c.b16 %v1676, %v1672
    %v1813 = vpack.c.b16 %v1681, %v1677
    %v1814 = vpack.c.b16 %v1682, %v1678
    %v1815 = vpack.c.b16 %v1683, %v1679
    %v1816 = vpack.c.b16 %v1684, %v1680
    %v1817 = vpack.c.b16 %v1689, %v1685
    %v1818 = vpack.c.b16 %v1690, %v1686
    %v1819 = vpack.c.b16 %v1691, %v1687
    %v1820 = vpack.c.b16 %v1692, %v1688
    %v1821 = vpack.c.b16 %v1697, %v1693
    %v1822 = vpack.c.b16 %v1698, %v1694
    %v1823 = vpack.c.b16 %v1699, %v1695
    %v1824 = vpack.c.b16 %v1700, %v1696
    %v1825 = vpack.c.b16 %v1705, %v1701
    %v1826 = vpack.c.b16 %v1706, %v1702
    %v1827 = vpack.c.b16 %v1707, %v1703
    %v1828 = vpack.c.b16 %v1708, %v1704
    %v1829 = vpack.c.b16 %v1713, %v1709
    %v1830 = vpack.c.b16 %v1714, %v1710
    %v1831 = vpack.c.b16 %v1715, %v1711
    %v1832 = vpack.c.b16 %v1716, %v1712
    %v1833 = vpack.c.b16 %v1721, %v1717
    %v1834 = vpack.c.b16 %v1722, %v1718
    %v1835 = vpack.c.b16 %v1723, %v1719
    %v1836 = vpack.c.b16 %v1724, %v1720
    %v1837 = vpack.c.b16 %v1729, %v1725
    %v1838 = vpack.c.b16 %v1730, %v1726
    %v1839 = vpack.c.b16 %v1731, %v1727
    %v1840 = vpack.c.b16 %v1732, %v1728
    %v1841 = vpack.c.b16 %v1737, %v1733
    %v1842 = vpack.c.b16 %v1738, %v1734
    %v1843 = vpack.c.b16 %v1739, %v1735
    %v1844 = vpack.c.b16 %v1740, %v1736
    %v1845 = vpack.c.b16 %v1745, %v1741
    %v1846 = vpack.c.b16 %v1746, %v1742
    %v1847 = vpack.c.b16 %v1747, %v1743
    %v1848 = vpack.c.b16 %v1748, %v1744
    %v1950 = vsel %vm1089, %v1428, 0
    %v1953 = vsel %vm1089, %v1432, 0
    %1955 = vmatprep.subr.bf16.mxu0 %v1750
    %1956 = vmatpush1.bf16.msra.mxu0 %v1749
    %1957 = vmatprep.subr.bf16.mxu0 %v1754
    %1958 = vmatpush1.bf16.msra.mxu0 %v1753
    %1959 = vmatprep.subr.bf16.mxu0 %v1758
    %1960 = vmatpush1.bf16.msra.mxu0 %v1757
    %1961 = vmatprep.subr.bf16.mxu0 %v1762
    %1962 = vmatpush1.bf16.msra.mxu0 %v1761
    %1963 = vmatprep.subr.bf16.mxu0 %v1766
    %1964 = vmatpush1.bf16.msra.mxu0 %v1765
    %1965 = vmatprep.subr.bf16.mxu0 %v1770
    %1966 = vmatpush1.bf16.msra.mxu0 %v1769
    %1967 = vmatprep.subr.bf16.mxu0 %v1774
    %1968 = vmatpush1.bf16.msra.mxu0 %v1773
    %1969 = vmatprep.subr.bf16.mxu0 %v1778
    %1970 = vmatpush1.bf16.msra.mxu0 %v1777
    %1971 = vmatprep.subr.bf16.mxu0 %v1782
    %1972 = vmatpush1.bf16.msra.mxu0 %v1781
    %1973 = vmatprep.subr.bf16.mxu0 %v1786
    %1974 = vmatpush1.bf16.msra.mxu0 %v1785
    %1975 = vmatprep.subr.bf16.mxu0 %v1790
    %1976 = vmatpush1.bf16.msra.mxu0 %v1789
    %1977 = vmatprep.subr.bf16.mxu0 %v1794
    %1978 = vmatpush1.bf16.msra.mxu0 %v1793
    %1979 = vmatprep.subr.bf16.mxu0 %v1798
    %1980 = vmatpush1.bf16.msra.mxu0 %v1797
    %1981 = vmatprep.subr.bf16.mxu0 %v1802
    %1982 = vmatpush1.bf16.msra.mxu0 %v1801
    %1983 = vmatprep.subr.bf16.mxu0 %v1806
    %1984 = vmatpush1.bf16.msra.mxu0 %v1805
    %1985 = vmatprep.subr.bf16.mxu0 %v1810
    %1986 = vmatpush1.bf16.msra.mxu0 %v1809
    %1987 = vmatprep.mubr.bf16.mxu0 %v1426
    %1988 = vmatmul.mubr.bf16.gmra.mrb[0].mxu0 %v1425
    %v1989 = vpop.f32.mrb[0].mxu0
    %v1990 = vadd.f32 %v1436, %v1989
    %v1991 = vpop.f32.mrb[0].mxu0
    %v1992 = vadd.f32 %v1440, %v1991
    %v1993 = vpop.f32.mrb[0].mxu0
    %v1994 = vadd.f32 %v1436, %v1993
    %v1995 = vpop.f32.mrb[0].mxu0
    %v1996 = vadd.f32 %v1440, %v1995
    %1997 = vmatprep.mubr.bf16.mxu0 %v1430
    %1998 = vmatmul.mubr.bf16.gmra.mrb[0].mxu0 %v1429
    %v1999 = vpop.f32.mrb[0].mxu0
    %v2000 = vadd.f32 %v1436, %v1999
    %v2001 = vpop.f32.mrb[0].mxu0
    %v2002 = vadd.f32 %v1440, %v2001
    %v2003 = vpop.f32.mrb[0].mxu0
    %v2004 = vadd.f32 %v1436, %v2003
    %v2005 = vpop.f32.mrb[0].mxu0
    %v2006 = vadd.f32 %v1440, %v2005
    %2007 = vdwg.mxu0
    %2008 = vmatprep.subr.bf16.mxu0 %v1814
    %2009 = vmatpush1.bf16.msra.mxu0 %v1813
    %2010 = vmatprep.subr.bf16.mxu0 %v1818
    %2011 = vmatpush1.bf16.msra.mxu0 %v1817
    %2012 = vmatprep.subr.bf16.mxu0 %v1822
    %2013 = vmatpush1.bf16.msra.mxu0 %v1821
    %2014 = vmatprep.subr.bf16.mxu0 %v1826
    %2015 = vmatpush1.bf16.msra.mxu0 %v1825
    %2016 = vmatprep.subr.bf16.mxu0 %v1830
    %2017 = vmatpush1.bf16.msra.mxu0 %v1829
    %2018 = vmatprep.subr.bf16.mxu0 %v1834
    %2019 = vmatpush1.bf16.msra.mxu0 %v1833
    %2020 = vmatprep.subr.bf16.mxu0 %v1838
    %2021 = vmatpush1.bf16.msra.mxu0 %v1837
    %2022 = vmatprep.subr.bf16.mxu0 %v1842
    %2023 = vmatpush1.bf16.msra.mxu0 %v1841
    %2024 = vmatprep.subr.bf16.mxu0 %v1846
    %2025 = vmatpush1.bf16.msra.mxu0 %v1845
    %2026 = vmatprep.subr.bf16.mxu0 0
    %2027 = vmatpush1.bf16.msra.mxu0 0
    %2028 = vmatprep.subr.bf16.mxu0 0
    %2029 = vmatpush1.bf16.msra.mxu0 0
    %2030 = vmatprep.subr.bf16.mxu0 0
    %2031 = vmatpush1.bf16.msra.mxu0 0
    %2032 = vmatprep.subr.bf16.mxu0 0
    %2033 = vmatpush1.bf16.msra.mxu0 0
    %2034 = vmatprep.subr.bf16.mxu0 0
    %2035 = vmatpush1.bf16.msra.mxu0 0
    %2036 = vmatprep.subr.bf16.mxu0 0
    %2037 = vmatpush1.bf16.msra.mxu0 0
    %2038 = vmatprep.subr.bf16.mxu0 0
    %2039 = vmatpush1.bf16.msra.mxu0 0
    %2040 = vmatprep.mubr.bf16.mxu0 %v1950
    %2041 = vmatmul.mubr.bf16.gmra.mrb[0].mxu0 %v1427
    %v2042 = vpop.f32.mrb[0].mxu0
    %v2043 = vadd.f32 %v1990, %v2042
    %v2044 = vpop.f32.mrb[0].mxu0
    %v2045 = vadd.f32 %v1992, %v2044
    %v2046 = vpop.f32.mrb[0].mxu0
    %v2047 = vadd.f32 %v1994, %v2046
    %v2048 = vpop.f32.mrb[0].mxu0
    %v2049 = vadd.f32 %v1996, %v2048
    %2050 = vmatprep.mubr.bf16.mxu0 %v1953
    %2051 = vmatmul.mubr.bf16.gmra.mrb[0].mxu0 %v1431
    %v2052 = vpop.f32.mrb[0].mxu0
    %v2053 = vadd.f32 %v2000, %v2052
    %v2054 = vpop.f32.mrb[0].mxu0
    %v2055 = vadd.f32 %v2002, %v2054
    %v2056 = vpop.f32.mrb[0].mxu0
    %v2057 = vadd.f32 %v2004, %v2056
    %v2058 = vpop.f32.mrb[0].mxu0
    %v2059 = vadd.f32 %v2006, %v2058
    %2060 = vdwg.mxu0
    %2061 = vmatprep.subr.bf16.mxu0 %v1752
    %2062 = vmatpush1.bf16.msra.mxu0 %v1751
    %2063 = vmatprep.subr.bf16.mxu0 %v1756
    %2064 = vmatpush1.bf16.msra.mxu0 %v1755
    %2065 = vmatprep.subr.bf16.mxu0 %v1760
    %2066 = vmatpush1.bf16.msra.mxu0 %v1759
    %2067 = vmatprep.subr.bf16.mxu0 %v1764
    %2068 = vmatpush1.bf16.msra.mxu0 %v1763
    %2069 = vmatprep.subr.bf16.mxu0 %v1768
    %2070 = vmatpush1.bf16.msra.mxu0 %v1767
    %2071 = vmatprep.subr.bf16.mxu0 %v1772
    %2072 = vmatpush1.bf16.msra.mxu0 %v1771
    %2073 = vmatprep.subr.bf16.mxu0 %v1776
    %2074 = vmatpush1.bf16.msra.mxu0 %v1775
    %2075 = vmatprep.subr.bf16.mxu0 %v1780
    %2076 = vmatpush1.bf16.msra.mxu0 %v1779
    %2077 = vmatprep.subr.bf16.mxu0 %v1784
    %2078 = vmatpush1.bf16.msra.mxu0 %v1783
    %2079 = vmatprep.subr.bf16.mxu0 %v1788
    %2080 = vmatpush1.bf16.msra.mxu0 %v1787
    %2081 = vmatprep.subr.bf16.mxu0 %v1792
    %2082 = vmatpush1.bf16.msra.mxu0 %v1791
    %2083 = vmatprep.subr.bf16.mxu0 %v1796
    %2084 = vmatpush1.bf16.msra.mxu0 %v1795
    %2085 = vmatprep.subr.bf16.mxu0 %v1800
    %2086 = vmatpush1.bf16.msra.mxu0 %v1799
    %2087 = vmatprep.subr.bf16.mxu0 %v1804
    %2088 = vmatpush1.bf16.msra.mxu0 %v1803
    %2089 = vmatprep.subr.bf16.mxu0 %v1808
    %2090 = vmatpush1.bf16.msra.mxu0 %v1807
    %2091 = vmatprep.subr.bf16.mxu0 %v1812
    %2092 = vmatpush1.bf16.msra.mxu0 %v1811
    %2093 = vmatprep.mubr.bf16.mxu0 %v1426
    %2094 = vmatmul.mubr.bf16.gmra.mrb[0].mxu0 %v1425
    %v2095 = vpop.f32.mrb[0].mxu0
    %v2096 = vadd.f32 %v1444, %v2095
    %v2097 = vpop.f32.mrb[0].mxu0
    %v2098 = vadd.f32 %v1448, %v2097
    %v2099 = vpop.f32.mrb[0].mxu0
    %v2100 = vadd.f32 %v1444, %v2099
    %v2101 = vpop.f32.mrb[0].mxu0
    %v2102 = vadd.f32 %v1448, %v2101
    %2103 = vmatprep.mubr.bf16.mxu0 %v1430
    %2104 = vmatmul.mubr.bf16.gmra.mrb[0].mxu0 %v1429
    %v2105 = vpop.f32.mrb[0].mxu0
    %v2106 = vadd.f32 %v1444, %v2105
    %v2107 = vpop.f32.mrb[0].mxu0
    %v2108 = vadd.f32 %v1448, %v2107
    %v2109 = vpop.f32.mrb[0].mxu0
    %v2110 = vadd.f32 %v1444, %v2109
    %v2111 = vpop.f32.mrb[0].mxu0
    %v2112 = vadd.f32 %v1448, %v2111
    %2113 = vdwg.mxu0
    %2114 = vmatprep.subr.bf16.mxu0 %v1816
    %2115 = vmatpush1.bf16.msra.mxu0 %v1815
    %2116 = vmatprep.subr.bf16.mxu0 %v1820
    %2117 = vmatpush1.bf16.msra.mxu0 %v1819
    %2118 = vmatprep.subr.bf16.mxu0 %v1824
    %2119 = vmatpush1.bf16.msra.mxu0 %v1823
    %2120 = vmatprep.subr.bf16.mxu0 %v1828
    %2121 = vmatpush1.bf16.msra.mxu0 %v1827
    %2122 = vmatprep.subr.bf16.mxu0 %v1832
    %2123 = vmatpush1.bf16.msra.mxu0 %v1831
    %2124 = vmatprep.subr.bf16.mxu0 %v1836
    %2125 = vmatpush1.bf16.msra.mxu0 %v1835
    %2126 = vmatprep.subr.bf16.mxu0 %v1840
    %2127 = vmatpush1.bf16.msra.mxu0 %v1839
    %2128 = vmatprep.subr.bf16.mxu0 %v1844
    %2129 = vmatpush1.bf16.msra.mxu0 %v1843
    %2130 = vmatprep.subr.bf16.mxu0 %v1848
    %2131 = vmatpush1.bf16.msra.mxu0 %v1847
    %2132 = vmatprep.subr.bf16.mxu0 0
    %2133 = vmatpush1.bf16.msra.mxu0 0
    %2134 = vmatprep.subr.bf16.mxu0 0
    %2135 = vmatpush1.bf16.msra.mxu0 0
    %2136 = vmatprep.subr.bf16.mxu0 0
    %2137 = vmatpush1.bf16.msra.mxu0 0
    %2138 = vmatprep.subr.bf16.mxu0 0
    %2139 = vmatpush1.bf16.msra.mxu0 0
    %2140 = vmatprep.subr.bf16.mxu0 0
    %2141 = vmatpush1.bf16.msra.mxu0 0
    %2142 = vmatprep.subr.bf16.mxu0 0
    %2143 = vmatpush1.bf16.msra.mxu0 0
    %2144 = vmatprep.subr.bf16.mxu0 0
    %2145 = vmatpush1.bf16.msra.mxu0 0
    %2146 = vmatprep.mubr.bf16.mxu0 %v1950
    %2147 = vmatmul.mubr.bf16.gmra.mrb[0].mxu0 %v1427
    %v2148 = vpop.f32.mrb[0].mxu0
    %v2149 = vadd.f32 %v2096, %v2148
    %v2150 = vpop.f32.mrb[0].mxu0
    %v2151 = vadd.f32 %v2098, %v2150
    %v2152 = vpop.f32.mrb[0].mxu0
    %v2153 = vadd.f32 %v2100, %v2152
    %v2154 = vpop.f32.mrb[0].mxu0
    %v2155 = vadd.f32 %v2102, %v2154
    %2156 = vmatprep.mubr.bf16.mxu0 %v1953
    %2157 = vmatmul.mubr.bf16.gmra.mrb[0].mxu0 %v1431
    %v2158 = vpop.f32.mrb[0].mxu0
    %v2159 = vadd.f32 %v2106, %v2158
    %v2160 = vpop.f32.mrb[0].mxu0
    %v2161 = vadd.f32 %v2108, %v2160
    %v2162 = vpop.f32.mrb[0].mxu0
    %v2163 = vadd.f32 %v2110, %v2162
    %v2164 = vpop.f32.mrb[0].mxu0
    %v2165 = vadd.f32 %v2112, %v2164
    %2166 = vdwg.mxu0
    %v2167 = vmax.f32 %v2043, 0.0
    %v2168 = vmax.f32 %v2045, 0.0
    %v2169 = vmax.f32 %v2149, 0.0
    %v2170 = vmax.f32 %v2151, 0.0
    %v2171 = vmax.f32 %v2047, 0.0
    %v2172 = vmax.f32 %v2049, 0.0
    %v2173 = vmax.f32 %v2153, 0.0
    %v2174 = vmax.f32 %v2155, 0.0
    %v2175 = vmax.f32 %v2053, 0.0
    %v2176 = vmax.f32 %v2055, 0.0
    %v2177 = vmax.f32 %v2159, 0.0
    %v2178 = vmax.f32 %v2161, 0.0
    %v2179 = vmax.f32 %v2057, 0.0
    %v2180 = vmax.f32 %v2059, 0.0
    %v2181 = vmax.f32 %v2163, 0.0
    %v2182 = vmax.f32 %v2165, 0.0
    %v2183 = vpack.c.bf16 %v2171, %v2167
    %v2184 = vpack.c.bf16 %v2172, %v2168
    %v2185 = vpack.c.bf16 %v2173, %v2169
    %v2186 = vpack.c.bf16 %v2174, %v2170
    %v2187 = vpack.c.bf16 %v2179, %v2175
    %v2188 = vpack.c.bf16 %v2180, %v2176
    %v2189 = vpack.c.bf16 %v2181, %v2177
    %v2190 = vpack.c.bf16 %v2182, %v2178
    %v2191 = vlaneseq
    %v2192 = vshrl.u32 %v2191, 7
    %v2193 = vsub.s32 1, %v2192
    %v2194 = vrot.slane %v187, %v2193
    %v2245 = vunpack.c.l.b16 %v133
    %v2246 = vunpack.c.l.b16 %v134
    %v2247 = vunpack.c.l.b16 %v135
    %v2248 = vunpack.c.l.b16 %v136
    %v2249 = vunpack.c.l.b16 %v137
    %v2250 = vunpack.c.l.b16 %v138
    %v2251 = vunpack.c.l.b16 %v139
    %v2252 = vunpack.c.l.b16 %v140
    %v2253 = vunpack.c.l.b16 %v141
    %v2254 = vunpack.c.l.b16 %v142
    %v2255 = vunpack.c.l.b16 %v143
    %v2256 = vunpack.c.l.b16 %v144
    %v2257 = vunpack.c.l.b16 %v145
    %v2258 = vunpack.c.l.b16 %v146
    %v2259 = vunpack.c.l.b16 %v147
    %v2260 = vunpack.c.l.b16 %v148
    %v2261 = vunpack.c.l.b16 %v149
    %v2262 = vunpack.c.l.b16 %v150
    %v2263 = vunpack.c.l.b16 %v151
    %v2264 = vunpack.c.l.b16 %v152
    %v2265 = vunpack.c.l.b16 %v153
    %v2266 = vunpack.c.l.b16 %v154
    %v2267 = vunpack.c.l.b16 %v155
    %v2268 = vunpack.c.l.b16 %v156
    %v2269 = vunpack.c.l.b16 %v157
    %v2270 = vunpack.c.l.b16 %v158
    %v2271 = vunpack.c.l.b16 %v159
    %v2272 = vunpack.c.l.b16 %v160
    %v2273 = vunpack.c.l.b16 %v161
    %v2274 = vunpack.c.l.b16 %v162
    %v2275 = vunpack.c.l.b16 %v163
    %v2276 = vunpack.c.l.b16 %v164
    %v2277 = vunpack.c.l.b16 %v165
    %v2278 = vunpack.c.l.b16 %v166
    %v2279 = vunpack.c.l.b16 %v167
    %v2280 = vunpack.c.l.b16 %v168
    %v2281 = vunpack.c.l.b16 %v169
    %v2282 = vunpack.c.l.b16 %v170
    %v2283 = vunpack.c.l.b16 %v171
    %v2284 = vunpack.c.l.b16 %v172
    %v2285 = vunpack.c.l.b16 %v173
    %v2286 = vunpack.c.l.b16 %v174
    %v2287 = vunpack.c.l.b16 %v175
    %v2288 = vunpack.c.l.b16 %v176
    %v2289 = vunpack.c.l.b16 %v177
    %v2290 = vunpack.c.l.b16 %v178
    %v2291 = vunpack.c.l.b16 %v179
    %v2292 = vunpack.c.l.b16 %v180
    %v2293 = vunpack.c.l.b16 %v181
    %v2294 = vunpack.c.l.b16 %v182
    %v2295 = vpack.c.b16 %v2246, %v2245
    %v2296 = vpack.c.b16 %v2248, %v2247
    %v2297 = vpack.c.b16 %v2250, %v2249
    %v2298 = vpack.c.b16 %v2252, %v2251
    %v2299 = vpack.c.b16 %v2254, %v2253
    %v2300 = vpack.c.b16 %v2256, %v2255
    %v2301 = vpack.c.b16 %v2258, %v2257
    %v2302 = vpack.c.b16 %v2260, %v2259
    %v2303 = vpack.c.b16 %v2262, %v2261
    %v2304 = vpack.c.b16 %v2264, %v2263
    %v2305 = vpack.c.b16 %v2266, %v2265
    %v2306 = vpack.c.b16 %v2268, %v2267
    %v2307 = vpack.c.b16 %v2270, %v2269
    %v2308 = vpack.c.b16 %v2272, %v2271
    %v2309 = vpack.c.b16 %v2274, %v2273
    %v2310 = vpack.c.b16 %v2276, %v2275
    %v2311 = vpack.c.b16 %v2278, %v2277
    %v2312 = vpack.c.b16 %v2280, %v2279
    %v2313 = vpack.c.b16 %v2282, %v2281
    %v2314 = vpack.c.b16 %v2284, %v2283
    %v2315 = vpack.c.b16 %v2286, %v2285
    %v2316 = vpack.c.b16 %v2288, %v2287
    %v2317 = vpack.c.b16 %v2290, %v2289
    %v2318 = vpack.c.b16 %v2292, %v2291
    %v2319 = vpack.c.b16 %v2294, %v2293
    %v2346 = vsel %vm1089, %v2186, 0
    %v2349 = vsel %vm1089, %v2190, 0
    %2351 = vmatprep.subr.bf16.mxu0 0
    %2352 = vmatpush1.bf16.msra.mxu0 %v2295
    %2353 = vmatprep.subr.bf16.mxu0 0
    %2354 = vmatpush1.bf16.msra.mxu0 %v2296
    %2355 = vmatprep.subr.bf16.mxu0 0
    %2356 = vmatpush1.bf16.msra.mxu0 %v2297
    %2357 = vmatprep.subr.bf16.mxu0 0
    %2358 = vmatpush1.bf16.msra.mxu0 %v2298
    %2359 = vmatprep.subr.bf16.mxu0 0
    %2360 = vmatpush1.bf16.msra.mxu0 %v2299
    %2361 = vmatprep.subr.bf16.mxu0 0
    %2362 = vmatpush1.bf16.msra.mxu0 %v2300
    %2363 = vmatprep.subr.bf16.mxu0 0
    %2364 = vmatpush1.bf16.msra.mxu0 %v2301
    %2365 = vmatprep.subr.bf16.mxu0 0
    %2366 = vmatpush1.bf16.msra.mxu0 %v2302
    %2367 = vmatprep.subr.bf16.mxu0 0
    %2368 = vmatpush1.bf16.msra.mxu0 %v2303
    %2369 = vmatprep.subr.bf16.mxu0 0
    %2370 = vmatpush1.bf16.msra.mxu0 %v2304
    %2371 = vmatprep.subr.bf16.mxu0 0
    %2372 = vmatpush1.bf16.msra.mxu0 %v2305
    %2373 = vmatprep.subr.bf16.mxu0 0
    %2374 = vmatpush1.bf16.msra.mxu0 %v2306
    %2375 = vmatprep.subr.bf16.mxu0 0
    %2376 = vmatpush1.bf16.msra.mxu0 %v2307
    %2377 = vmatprep.subr.bf16.mxu0 0
    %2378 = vmatpush1.bf16.msra.mxu0 %v2308
    %2379 = vmatprep.subr.bf16.mxu0 0
    %2380 = vmatpush1.bf16.msra.mxu0 %v2309
    %2381 = vmatprep.subr.bf16.mxu0 0
    %2382 = vmatpush1.bf16.msra.mxu0 %v2310
    %2383 = vmatprep.mubr.bf16.mxu0 %v2184
    %2384 = vmatmul.mubr.bf16.gmra.mrb[0].mxu0 %v2183
    %v2385 = vpop.f32.mrb[0].mxu0
    %v2386 = vadd.f32 %v2194, %v2385
    %v2387 = vpop.f32.mrb[0].mxu0
    %v2388 = vpop.f32.mrb[0].mxu0
    %v2389 = vadd.f32 %v2194, %v2388
    %v2390 = vpop.f32.mrb[0].mxu0
    %2391 = vmatprep.mubr.bf16.mxu0 %v2188
    %2392 = vmatmul.mubr.bf16.gmra.mrb[0].mxu0 %v2187
    %v2393 = vpop.f32.mrb[0].mxu0
    %v2394 = vadd.f32 %v2194, %v2393
    %v2395 = vpop.f32.mrb[0].mxu0
    %v2396 = vpop.f32.mrb[0].mxu0
    %v2397 = vadd.f32 %v2194, %v2396
    %v2398 = vpop.f32.mrb[0].mxu0
    %2399 = vdwg.mxu0
    %2400 = vmatprep.subr.bf16.mxu0 0
    %2401 = vmatpush1.bf16.msra.mxu0 %v2311
    %2402 = vmatprep.subr.bf16.mxu0 0
    %2403 = vmatpush1.bf16.msra.mxu0 %v2312
    %2404 = vmatprep.subr.bf16.mxu0 0
    %2405 = vmatpush1.bf16.msra.mxu0 %v2313
    %2406 = vmatprep.subr.bf16.mxu0 0
    %2407 = vmatpush1.bf16.msra.mxu0 %v2314
    %2408 = vmatprep.subr.bf16.mxu0 0
    %2409 = vmatpush1.bf16.msra.mxu0 %v2315
    %2410 = vmatprep.subr.bf16.mxu0 0
    %2411 = vmatpush1.bf16.msra.mxu0 %v2316
    %2412 = vmatprep.subr.bf16.mxu0 0
    %2413 = vmatpush1.bf16.msra.mxu0 %v2317
    %2414 = vmatprep.subr.bf16.mxu0 0
    %2415 = vmatpush1.bf16.msra.mxu0 %v2318
    %2416 = vmatprep.subr.bf16.mxu0 0
    %2417 = vmatpush1.bf16.msra.mxu0 %v2319
    %2418 = vmatprep.subr.bf16.mxu0 0
    %2419 = vmatpush1.bf16.msra.mxu0 0
    %2420 = vmatprep.subr.bf16.mxu0 0
    %2421 = vmatpush1.bf16.msra.mxu0 0
    %2422 = vmatprep.subr.bf16.mxu0 0
    %2423 = vmatpush1.bf16.msra.mxu0 0
    %2424 = vmatprep.subr.bf16.mxu0 0
    %2425 = vmatpush1.bf16.msra.mxu0 0
    %2426 = vmatprep.subr.bf16.mxu0 0
    %2427 = vmatpush1.bf16.msra.mxu0 0
    %2428 = vmatprep.subr.bf16.mxu0 0
    %2429 = vmatpush1.bf16.msra.mxu0 0
    %2430 = vmatprep.subr.bf16.mxu0 0
    %2431 = vmatpush1.bf16.msra.mxu0 0
    %2432 = vmatprep.mubr.bf16.mxu0 %v2346
    %2433 = vmatmul.mubr.bf16.gmra.mrb[0].mxu0 %v2185
    %v2434 = vpop.f32.mrb[0].mxu0
    %v2435 = vadd.f32 %v2386, %v2434
    %v2436 = vpop.f32.mrb[0].mxu0
    %v2437 = vpop.f32.mrb[0].mxu0
    %v2438 = vadd.f32 %v2389, %v2437
    %v2439 = vpop.f32.mrb[0].mxu0
    %2440 = vmatprep.mubr.bf16.mxu0 %v2349
    %2441 = vmatmul.mubr.bf16.gmra.mrb[0].mxu0 %v2189
    %v2442 = vpop.f32.mrb[0].mxu0
    %v2443 = vadd.f32 %v2394, %v2442
    %v2444 = vpop.f32.mrb[0].mxu0
    %v2445 = vpop.f32.mrb[0].mxu0
    %v2446 = vadd.f32 %v2397, %v2445
    %v2447 = vpop.f32.mrb[0].mxu0
    %2448 = vdwg.mxu0
    %v2449 = vmax.f32 %v2435, -20.0
    %v2450 = vmax.f32 %v2438, -20.0
    %v2451 = vmax.f32 %v2443, -20.0
    %v2452 = vmax.f32 %v2446, -20.0
    %v2453 = vmin.f32 %v2449, 2.0
    %v2454 = vmin.f32 %v2450, 2.0
    %v2455 = vmin.f32 %v2451, 2.0
    %v2456 = vmin.f32 %v2452, 2.0
    %v2457 = vmul.f32 %v2453, 1.442695
    %v2458 = vpow.pop %v2457
    %v2459 = vmul.f32 %v2454, 1.442695
    %v2460 = vpow.pop %v2459
    %v2461 = vmul.f32 %v2455, 1.442695
    %v2462 = vpow.pop %v2461
    %v2463 = vmul.f32 %v2456, 1.442695
    %v2464 = vpow.pop %v2463
    %2469 = vrot.lane.b32.xlu0 %v124, 100
    %v2470 = vpop.permute.xlu0 %2469
    %2471 = vrot.lane.b32.xlu0 %v125, 100
    %v2472 = vpop.permute.xlu0 %2471
    %2473 = vrot.lane.b32.xlu0 %v126, 100
    %v2474 = vpop.permute.xlu0 %2473
    %2475 = vrot.lane.b32.xlu0 %v127, 100
    %v2476 = vpop.permute.xlu0 %2475
    %v2481 = vmul.f32 %v2458, %v2470
    %v2482 = vmul.f32 %v2460, %v2472
    %v2483 = vmul.f32 %v2462, %v2474
    %v2484 = vmul.f32 %v2464, %v2476
    %2489 = vrot.lane.b32.xlu0 %v2481, 124
    %v2490 = vpop.permute.xlu0 %2489
    %2491 = vrot.lane.b32.xlu0 %v2482, 124
    %v2492 = vpop.permute.xlu0 %2491
    %2493 = vrot.lane.b32.xlu0 %v2483, 124
    %v2494 = vpop.permute.xlu0 %2493
    %2495 = vrot.lane.b32.xlu0 %v2484, 124
    %v2496 = vpop.permute.xlu0 %2495
    %v2501 = vadd.f32 %v2435, %v2490
    %v2502 = vadd.f32 %v2438, %v2492
    %v2503 = vadd.f32 %v2443, %v2494
    %v2504 = vadd.f32 %v2446, %v2496
    %v2505 = vtanh.pop %v2501
    %v2506 = vtanh.pop %v2502
    %v2507 = vtanh.pop %v2503
    %v2508 = vtanh.pop %v2504
    %v2509 = vmul.f32 %v124, -0.5
    %v2510 = vmul.f32 %v125, -0.5
    %v2511 = vmul.f32 %v126, -0.5
    %v2512 = vmul.f32 %v127, -0.5
    %v2513 = vmul.f32 %v2509, %v124
    %v2514 = vmul.f32 %v2510, %v125
    %v2515 = vmul.f32 %v2511, %v126
    %v2516 = vmul.f32 %v2512, %v127
    %2521 = vrot.lane.b32.xlu0 %v2453, 28
    %v2522 = vpop.permute.xlu0 %2521
    %2523 = vrot.lane.b32.xlu0 %v2454, 28
    %v2524 = vpop.permute.xlu0 %2523
    %2525 = vrot.lane.b32.xlu0 %v2455, 28
    %v2526 = vpop.permute.xlu0 %2525
    %2527 = vrot.lane.b32.xlu0 %v2456, 28
    %v2528 = vpop.permute.xlu0 %2527
    %v2533 = vsub.f32 %v2513, %v2522
    %v2534 = vsub.f32 %v2514, %v2524
    %v2535 = vsub.f32 %v2515, %v2526
    %v2536 = vsub.f32 %v2516, %v2528
    %v2537 = vsub.f32 %v2533, 0.9189385
    %v2538 = vsub.f32 %v2534, 0.9189385
    %v2539 = vsub.f32 %v2535, 0.9189385
    %v2540 = vsub.f32 %v2536, 0.9189385
    %v2541 = vmul.f32 %v2505, %v2505
    %v2542 = vmul.f32 %v2506, %v2506
    %v2543 = vmul.f32 %v2507, %v2507
    %v2544 = vmul.f32 %v2508, %v2508
    %v2545 = vsub.f32 1.0, %v2541
    %v2546 = vsub.f32 1.0, %v2542
    %v2547 = vsub.f32 1.0, %v2543
    %v2548 = vsub.f32 1.0, %v2544
    %v2549 = vadd.f32 %v2545, 1e-06
    %v2550 = vadd.f32 %v2546, 1e-06
    %v2551 = vadd.f32 %v2547, 1e-06
    %v2552 = vadd.f32 %v2548, 1e-06
    %v2553 = vlog2.pop %v2549
    %v2554 = vmul.f32 %v2553, 0.6931472
    %v2555 = vlog2.pop %v2550
    %v2556 = vmul.f32 %v2555, 0.6931472
    %v2557 = vlog2.pop %v2551
    %v2558 = vmul.f32 %v2557, 0.6931472
    %v2559 = vlog2.pop %v2552
    %v2560 = vmul.f32 %v2559, 0.6931472
    %2565 = vrot.lane.b32.xlu0 %v2554, 32
    %v2566 = vpop.permute.xlu0 %2565
    %2567 = vrot.lane.b32.xlu0 %v2556, 32
    %v2568 = vpop.permute.xlu0 %2567
    %2569 = vrot.lane.b32.xlu0 %v2558, 32
    %v2570 = vpop.permute.xlu0 %2569
    %2571 = vrot.lane.b32.xlu0 %v2560, 32
    %v2572 = vpop.permute.xlu0 %2571
    %v2577 = vsub.f32 %v2537, %v2566
    %v2578 = vsub.f32 %v2538, %v2568
    %v2579 = vsub.f32 %v2539, %v2570
    %v2580 = vsub.f32 %v2540, %v2572
    %2585 = vrot.lane.b32.xlu0 %v2577, 96
    %v2586 = vpop.permute.xlu0 %2585
    %2587 = vrot.lane.b32.xlu0 %v2578, 96
    %v2588 = vpop.permute.xlu0 %2587
    %2589 = vrot.lane.b32.xlu0 %v2579, 96
    %v2590 = vpop.permute.xlu0 %2589
    %2591 = vrot.lane.b32.xlu0 %v2580, 96
    %v2592 = vpop.permute.xlu0 %2591
    %vm2597 = vcmask 31744
    %v2598 = vsel %vm2597, %v2586, 0.0
    %2599 = vadd.xlane.f32.xlu0 %v2598
    %v2600 = vpop.xlane.xlu0 %2599
    %v2601 = vsel %vm2597, %v2588, 0.0
    %2602 = vadd.xlane.f32.xlu0 %v2601
    %v2603 = vpop.xlane.xlu0 %2602
    %v2604 = vsel %vm2597, %v2590, 0.0
    %2605 = vadd.xlane.f32.xlu0 %v2604
    %v2606 = vpop.xlane.xlu0 %2605
    %v2607 = vsel %vm2597, %v2592, 0.0
    %2608 = vadd.xlane.f32.xlu0 %v2607
    %v2609 = vpop.xlane.xlu0 %2608
    %2610 = vmatprep.subr.bf16.mxu0 0
    %2611 = vmatpush1.bf16.msra.mxu0 %v207
    %2612 = vmatprep.subr.bf16.mxu0 0
    %2613 = vmatpush1.bf16.msra.mxu0 %v208
    %2614 = vmatprep.subr.bf16.mxu0 0
    %2615 = vmatpush1.bf16.msra.mxu0 0
    %2616 = vmatprep.subr.bf16.mxu0 0
    %2617 = vmatpush1.bf16.msra.mxu0 0
    %2618 = vmatprep.subr.bf16.mxu0 0
    %2619 = vmatpush1.bf16.msra.mxu0 0
    %2620 = vmatprep.subr.bf16.mxu0 0
    %2621 = vmatpush1.bf16.msra.mxu0 0
    %2622 = vmatprep.subr.bf16.mxu0 0
    %2623 = vmatpush1.bf16.msra.mxu0 0
    %2624 = vmatprep.subr.bf16.mxu0 0
    %2625 = vmatpush1.bf16.msra.mxu0 0
    %2626 = vmatprep.subr.bf16.mxu0 0
    %2627 = vmatpush1.bf16.msra.mxu0 0
    %2628 = vmatprep.subr.bf16.mxu0 0
    %2629 = vmatpush1.bf16.msra.mxu0 0
    %2630 = vmatprep.subr.bf16.mxu0 0
    %2631 = vmatpush1.bf16.msra.mxu0 0
    %2632 = vmatprep.subr.bf16.mxu0 0
    %2633 = vmatpush1.bf16.msra.mxu0 0
    %2634 = vmatprep.subr.bf16.mxu0 0
    %2635 = vmatpush1.bf16.msra.mxu0 0
    %2636 = vmatprep.subr.bf16.mxu0 0
    %2637 = vmatpush1.bf16.msra.mxu0 0
    %2638 = vmatprep.subr.bf16.mxu0 0
    %2639 = vmatpush1.bf16.msra.mxu0 0
    %2640 = vmatprep.subr.bf16.mxu0 0
    %2641 = vmatpush1.bf16.msra.mxu0 0
    %2642 = vmatprep.mubr.bf16.mxu0 0
    %2643 = vmatmul.mubr.bf16.gmra.mrb[0].mxu0 %v338
    %v2644 = vpop.f32.mrb[0].mxu0
    %v2645 = vadd.f32 %v197, %v2644
    %v2646 = vpop.f32.mrb[0].mxu0
    %v2647 = vpop.f32.mrb[0].mxu0
    %v2648 = vadd.f32 %v197, %v2647
    %v2649 = vpop.f32.mrb[0].mxu0
    %2650 = vmatprep.mubr.bf16.mxu0 0
    %2651 = vmatmul.mubr.bf16.gmra.mrb[0].mxu0 %v341
    %v2652 = vpop.f32.mrb[0].mxu0
    %v2653 = vadd.f32 %v197, %v2652
    %v2654 = vpop.f32.mrb[0].mxu0
    %v2655 = vpop.f32.mrb[0].mxu0
    %v2656 = vadd.f32 %v197, %v2655
    %v2657 = vpop.f32.mrb[0].mxu0
    %2658 = vdwg.mxu0
    %v2659 = vmax.f32 %v2645, 0.0
    %v2660 = vmax.f32 %v2648, 0.0
    %v2661 = vmax.f32 %v2653, 0.0
    %v2662 = vmax.f32 %v2656, 0.0
    %2667 = vrot.lane.b32.xlu0 %v2505, 32
    %v2668 = vpop.permute.xlu0 %2667
    %2669 = vrot.lane.b32.xlu0 %v2506, 32
    %v2670 = vpop.permute.xlu0 %2669
    %2671 = vrot.lane.b32.xlu0 %v2507, 32
    %v2672 = vpop.permute.xlu0 %2671
    %2673 = vrot.lane.b32.xlu0 %v2508, 32
    %v2674 = vpop.permute.xlu0 %2673
    %v2679 = vsel %vm211, %v2659, %v2668
    %v2680 = vsel %vm211, %v2660, %v2670
    %v2681 = vsel %vm211, %v2661, %v2672
    %v2682 = vsel %vm211, %v2662, %v2674
    %v2683 = vld [vmem:[#allocation10] sm:$0xff]
    %v2684 = vld [vmem:[#allocation10 + $0x8] sm:$0xff]
    %v2685 = vld [vmem:[#allocation10 + $0x10] sm:$0xff]
    %v2686 = vld [vmem:[#allocation10 + $0x18] sm:$0xf]
    %v2687 = vld [vmem:[#allocation10 + $0x1c] sm:$0xff]
    %v2688 = vld [vmem:[#allocation10 + $0x24] sm:$0xff]
    %v2689 = vld [vmem:[#allocation10 + $0x2c] sm:$0xff]
    %v2690 = vld [vmem:[#allocation10 + $0x34] sm:$0xf]
    %v2691 = vld [vmem:[#allocation10 + $0x38] sm:$0xff]
    %v2692 = vld [vmem:[#allocation10 + $0x40] sm:$0xff]
    %v2693 = vld [vmem:[#allocation10 + $0x48] sm:$0xff]
    %v2694 = vld [vmem:[#allocation10 + $0x50] sm:$0xf]
    %v2695 = vld [vmem:[#allocation10 + $0x54] sm:$0xff]
    %v2696 = vld [vmem:[#allocation10 + $0x5c] sm:$0xff]
    %v2697 = vld [vmem:[#allocation10 + $0x64] sm:$0xff]
    %v2698 = vld [vmem:[#allocation10 + $0x6c] sm:$0xf]
    %v2699 = vld [vmem:[#allocation10 + $0x70] sm:$0x33]
    %v2700 = vld [vmem:[#allocation10 + $0x78] sm:$0x33]
    %v2701 = vld [vmem:[#allocation10 + $0x80] sm:$0x33]
    %v2702 = vld [vmem:[#allocation10 + $0x88] sm:$0x3]
    %v2703 = vpack.c.bf16 %v2680, %v2679
    %v2704 = vpack.c.bf16 %v2682, %v2681
    %v2725 = vunpack.c.l.b16 %v2683
    %v2726 = vunpack.c.h.b16 %v2683
    %v2727 = vunpack.c.l.b16 %v2684
    %v2728 = vunpack.c.h.b16 %v2684
    %v2729 = vunpack.c.l.b16 %v2685
    %v2730 = vunpack.c.h.b16 %v2685
    %v2731 = vunpack.c.l.b16 %v2686
    %v2732 = vunpack.c.l.b16 %v2687
    %v2733 = vunpack.c.h.b16 %v2687
    %v2734 = vunpack.c.l.b16 %v2688
    %v2735 = vunpack.c.h.b16 %v2688
    %v2736 = vunpack.c.l.b16 %v2689
    %v2737 = vunpack.c.h.b16 %v2689
    %v2738 = vunpack.c.l.b16 %v2690
    %v2739 = vunpack.c.l.b16 %v2691
    %v2740 = vunpack.c.h.b16 %v2691
    %v2741 = vunpack.c.l.b16 %v2692
    %v2742 = vunpack.c.h.b16 %v2692
    %v2743 = vunpack.c.l.b16 %v2693
    %v2744 = vunpack.c.h.b16 %v2693
    %v2745 = vunpack.c.l.b16 %v2694
    %v2746 = vunpack.c.l.b16 %v2695
    %v2747 = vunpack.c.h.b16 %v2695
    %v2748 = vunpack.c.l.b16 %v2696
    %v2749 = vunpack.c.h.b16 %v2696
    %v2750 = vunpack.c.l.b16 %v2697
    %v2751 = vunpack.c.h.b16 %v2697
    %v2752 = vunpack.c.l.b16 %v2698
    %v2753 = vunpack.c.l.b16 %v2699
    %v2754 = vunpack.c.h.b16 %v2699
    %v2755 = vunpack.c.l.b16 %v2700
    %v2756 = vunpack.c.h.b16 %v2700
    %v2757 = vunpack.c.l.b16 %v2701
    %v2758 = vunpack.c.h.b16 %v2701
    %v2759 = vunpack.c.l.b16 %v2702
    %v2760 = vpack.c.b16 %v2732, %v2725
    %v2761 = vpack.c.b16 %v2733, %v2726
    %v2762 = vpack.c.b16 %v2734, %v2727
    %v2763 = vpack.c.b16 %v2735, %v2728
    %v2764 = vpack.c.b16 %v2736, %v2729
    %v2765 = vpack.c.b16 %v2737, %v2730
    %v2766 = vpack.c.b16 %v2738, %v2731
    %v2767 = vpack.c.b16 %v2746, %v2739
    %v2768 = vpack.c.b16 %v2747, %v2740
    %v2769 = vpack.c.b16 %v2748, %v2741
    %v2770 = vpack.c.b16 %v2749, %v2742
    %v2771 = vpack.c.b16 %v2750, %v2743
    %v2772 = vpack.c.b16 %v2751, %v2744
    %v2773 = vpack.c.b16 %v2752, %v2745
    %v2774 = vpack.c.b16 %v2753, %v2753
    %v2775 = vpack.c.b16 %v2754, %v2754
    %v2776 = vpack.c.b16 %v2755, %v2755
    %v2777 = vpack.c.b16 %v2756, %v2756
    %v2778 = vpack.c.b16 %v2757, %v2757
    %v2779 = vpack.c.b16 %v2758, %v2758
    %v2780 = vpack.c.b16 %v2759, %v2759
    %vm2795 = vcmask 293888
    %v2797 = vsel %vm2795, %v2703, 0
    %v2800 = vsel %vm2795, %v2704, 0
    %vm2802 = vcmask 1041408
    %v2804 = vsel %vm2802, %v2774, 0
    %v2807 = vsel %vm2802, %v2775, 0
    %v2810 = vsel %vm2802, %v2776, 0
    %v2813 = vsel %vm2802, %v2777, 0
    %v2816 = vsel %vm2802, %v2778, 0
    %v2819 = vsel %vm2802, %v2779, 0
    %v2822 = vsel %vm2802, %v2780, 0
    %2824 = vmatprep.subr.bf16.mxu0 %v2761
    %2825 = vmatpush1.bf16.msra.mxu0 %v2760
    %2826 = vmatprep.subr.bf16.mxu0 %v2768
    %2827 = vmatpush1.bf16.msra.mxu0 %v2767
    %2828 = vmatprep.subr.bf16.mxu0 %v2807
    %2829 = vmatpush1.bf16.msra.mxu0 %v2804
    %2830 = vmatprep.subr.bf16.mxu0 0
    %2831 = vmatpush1.bf16.msra.mxu0 0
    %2832 = vmatprep.subr.bf16.mxu0 0
    %2833 = vmatpush1.bf16.msra.mxu0 0
    %2834 = vmatprep.subr.bf16.mxu0 0
    %2835 = vmatpush1.bf16.msra.mxu0 0
    %2836 = vmatprep.subr.bf16.mxu0 0
    %2837 = vmatpush1.bf16.msra.mxu0 0
    %2838 = vmatprep.subr.bf16.mxu0 0
    %2839 = vmatpush1.bf16.msra.mxu0 0
    %2840 = vmatprep.subr.bf16.mxu0 0
    %2841 = vmatpush1.bf16.msra.mxu0 0
    %2842 = vmatprep.subr.bf16.mxu0 0
    %2843 = vmatpush1.bf16.msra.mxu0 0
    %2844 = vmatprep.subr.bf16.mxu0 0
    %2845 = vmatpush1.bf16.msra.mxu0 0
    %2846 = vmatprep.subr.bf16.mxu0 0
    %2847 = vmatpush1.bf16.msra.mxu0 0
    %2848 = vmatprep.subr.bf16.mxu0 0
    %2849 = vmatpush1.bf16.msra.mxu0 0
    %2850 = vmatprep.subr.bf16.mxu0 0
    %2851 = vmatpush1.bf16.msra.mxu0 0
    %2852 = vmatprep.subr.bf16.mxu0 0
    %2853 = vmatpush1.bf16.msra.mxu0 0
    %2854 = vmatprep.subr.bf16.mxu0 0
    %2855 = vmatpush1.bf16.msra.mxu0 0
    %2856 = vmatprep.mubr.bf16.mxu0 0
    %2857 = vmatmul.mubr.bf16.gmra.mrb[0].mxu0 %v2797
    %v2858 = vpop.f32.mrb[0].mxu0
    %v2859 = vadd.f32 0.0, %v2858
    %v2860 = vpop.f32.mrb[0].mxu0
    %v2861 = vadd.f32 0.0, %v2860
    %v2862 = vpop.f32.mrb[0].mxu0
    %v2863 = vadd.f32 0.0, %v2862
    %v2864 = vpop.f32.mrb[0].mxu0
    %v2865 = vadd.f32 0.0, %v2864
    %2866 = vmatprep.mubr.bf16.mxu0 0
    %2867 = vmatmul.mubr.bf16.gmra.mrb[0].mxu0 %v2800
    %v2868 = vpop.f32.mrb[0].mxu0
    %v2869 = vadd.f32 0.0, %v2868
    %v2870 = vpop.f32.mrb[0].mxu0
    %v2871 = vadd.f32 0.0, %v2870
    %v2872 = vpop.f32.mrb[0].mxu0
    %v2873 = vadd.f32 0.0, %v2872
    %v2874 = vpop.f32.mrb[0].mxu0
    %v2875 = vadd.f32 0.0, %v2874
    %2876 = vdwg.mxu0
    %2877 = vmatprep.subr.bf16.mxu0 %v2763
    %2878 = vmatpush1.bf16.msra.mxu0 %v2762
    %2879 = vmatprep.subr.bf16.mxu0 %v2770
    %2880 = vmatpush1.bf16.msra.mxu0 %v2769
    %2881 = vmatprep.subr.bf16.mxu0 %v2813
    %2882 = vmatpush1.bf16.msra.mxu0 %v2810
    %2883 = vmatprep.subr.bf16.mxu0 0
    %2884 = vmatpush1.bf16.msra.mxu0 0
    %2885 = vmatprep.subr.bf16.mxu0 0
    %2886 = vmatpush1.bf16.msra.mxu0 0
    %2887 = vmatprep.subr.bf16.mxu0 0
    %2888 = vmatpush1.bf16.msra.mxu0 0
    %2889 = vmatprep.subr.bf16.mxu0 0
    %2890 = vmatpush1.bf16.msra.mxu0 0
    %2891 = vmatprep.subr.bf16.mxu0 0
    %2892 = vmatpush1.bf16.msra.mxu0 0
    %2893 = vmatprep.subr.bf16.mxu0 0
    %2894 = vmatpush1.bf16.msra.mxu0 0
    %2895 = vmatprep.subr.bf16.mxu0 0
    %2896 = vmatpush1.bf16.msra.mxu0 0
    %2897 = vmatprep.subr.bf16.mxu0 0
    %2898 = vmatpush1.bf16.msra.mxu0 0
    %2899 = vmatprep.subr.bf16.mxu0 0
    %2900 = vmatpush1.bf16.msra.mxu0 0
    %2901 = vmatprep.subr.bf16.mxu0 0
    %2902 = vmatpush1.bf16.msra.mxu0 0
    %2903 = vmatprep.subr.bf16.mxu0 0
    %2904 = vmatpush1.bf16.msra.mxu0 0
    %2905 = vmatprep.subr.bf16.mxu0 0
    %2906 = vmatpush1.bf16.msra.mxu0 0
    %2907 = vmatprep.subr.bf16.mxu0 0
    %2908 = vmatpush1.bf16.msra.mxu0 0
    %2909 = vmatprep.mubr.bf16.mxu0 0
    %2910 = vmatmul.mubr.bf16.gmra.mrb[0].mxu0 %v2797
    %v2911 = vpop.f32.mrb[0].mxu0
    %v2912 = vadd.f32 0.0, %v2911
    %v2913 = vpop.f32.mrb[0].mxu0
    %v2914 = vadd.f32 0.0, %v2913
    %v2915 = vpop.f32.mrb[0].mxu0
    %v2916 = vadd.f32 0.0, %v2915
    %v2917 = vpop.f32.mrb[0].mxu0
    %v2918 = vadd.f32 0.0, %v2917
    %2919 = vmatprep.mubr.bf16.mxu0 0
    %2920 = vmatmul.mubr.bf16.gmra.mrb[0].mxu0 %v2800
    %v2921 = vpop.f32.mrb[0].mxu0
    %v2922 = vadd.f32 0.0, %v2921
    %v2923 = vpop.f32.mrb[0].mxu0
    %v2924 = vadd.f32 0.0, %v2923
    %v2925 = vpop.f32.mrb[0].mxu0
    %v2926 = vadd.f32 0.0, %v2925
    %v2927 = vpop.f32.mrb[0].mxu0
    %v2928 = vadd.f32 0.0, %v2927
    %2929 = vdwg.mxu0
    %2930 = vmatprep.subr.bf16.mxu0 %v2765
    %2931 = vmatpush1.bf16.msra.mxu0 %v2764
    %2932 = vmatprep.subr.bf16.mxu0 %v2772
    %2933 = vmatpush1.bf16.msra.mxu0 %v2771
    %2934 = vmatprep.subr.bf16.mxu0 %v2819
    %2935 = vmatpush1.bf16.msra.mxu0 %v2816
    %2936 = vmatprep.subr.bf16.mxu0 0
    %2937 = vmatpush1.bf16.msra.mxu0 0
    %2938 = vmatprep.subr.bf16.mxu0 0
    %2939 = vmatpush1.bf16.msra.mxu0 0
    %2940 = vmatprep.subr.bf16.mxu0 0
    %2941 = vmatpush1.bf16.msra.mxu0 0
    %2942 = vmatprep.subr.bf16.mxu0 0
    %2943 = vmatpush1.bf16.msra.mxu0 0
    %2944 = vmatprep.subr.bf16.mxu0 0
    %2945 = vmatpush1.bf16.msra.mxu0 0
    %2946 = vmatprep.subr.bf16.mxu0 0
    %2947 = vmatpush1.bf16.msra.mxu0 0
    %2948 = vmatprep.subr.bf16.mxu0 0
    %2949 = vmatpush1.bf16.msra.mxu0 0
    %2950 = vmatprep.subr.bf16.mxu0 0
    %2951 = vmatpush1.bf16.msra.mxu0 0
    %2952 = vmatprep.subr.bf16.mxu0 0
    %2953 = vmatpush1.bf16.msra.mxu0 0
    %2954 = vmatprep.subr.bf16.mxu0 0
    %2955 = vmatpush1.bf16.msra.mxu0 0
    %2956 = vmatprep.subr.bf16.mxu0 0
    %2957 = vmatpush1.bf16.msra.mxu0 0
    %2958 = vmatprep.subr.bf16.mxu0 0
    %2959 = vmatpush1.bf16.msra.mxu0 0
    %2960 = vmatprep.subr.bf16.mxu0 0
    %2961 = vmatpush1.bf16.msra.mxu0 0
    %2962 = vmatprep.mubr.bf16.mxu0 0
    %2963 = vmatmul.mubr.bf16.gmra.mrb[0].mxu0 %v2797
    %v2964 = vpop.f32.mrb[0].mxu0
    %v2965 = vadd.f32 0.0, %v2964
    %v2966 = vpop.f32.mrb[0].mxu0
    %v2967 = vadd.f32 0.0, %v2966
    %v2968 = vpop.f32.mrb[0].mxu0
    %v2969 = vadd.f32 0.0, %v2968
    %v2970 = vpop.f32.mrb[0].mxu0
    %v2971 = vadd.f32 0.0, %v2970
    %2972 = vmatprep.mubr.bf16.mxu0 0
    %2973 = vmatmul.mubr.bf16.gmra.mrb[0].mxu0 %v2800
    %v2974 = vpop.f32.mrb[0].mxu0
    %v2975 = vadd.f32 0.0, %v2974
    %v2976 = vpop.f32.mrb[0].mxu0
    %v2977 = vadd.f32 0.0, %v2976
    %v2978 = vpop.f32.mrb[0].mxu0
    %v2979 = vadd.f32 0.0, %v2978
    %v2980 = vpop.f32.mrb[0].mxu0
    %v2981 = vadd.f32 0.0, %v2980
    %2982 = vdwg.mxu0
    %2983 = vmatprep.subr.bf16.mxu0 0
    %2984 = vmatpush1.bf16.msra.mxu0 %v2766
    %2985 = vmatprep.subr.bf16.mxu0 0
    %2986 = vmatpush1.bf16.msra.mxu0 %v2773
    %2987 = vmatprep.subr.bf16.mxu0 0
    %2988 = vmatpush1.bf16.msra.mxu0 %v2822
    %2989 = vmatprep.subr.bf16.mxu0 0
    %2990 = vmatpush1.bf16.msra.mxu0 0
    %2991 = vmatprep.subr.bf16.mxu0 0
    %2992 = vmatpush1.bf16.msra.mxu0 0
    %2993 = vmatprep.subr.bf16.mxu0 0
    %2994 = vmatpush1.bf16.msra.mxu0 0
    %2995 = vmatprep.subr.bf16.mxu0 0
    %2996 = vmatpush1.bf16.msra.mxu0 0
    %2997 = vmatprep.subr.bf16.mxu0 0
    %2998 = vmatpush1.bf16.msra.mxu0 0
    %2999 = vmatprep.subr.bf16.mxu0 0
    %3000 = vmatpush1.bf16.msra.mxu0 0
    %3001 = vmatprep.subr.bf16.mxu0 0
    %3002 = vmatpush1.bf16.msra.mxu0 0
    %3003 = vmatprep.subr.bf16.mxu0 0
    %3004 = vmatpush1.bf16.msra.mxu0 0
    %3005 = vmatprep.subr.bf16.mxu0 0
    %3006 = vmatpush1.bf16.msra.mxu0 0
    %3007 = vmatprep.subr.bf16.mxu0 0
    %3008 = vmatpush1.bf16.msra.mxu0 0
    %3009 = vmatprep.subr.bf16.mxu0 0
    %3010 = vmatpush1.bf16.msra.mxu0 0
    %3011 = vmatprep.subr.bf16.mxu0 0
    %3012 = vmatpush1.bf16.msra.mxu0 0
    %3013 = vmatprep.subr.bf16.mxu0 0
    %3014 = vmatpush1.bf16.msra.mxu0 0
    %3015 = vmatprep.mubr.bf16.mxu0 0
    %3016 = vmatmul.mubr.bf16.gmra.mrb[0].mxu0 %v2797
    %v3017 = vpop.f32.mrb[0].mxu0
    %v3018 = vadd.f32 0.0, %v3017
    %v3019 = vpop.f32.mrb[0].mxu0
    %v3020 = vpop.f32.mrb[0].mxu0
    %v3021 = vadd.f32 0.0, %v3020
    %v3022 = vpop.f32.mrb[0].mxu0
    %3023 = vmatprep.mubr.bf16.mxu0 0
    %3024 = vmatmul.mubr.bf16.gmra.mrb[0].mxu0 %v2800
    %v3025 = vpop.f32.mrb[0].mxu0
    %v3026 = vadd.f32 0.0, %v3025
    %v3027 = vpop.f32.mrb[0].mxu0
    %v3028 = vpop.f32.mrb[0].mxu0
    %v3029 = vadd.f32 0.0, %v3028
    %v3030 = vpop.f32.mrb[0].mxu0
    %3031 = vdwg.mxu0
    %v3032 = vlaneseq
    %v3033 = vshrl.u32 %v3032, 7
    %v3034 = vsub.s32 3, %v3033
    %v3035 = vrot.slane %v183, %v3034
    %v3036 = vlaneseq
    %v3037 = vshrl.u32 %v3036, 7
    %v3038 = vsub.s32 3, %v3037
    %v3039 = vrot.slane %v184, %v3038
    %v3040 = vlaneseq
    %v3041 = vshrl.u32 %v3040, 7
    %v3042 = vsub.s32 3, %v3041
    %v3043 = vrot.slane %v185, %v3042
    %v3044 = vlaneseq
    %v3045 = vshrl.u32 %v3044, 7
    %v3046 = vsub.s32 3, %v3045
    %v3047 = vrot.slane %v186, %v3046
    %v3048 = vadd.f32 %v2859, %v3035
    %v3049 = vadd.f32 %v2861, %v3039
    %v3050 = vadd.f32 %v2912, %v3043
    %v3051 = vadd.f32 %v2914, %v3047
    %v3052 = vadd.f32 %v2863, %v3035
    %v3053 = vadd.f32 %v2865, %v3039
    %v3054 = vadd.f32 %v2916, %v3043
    %v3055 = vadd.f32 %v2918, %v3047
    %v3056 = vadd.f32 %v2869, %v3035
    %v3057 = vadd.f32 %v2871, %v3039
    %v3058 = vadd.f32 %v2922, %v3043
    %v3059 = vadd.f32 %v2924, %v3047
    %v3060 = vadd.f32 %v2873, %v3035
    %v3061 = vadd.f32 %v2875, %v3039
    %v3062 = vadd.f32 %v2926, %v3043
    %v3063 = vadd.f32 %v2928, %v3047
    %v3064 = vmax.f32 %v3048, 0.0
    %v3065 = vmax.f32 %v3049, 0.0
    %v3066 = vmax.f32 %v3050, 0.0
    %v3067 = vmax.f32 %v3051, 0.0
    %v3068 = vmax.f32 %v3052, 0.0
    %v3069 = vmax.f32 %v3053, 0.0
    %v3070 = vmax.f32 %v3054, 0.0
    %v3071 = vmax.f32 %v3055, 0.0
    %v3072 = vmax.f32 %v3056, 0.0
    %v3073 = vmax.f32 %v3057, 0.0
    %v3074 = vmax.f32 %v3058, 0.0
    %v3075 = vmax.f32 %v3059, 0.0
    %v3076 = vmax.f32 %v3060, 0.0
    %v3077 = vmax.f32 %v3061, 0.0
    %v3078 = vmax.f32 %v3062, 0.0
    %v3079 = vmax.f32 %v3063, 0.0
    %v3080 = vlaneseq
    %v3081 = vshrl.u32 %v3080, 7
    %v3082 = vsub.s32 6, %v3081
    %v3083 = vrot.slane %v183, %v3082
    %v3084 = vlaneseq
    %v3085 = vshrl.u32 %v3084, 7
    %v3086 = vsub.s32 6, %v3085
    %v3087 = vrot.slane %v184, %v3086
    %v3088 = vlaneseq
    %v3089 = vshrl.u32 %v3088, 7
    %v3090 = vsub.s32 6, %v3089
    %v3091 = vrot.slane %v185, %v3090
    %v3092 = vlaneseq
    %v3093 = vshrl.u32 %v3092, 7
    %v3094 = vsub.s32 6, %v3093
    %v3095 = vrot.slane %v186, %v3094
    %3100 = vrot.lane.b32.xlu0 %v3083, 16
    %v3101 = vpop.permute.xlu0 %3100
    %3102 = vrot.lane.b32.xlu0 %v3087, 16
    %v3103 = vpop.permute.xlu0 %3102
    %3104 = vrot.lane.b32.xlu0 %v3091, 16
    %v3105 = vpop.permute.xlu0 %3104
    %3106 = vrot.lane.b32.xlu0 %v3095, 16
    %v3107 = vpop.permute.xlu0 %3106
    %v3108 = vsel %vm1089, %v3101, %v3103
    %v3109 = vsel %vm1089, %v3103, %v3105
    %v3110 = vsel %vm1089, %v3105, %v3107
    %v3115 = vadd.f32 %v2914, %v3101
    %v3116 = vadd.f32 %v2965, %v3108
    %v3117 = vadd.f32 %v2967, %v3109
    %v3118 = vadd.f32 %v3018, %v3110
    %v3119 = vadd.f32 %v2918, %v3101
    %v3120 = vadd.f32 %v2969, %v3108
    %v3121 = vadd.f32 %v2971, %v3109
    %v3122 = vadd.f32 %v3021, %v3110
    %v3123 = vadd.f32 %v2924, %v3101
    %v3124 = vadd.f32 %v2975, %v3108
    %v3125 = vadd.f32 %v2977, %v3109
    %v3126 = vadd.f32 %v3026, %v3110
    %v3127 = vadd.f32 %v2928, %v3101
    %v3128 = vadd.f32 %v2979, %v3108
    %v3129 = vadd.f32 %v2981, %v3109
    %v3130 = vadd.f32 %v3029, %v3110
    %v3131 = vmax.f32 %v3115, 0.0
    %v3132 = vmax.f32 %v3116, 0.0
    %v3133 = vmax.f32 %v3117, 0.0
    %v3134 = vmax.f32 %v3118, 0.0
    %v3135 = vmax.f32 %v3119, 0.0
    %v3136 = vmax.f32 %v3120, 0.0
    %v3137 = vmax.f32 %v3121, 0.0
    %v3138 = vmax.f32 %v3122, 0.0
    %v3139 = vmax.f32 %v3123, 0.0
    %v3140 = vmax.f32 %v3124, 0.0
    %v3141 = vmax.f32 %v3125, 0.0
    %v3142 = vmax.f32 %v3126, 0.0
    %v3143 = vmax.f32 %v3127, 0.0
    %v3144 = vmax.f32 %v3128, 0.0
    %v3145 = vmax.f32 %v3129, 0.0
    %v3146 = vmax.f32 %v3130, 0.0
    %s3147 = scalar_lea.vmem [#allocation11], 1600
    %v3148 = vld [vmem:[%s3147] sm:$0xff]
    %v3149 = vld [vmem:[%s3147 + $0x8] sm:$0xff]
    %v3150 = vld [vmem:[%s3147 + $0x10] sm:$0xff]
    %v3151 = vld [vmem:[%s3147 + $0x18] sm:$0xff]
    %v3152 = vld [vmem:[%s3147 + $0x20] sm:$0xff]
    %v3153 = vld [vmem:[%s3147 + $0x28] sm:$0xff]
    %v3154 = vld [vmem:[%s3147 + $0x30] sm:$0xff]
    %v3155 = vld [vmem:[%s3147 + $0x38] sm:$0xff]
    %v3156 = vld [vmem:[%s3147 + $0x40] sm:$0xff]
    %v3157 = vld [vmem:[%s3147 + $0x48] sm:$0xff]
    %v3158 = vld [vmem:[%s3147 + $0x50] sm:$0xff]
    %v3159 = vld [vmem:[%s3147 + $0x58] sm:$0xff]
    %v3160 = vld [vmem:[%s3147 + $0x60] sm:$0xff]
    %v3161 = vld [vmem:[%s3147 + $0x68] sm:$0xff]
    %v3162 = vld [vmem:[%s3147 + $0x70] sm:$0xff]
    %v3163 = vld [vmem:[%s3147 + $0x78] sm:$0xff]
    %v3164 = vld [vmem:[%s3147 + $0x80] sm:$0xff]
    %v3165 = vld [vmem:[%s3147 + $0x88] sm:$0xff]
    %v3166 = vld [vmem:[%s3147 + $0x90] sm:$0xff]
    %v3167 = vld [vmem:[%s3147 + $0x98] sm:$0xff]
    %v3168 = vld [vmem:[%s3147 + $0xa0] sm:$0xff]
    %v3169 = vld [vmem:[%s3147 + $0xa8] sm:$0xff]
    %v3170 = vld [vmem:[%s3147 + $0xb0] sm:$0xff]
    %v3171 = vld [vmem:[%s3147 + $0xb8] sm:$0xff]
    %v3172 = vld [vmem:[%s3147 + $0xc0] sm:$0xff]
    %v3173 = vld [vmem:[%s3147 + $0xc8] sm:$0xff]
    %v3174 = vld [vmem:[%s3147 + $0xd0] sm:$0xff]
    %v3175 = vld [vmem:[%s3147 + $0xd8] sm:$0xff]
    %v3176 = vld [vmem:[%s3147 + $0xe0] sm:$0xff]
    %v3177 = vld [vmem:[%s3147 + $0xe8] sm:$0xff]
    %v3178 = vld [vmem:[%s3147 + $0xf0] sm:$0xff]
    %v3179 = vld [vmem:[%s3147 + $0xf8] sm:$0xff]
    %v3180 = vld [vmem:[%s3147 + $0x100] sm:$0xff]
    %v3181 = vld [vmem:[%s3147 + $0x108] sm:$0xff]
    %v3182 = vld [vmem:[%s3147 + $0x110] sm:$0xff]
    %v3183 = vld [vmem:[%s3147 + $0x118] sm:$0xff]
    %v3184 = vld [vmem:[%s3147 + $0x120] sm:$0xff]
    %v3185 = vld [vmem:[%s3147 + $0x128] sm:$0xff]
    %v3186 = vld [vmem:[%s3147 + $0x130] sm:$0xff]
    %v3187 = vld [vmem:[%s3147 + $0x138] sm:$0xff]
    %v3188 = vld [vmem:[%s3147 + $0x140] sm:$0xff]
    %v3189 = vld [vmem:[%s3147 + $0x148] sm:$0xff]
    %v3190 = vld [vmem:[%s3147 + $0x150] sm:$0xff]
    %v3191 = vld [vmem:[%s3147 + $0x158] sm:$0xff]
    %v3192 = vld [vmem:[%s3147 + $0x160] sm:$0xff]
    %v3193 = vld [vmem:[%s3147 + $0x168] sm:$0xff]
    %v3194 = vld [vmem:[%s3147 + $0x170] sm:$0xff]
    %v3195 = vld [vmem:[%s3147 + $0x178] sm:$0xff]
    %v3196 = vld [vmem:[%s3147 + $0x180] sm:$0xff]
    %v3197 = vld [vmem:[%s3147 + $0x188] sm:$0xff]
    %v3198 = vld [vmem:[%s3147 + $0x190] sm:$0xff]
    %v3199 = vld [vmem:[%s3147 + $0x198] sm:$0xff]
    %v3200 = vld [vmem:[%s3147 + $0x1a0] sm:$0xff]
    %v3201 = vld [vmem:[%s3147 + $0x1a8] sm:$0xff]
    %v3202 = vld [vmem:[%s3147 + $0x1b0] sm:$0xff]
    %v3203 = vld [vmem:[%s3147 + $0x1b8] sm:$0xff]
    %v3204 = vld [vmem:[%s3147 + $0x1c0] sm:$0xff]
    %v3205 = vld [vmem:[%s3147 + $0x1c8] sm:$0xff]
    %v3206 = vld [vmem:[%s3147 + $0x1d0] sm:$0xff]
    %v3207 = vld [vmem:[%s3147 + $0x1d8] sm:$0xff]
    %v3208 = vld [vmem:[%s3147 + $0x1e0] sm:$0xff]
    %v3209 = vld [vmem:[%s3147 + $0x1e8] sm:$0xff]
    %v3210 = vld [vmem:[%s3147 + $0x1f0] sm:$0xff]
    %v3211 = vld [vmem:[%s3147 + $0x1f8] sm:$0xff]
    %v3212 = vld [vmem:[%s3147 + $0x200] sm:$0xff]
    %v3213 = vld [vmem:[%s3147 + $0x208] sm:$0xff]
    %v3214 = vld [vmem:[%s3147 + $0x210] sm:$0xff]
    %v3215 = vld [vmem:[%s3147 + $0x218] sm:$0xff]
    %v3216 = vld [vmem:[%s3147 + $0x220] sm:$0xff]
    %v3217 = vld [vmem:[%s3147 + $0x228] sm:$0xff]
    %v3218 = vld [vmem:[%s3147 + $0x230] sm:$0xff]
    %v3219 = vld [vmem:[%s3147 + $0x238] sm:$0xff]
    %v3220 = vld [vmem:[%s3147 + $0x240] sm:$0xff]
    %v3221 = vld [vmem:[%s3147 + $0x248] sm:$0xff]
    %v3222 = vld [vmem:[%s3147 + $0x250] sm:$0xff]
    %v3223 = vld [vmem:[%s3147 + $0x258] sm:$0xff]
    %v3224 = vld [vmem:[%s3147 + $0x260] sm:$0xff]
    %v3225 = vld [vmem:[%s3147 + $0x268] sm:$0xff]
    %v3226 = vld [vmem:[%s3147 + $0x270] sm:$0xff]
    %v3227 = vld [vmem:[%s3147 + $0x278] sm:$0xff]
    %v3228 = vld [vmem:[%s3147 + $0x280] sm:$0xff]
    %v3229 = vld [vmem:[%s3147 + $0x288] sm:$0xff]
    %v3230 = vld [vmem:[%s3147 + $0x290] sm:$0xff]
    %v3231 = vld [vmem:[%s3147 + $0x298] sm:$0xff]
    %v3232 = vld [vmem:[%s3147 + $0x2a0] sm:$0xff]
    %v3233 = vld [vmem:[%s3147 + $0x2a8] sm:$0xff]
    %v3234 = vld [vmem:[%s3147 + $0x2b0] sm:$0xff]
    %v3235 = vld [vmem:[%s3147 + $0x2b8] sm:$0xff]
    %v3236 = vld [vmem:[%s3147 + $0x2c0] sm:$0xff]
    %v3237 = vld [vmem:[%s3147 + $0x2c8] sm:$0xff]
    %v3238 = vld [vmem:[%s3147 + $0x2d0] sm:$0xff]
    %v3239 = vld [vmem:[%s3147 + $0x2d8] sm:$0xff]
    %v3240 = vld [vmem:[%s3147 + $0x2e0] sm:$0xff]
    %v3241 = vld [vmem:[%s3147 + $0x2e8] sm:$0xff]
    %v3242 = vld [vmem:[%s3147 + $0x2f0] sm:$0xff]
    %v3243 = vld [vmem:[%s3147 + $0x2f8] sm:$0xff]
    %v3244 = vld [vmem:[%s3147 + $0x300] sm:$0xff]
    %v3245 = vld [vmem:[%s3147 + $0x308] sm:$0xff]
    %v3246 = vld [vmem:[%s3147 + $0x310] sm:$0xff]
    %v3247 = vld [vmem:[%s3147 + $0x318] sm:$0xff]
    %v3248 = vpack.c.bf16 %v3068, %v3064
    %v3249 = vpack.c.bf16 %v3069, %v3065
    %v3250 = vpack.c.bf16 %v3070, %v3066
    %v3251 = vpack.c.bf16 %v3071, %v3067
    %v3252 = vpack.c.bf16 %v3076, %v3072
    %v3253 = vpack.c.bf16 %v3077, %v3073
    %v3254 = vpack.c.bf16 %v3078, %v3074
    %v3255 = vpack.c.bf16 %v3079, %v3075
    %v3256 = vlaneseq
    %v3257 = vshrl.u32 %v3256, 7
    %v3258 = vsub.s32 4, %v3257
    %v3259 = vrot.slane %v183, %v3258
    %v3260 = vlaneseq
    %v3261 = vshrl.u32 %v3260, 7
    %v3262 = vsub.s32 4, %v3261
    %v3263 = vrot.slane %v184, %v3262
    %v3264 = vlaneseq
    %v3265 = vshrl.u32 %v3264, 7
    %v3266 = vsub.s32 4, %v3265
    %v3267 = vrot.slane %v185, %v3266
    %v3268 = vlaneseq
    %v3269 = vshrl.u32 %v3268, 7
    %v3270 = vsub.s32 4, %v3269
    %v3271 = vrot.slane %v186, %v3270
    %v3372 = vunpack.c.l.b16 %v3148
    %v3373 = vunpack.c.h.b16 %v3148
    %v3374 = vunpack.c.l.b16 %v3149
    %v3375 = vunpack.c.h.b16 %v3149
    %v3376 = vunpack.c.l.b16 %v3150
    %v3377 = vunpack.c.h.b16 %v3150
    %v3378 = vunpack.c.l.b16 %v3151
    %v3379 = vunpack.c.h.b16 %v3151
    %v3380 = vunpack.c.l.b16 %v3152
    %v3381 = vunpack.c.h.b16 %v3152
    %v3382 = vunpack.c.l.b16 %v3153
    %v3383 = vunpack.c.h.b16 %v3153
    %v3384 = vunpack.c.l.b16 %v3154
    %v3385 = vunpack.c.h.b16 %v3154
    %v3386 = vunpack.c.l.b16 %v3155
    %v3387 = vunpack.c.h.b16 %v3155
    %v3388 = vunpack.c.l.b16 %v3156
    %v3389 = vunpack.c.h.b16 %v3156
    %v3390 = vunpack.c.l.b16 %v3157
    %v3391 = vunpack.c.h.b16 %v3157
    %v3392 = vunpack.c.l.b16 %v3158
    %v3393 = vunpack.c.h.b16 %v3158
    %v3394 = vunpack.c.l.b16 %v3159
    %v3395 = vunpack.c.h.b16 %v3159
    %v3396 = vunpack.c.l.b16 %v3160
    %v3397 = vunpack.c.h.b16 %v3160
    %v3398 = vunpack.c.l.b16 %v3161
    %v3399 = vunpack.c.h.b16 %v3161
    %v3400 = vunpack.c.l.b16 %v3162
    %v3401 = vunpack.c.h.b16 %v3162
    %v3402 = vunpack.c.l.b16 %v3163
    %v3403 = vunpack.c.h.b16 %v3163
    %v3404 = vunpack.c.l.b16 %v3164
    %v3405 = vunpack.c.h.b16 %v3164
    %v3406 = vunpack.c.l.b16 %v3165
    %v3407 = vunpack.c.h.b16 %v3165
    %v3408 = vunpack.c.l.b16 %v3166
    %v3409 = vunpack.c.h.b16 %v3166
    %v3410 = vunpack.c.l.b16 %v3167
    %v3411 = vunpack.c.h.b16 %v3167
    %v3412 = vunpack.c.l.b16 %v3168
    %v3413 = vunpack.c.h.b16 %v3168
    %v3414 = vunpack.c.l.b16 %v3169
    %v3415 = vunpack.c.h.b16 %v3169
    %v3416 = vunpack.c.l.b16 %v3170
    %v3417 = vunpack.c.h.b16 %v3170
    %v3418 = vunpack.c.l.b16 %v3171
    %v3419 = vunpack.c.h.b16 %v3171
    %v3420 = vunpack.c.l.b16 %v3172
    %v3421 = vunpack.c.h.b16 %v3172
    %v3422 = vunpack.c.l.b16 %v3173
    %v3423 = vunpack.c.h.b16 %v3173
    %v3424 = vunpack.c.l.b16 %v3174
    %v3425 = vunpack.c.h.b16 %v3174
    %v3426 = vunpack.c.l.b16 %v3175
    %v3427 = vunpack.c.h.b16 %v3175
    %v3428 = vunpack.c.l.b16 %v3176
    %v3429 = vunpack.c.h.b16 %v3176
    %v3430 = vunpack.c.l.b16 %v3177
    %v3431 = vunpack.c.h.b16 %v3177
    %v3432 = vunpack.c.l.b16 %v3178
    %v3433 = vunpack.c.h.b16 %v3178
    %v3434 = vunpack.c.l.b16 %v3179
    %v3435 = vunpack.c.h.b16 %v3179
    %v3436 = vunpack.c.l.b16 %v3180
    %v3437 = vunpack.c.h.b16 %v3180
    %v3438 = vunpack.c.l.b16 %v3181
    %v3439 = vunpack.c.h.b16 %v3181
    %v3440 = vunpack.c.l.b16 %v3182
    %v3441 = vunpack.c.h.b16 %v3182
    %v3442 = vunpack.c.l.b16 %v3183
    %v3443 = vunpack.c.h.b16 %v3183
    %v3444 = vunpack.c.l.b16 %v3184
    %v3445 = vunpack.c.h.b16 %v3184
    %v3446 = vunpack.c.l.b16 %v3185
    %v3447 = vunpack.c.h.b16 %v3185
    %v3448 = vunpack.c.l.b16 %v3186
    %v3449 = vunpack.c.h.b16 %v3186
    %v3450 = vunpack.c.l.b16 %v3187
    %v3451 = vunpack.c.h.b16 %v3187
    %v3452 = vunpack.c.l.b16 %v3188
    %v3453 = vunpack.c.h.b16 %v3188
    %v3454 = vunpack.c.l.b16 %v3189
    %v3455 = vunpack.c.h.b16 %v3189
    %v3456 = vunpack.c.l.b16 %v3190
    %v3457 = vunpack.c.h.b16 %v3190
    %v3458 = vunpack.c.l.b16 %v3191
    %v3459 = vunpack.c.h.b16 %v3191
    %v3460 = vunpack.c.l.b16 %v3192
    %v3461 = vunpack.c.h.b16 %v3192
    %v3462 = vunpack.c.l.b16 %v3193
    %v3463 = vunpack.c.h.b16 %v3193
    %v3464 = vunpack.c.l.b16 %v3194
    %v3465 = vunpack.c.h.b16 %v3194
    %v3466 = vunpack.c.l.b16 %v3195
    %v3467 = vunpack.c.h.b16 %v3195
    %v3468 = vunpack.c.l.b16 %v3196
    %v3469 = vunpack.c.h.b16 %v3196
    %v3470 = vunpack.c.l.b16 %v3197
    %v3471 = vunpack.c.h.b16 %v3197
    %v3472 = vunpack.c.l.b16 %v3198
    %v3473 = vunpack.c.h.b16 %v3198
    %v3474 = vunpack.c.l.b16 %v3199
    %v3475 = vunpack.c.h.b16 %v3199
    %v3476 = vunpack.c.l.b16 %v3200
    %v3477 = vunpack.c.h.b16 %v3200
    %v3478 = vunpack.c.l.b16 %v3201
    %v3479 = vunpack.c.h.b16 %v3201
    %v3480 = vunpack.c.l.b16 %v3202
    %v3481 = vunpack.c.h.b16 %v3202
    %v3482 = vunpack.c.l.b16 %v3203
    %v3483 = vunpack.c.h.b16 %v3203
    %v3484 = vunpack.c.l.b16 %v3204
    %v3485 = vunpack.c.h.b16 %v3204
    %v3486 = vunpack.c.l.b16 %v3205
    %v3487 = vunpack.c.h.b16 %v3205
    %v3488 = vunpack.c.l.b16 %v3206
    %v3489 = vunpack.c.h.b16 %v3206
    %v3490 = vunpack.c.l.b16 %v3207
    %v3491 = vunpack.c.h.b16 %v3207
    %v3492 = vunpack.c.l.b16 %v3208
    %v3493 = vunpack.c.h.b16 %v3208
    %v3494 = vunpack.c.l.b16 %v3209
    %v3495 = vunpack.c.h.b16 %v3209
    %v3496 = vunpack.c.l.b16 %v3210
    %v3497 = vunpack.c.h.b16 %v3210
    %v3498 = vunpack.c.l.b16 %v3211
    %v3499 = vunpack.c.h.b16 %v3211
    %v3500 = vunpack.c.l.b16 %v3212
    %v3501 = vunpack.c.h.b16 %v3212
    %v3502 = vunpack.c.l.b16 %v3213
    %v3503 = vunpack.c.h.b16 %v3213
    %v3504 = vunpack.c.l.b16 %v3214
    %v3505 = vunpack.c.h.b16 %v3214
    %v3506 = vunpack.c.l.b16 %v3215
    %v3507 = vunpack.c.h.b16 %v3215
    %v3508 = vunpack.c.l.b16 %v3216
    %v3509 = vunpack.c.h.b16 %v3216
    %v3510 = vunpack.c.l.b16 %v3217
    %v3511 = vunpack.c.h.b16 %v3217
    %v3512 = vunpack.c.l.b16 %v3218
    %v3513 = vunpack.c.h.b16 %v3218
    %v3514 = vunpack.c.l.b16 %v3219
    %v3515 = vunpack.c.h.b16 %v3219
    %v3516 = vunpack.c.l.b16 %v3220
    %v3517 = vunpack.c.h.b16 %v3220
    %v3518 = vunpack.c.l.b16 %v3221
    %v3519 = vunpack.c.h.b16 %v3221
    %v3520 = vunpack.c.l.b16 %v3222
    %v3521 = vunpack.c.h.b16 %v3222
    %v3522 = vunpack.c.l.b16 %v3223
    %v3523 = vunpack.c.h.b16 %v3223
    %v3524 = vunpack.c.l.b16 %v3224
    %v3525 = vunpack.c.h.b16 %v3224
    %v3526 = vunpack.c.l.b16 %v3225
    %v3527 = vunpack.c.h.b16 %v3225
    %v3528 = vunpack.c.l.b16 %v3226
    %v3529 = vunpack.c.h.b16 %v3226
    %v3530 = vunpack.c.l.b16 %v3227
    %v3531 = vunpack.c.h.b16 %v3227
    %v3532 = vunpack.c.l.b16 %v3228
    %v3533 = vunpack.c.h.b16 %v3228
    %v3534 = vunpack.c.l.b16 %v3229
    %v3535 = vunpack.c.h.b16 %v3229
    %v3536 = vunpack.c.l.b16 %v3230
    %v3537 = vunpack.c.h.b16 %v3230
    %v3538 = vunpack.c.l.b16 %v3231
    %v3539 = vunpack.c.h.b16 %v3231
    %v3540 = vunpack.c.l.b16 %v3232
    %v3541 = vunpack.c.h.b16 %v3232
    %v3542 = vunpack.c.l.b16 %v3233
    %v3543 = vunpack.c.h.b16 %v3233
    %v3544 = vunpack.c.l.b16 %v3234
    %v3545 = vunpack.c.h.b16 %v3234
    %v3546 = vunpack.c.l.b16 %v3235
    %v3547 = vunpack.c.h.b16 %v3235
    %v3548 = vunpack.c.l.b16 %v3236
    %v3549 = vunpack.c.h.b16 %v3236
    %v3550 = vunpack.c.l.b16 %v3237
    %v3551 = vunpack.c.h.b16 %v3237
    %v3552 = vunpack.c.l.b16 %v3238
    %v3553 = vunpack.c.h.b16 %v3238
    %v3554 = vunpack.c.l.b16 %v3239
    %v3555 = vunpack.c.h.b16 %v3239
    %v3556 = vunpack.c.l.b16 %v3240
    %v3557 = vunpack.c.h.b16 %v3240
    %v3558 = vunpack.c.l.b16 %v3241
    %v3559 = vunpack.c.h.b16 %v3241
    %v3560 = vunpack.c.l.b16 %v3242
    %v3561 = vunpack.c.h.b16 %v3242
    %v3562 = vunpack.c.l.b16 %v3243
    %v3563 = vunpack.c.h.b16 %v3243
    %v3564 = vunpack.c.l.b16 %v3244
    %v3565 = vunpack.c.h.b16 %v3244
    %v3566 = vunpack.c.l.b16 %v3245
    %v3567 = vunpack.c.h.b16 %v3245
    %v3568 = vunpack.c.l.b16 %v3246
    %v3569 = vunpack.c.h.b16 %v3246
    %v3570 = vunpack.c.l.b16 %v3247
    %v3571 = vunpack.c.h.b16 %v3247
    %v3572 = vpack.c.b16 %v3376, %v3372
    %v3573 = vpack.c.b16 %v3377, %v3373
    %v3574 = vpack.c.b16 %v3378, %v3374
    %v3575 = vpack.c.b16 %v3379, %v3375
    %v3576 = vpack.c.b16 %v3384, %v3380
    %v3577 = vpack.c.b16 %v3385, %v3381
    %v3578 = vpack.c.b16 %v3386, %v3382
    %v3579 = vpack.c.b16 %v3387, %v3383
    %v3580 = vpack.c.b16 %v3392, %v3388
    %v3581 = vpack.c.b16 %v3393, %v3389
    %v3582 = vpack.c.b16 %v3394, %v3390
    %v3583 = vpack.c.b16 %v3395, %v3391
    %v3584 = vpack.c.b16 %v3400, %v3396
    %v3585 = vpack.c.b16 %v3401, %v3397
    %v3586 = vpack.c.b16 %v3402, %v3398
    %v3587 = vpack.c.b16 %v3403, %v3399
    %v3588 = vpack.c.b16 %v3408, %v3404
    %v3589 = vpack.c.b16 %v3409, %v3405
    %v3590 = vpack.c.b16 %v3410, %v3406
    %v3591 = vpack.c.b16 %v3411, %v3407
    %v3592 = vpack.c.b16 %v3416, %v3412
    %v3593 = vpack.c.b16 %v3417, %v3413
    %v3594 = vpack.c.b16 %v3418, %v3414
    %v3595 = vpack.c.b16 %v3419, %v3415
    %v3596 = vpack.c.b16 %v3424, %v3420
    %v3597 = vpack.c.b16 %v3425, %v3421
    %v3598 = vpack.c.b16 %v3426, %v3422
    %v3599 = vpack.c.b16 %v3427, %v3423
    %v3600 = vpack.c.b16 %v3432, %v3428
    %v3601 = vpack.c.b16 %v3433, %v3429
    %v3602 = vpack.c.b16 %v3434, %v3430
    %v3603 = vpack.c.b16 %v3435, %v3431
    %v3604 = vpack.c.b16 %v3440, %v3436
    %v3605 = vpack.c.b16 %v3441, %v3437
    %v3606 = vpack.c.b16 %v3442, %v3438
    %v3607 = vpack.c.b16 %v3443, %v3439
    %v3608 = vpack.c.b16 %v3448, %v3444
    %v3609 = vpack.c.b16 %v3449, %v3445
    %v3610 = vpack.c.b16 %v3450, %v3446
    %v3611 = vpack.c.b16 %v3451, %v3447
    %v3612 = vpack.c.b16 %v3456, %v3452
    %v3613 = vpack.c.b16 %v3457, %v3453
    %v3614 = vpack.c.b16 %v3458, %v3454
    %v3615 = vpack.c.b16 %v3459, %v3455
    %v3616 = vpack.c.b16 %v3464, %v3460
    %v3617 = vpack.c.b16 %v3465, %v3461
    %v3618 = vpack.c.b16 %v3466, %v3462
    %v3619 = vpack.c.b16 %v3467, %v3463
    %v3620 = vpack.c.b16 %v3472, %v3468
    %v3621 = vpack.c.b16 %v3473, %v3469
    %v3622 = vpack.c.b16 %v3474, %v3470
    %v3623 = vpack.c.b16 %v3475, %v3471
    %v3624 = vpack.c.b16 %v3480, %v3476
    %v3625 = vpack.c.b16 %v3481, %v3477
    %v3626 = vpack.c.b16 %v3482, %v3478
    %v3627 = vpack.c.b16 %v3483, %v3479
    %v3628 = vpack.c.b16 %v3488, %v3484
    %v3629 = vpack.c.b16 %v3489, %v3485
    %v3630 = vpack.c.b16 %v3490, %v3486
    %v3631 = vpack.c.b16 %v3491, %v3487
    %v3632 = vpack.c.b16 %v3496, %v3492
    %v3633 = vpack.c.b16 %v3497, %v3493
    %v3634 = vpack.c.b16 %v3498, %v3494
    %v3635 = vpack.c.b16 %v3499, %v3495
    %v3636 = vpack.c.b16 %v3504, %v3500
    %v3637 = vpack.c.b16 %v3505, %v3501
    %v3638 = vpack.c.b16 %v3506, %v3502
    %v3639 = vpack.c.b16 %v3507, %v3503
    %v3640 = vpack.c.b16 %v3512, %v3508
    %v3641 = vpack.c.b16 %v3513, %v3509
    %v3642 = vpack.c.b16 %v3514, %v3510
    %v3643 = vpack.c.b16 %v3515, %v3511
    %v3644 = vpack.c.b16 %v3520, %v3516
    %v3645 = vpack.c.b16 %v3521, %v3517
    %v3646 = vpack.c.b16 %v3522, %v3518
    %v3647 = vpack.c.b16 %v3523, %v3519
    %v3648 = vpack.c.b16 %v3528, %v3524
    %v3649 = vpack.c.b16 %v3529, %v3525
    %v3650 = vpack.c.b16 %v3530, %v3526
    %v3651 = vpack.c.b16 %v3531, %v3527
    %v3652 = vpack.c.b16 %v3536, %v3532
    %v3653 = vpack.c.b16 %v3537, %v3533
    %v3654 = vpack.c.b16 %v3538, %v3534
    %v3655 = vpack.c.b16 %v3539, %v3535
    %v3656 = vpack.c.b16 %v3544, %v3540
    %v3657 = vpack.c.b16 %v3545, %v3541
    %v3658 = vpack.c.b16 %v3546, %v3542
    %v3659 = vpack.c.b16 %v3547, %v3543
    %v3660 = vpack.c.b16 %v3552, %v3548
    %v3661 = vpack.c.b16 %v3553, %v3549
    %v3662 = vpack.c.b16 %v3554, %v3550
    %v3663 = vpack.c.b16 %v3555, %v3551
    %v3664 = vpack.c.b16 %v3560, %v3556
    %v3665 = vpack.c.b16 %v3561, %v3557
    %v3666 = vpack.c.b16 %v3562, %v3558
    %v3667 = vpack.c.b16 %v3563, %v3559
    %v3668 = vpack.c.b16 %v3568, %v3564
    %v3669 = vpack.c.b16 %v3569, %v3565
    %v3670 = vpack.c.b16 %v3570, %v3566
    %v3671 = vpack.c.b16 %v3571, %v3567
    %v3773 = vsel %vm1089, %v3251, 0
    %v3776 = vsel %vm1089, %v3255, 0
    %3778 = vmatprep.subr.bf16.mxu0 %v3573
    %3779 = vmatpush1.bf16.msra.mxu0 %v3572
    %3780 = vmatprep.subr.bf16.mxu0 %v3577
    %3781 = vmatpush1.bf16.msra.mxu0 %v3576
    %3782 = vmatprep.subr.bf16.mxu0 %v3581
    %3783 = vmatpush1.bf16.msra.mxu0 %v3580
    %3784 = vmatprep.subr.bf16.mxu0 %v3585
    %3785 = vmatpush1.bf16.msra.mxu0 %v3584
    %3786 = vmatprep.subr.bf16.mxu0 %v3589
    %3787 = vmatpush1.bf16.msra.mxu0 %v3588
    %3788 = vmatprep.subr.bf16.mxu0 %v3593
    %3789 = vmatpush1.bf16.msra.mxu0 %v3592
    %3790 = vmatprep.subr.bf16.mxu0 %v3597
    %3791 = vmatpush1.bf16.msra.mxu0 %v3596
    %3792 = vmatprep.subr.bf16.mxu0 %v3601
    %3793 = vmatpush1.bf16.msra.mxu0 %v3600
    %3794 = vmatprep.subr.bf16.mxu0 %v3605
    %3795 = vmatpush1.bf16.msra.mxu0 %v3604
    %3796 = vmatprep.subr.bf16.mxu0 %v3609
    %3797 = vmatpush1.bf16.msra.mxu0 %v3608
    %3798 = vmatprep.subr.bf16.mxu0 %v3613
    %3799 = vmatpush1.bf16.msra.mxu0 %v3612
    %3800 = vmatprep.subr.bf16.mxu0 %v3617
    %3801 = vmatpush1.bf16.msra.mxu0 %v3616
    %3802 = vmatprep.subr.bf16.mxu0 %v3621
    %3803 = vmatpush1.bf16.msra.mxu0 %v3620
    %3804 = vmatprep.subr.bf16.mxu0 %v3625
    %3805 = vmatpush1.bf16.msra.mxu0 %v3624
    %3806 = vmatprep.subr.bf16.mxu0 %v3629
    %3807 = vmatpush1.bf16.msra.mxu0 %v3628
    %3808 = vmatprep.subr.bf16.mxu0 %v3633
    %3809 = vmatpush1.bf16.msra.mxu0 %v3632
    %3810 = vmatprep.mubr.bf16.mxu0 %v3249
    %3811 = vmatmul.mubr.bf16.gmra.mrb[0].mxu0 %v3248
    %v3812 = vpop.f32.mrb[0].mxu0
    %v3813 = vadd.f32 %v3259, %v3812
    %v3814 = vpop.f32.mrb[0].mxu0
    %v3815 = vadd.f32 %v3263, %v3814
    %v3816 = vpop.f32.mrb[0].mxu0
    %v3817 = vadd.f32 %v3259, %v3816
    %v3818 = vpop.f32.mrb[0].mxu0
    %v3819 = vadd.f32 %v3263, %v3818
    %3820 = vmatprep.mubr.bf16.mxu0 %v3253
    %3821 = vmatmul.mubr.bf16.gmra.mrb[0].mxu0 %v3252
    %v3822 = vpop.f32.mrb[0].mxu0
    %v3823 = vadd.f32 %v3259, %v3822
    %v3824 = vpop.f32.mrb[0].mxu0
    %v3825 = vadd.f32 %v3263, %v3824
    %v3826 = vpop.f32.mrb[0].mxu0
    %v3827 = vadd.f32 %v3259, %v3826
    %v3828 = vpop.f32.mrb[0].mxu0
    %v3829 = vadd.f32 %v3263, %v3828
    %3830 = vdwg.mxu0
    %3831 = vmatprep.subr.bf16.mxu0 %v3637
    %3832 = vmatpush1.bf16.msra.mxu0 %v3636
    %3833 = vmatprep.subr.bf16.mxu0 %v3641
    %3834 = vmatpush1.bf16.msra.mxu0 %v3640
    %3835 = vmatprep.subr.bf16.mxu0 %v3645
    %3836 = vmatpush1.bf16.msra.mxu0 %v3644
    %3837 = vmatprep.subr.bf16.mxu0 %v3649
    %3838 = vmatpush1.bf16.msra.mxu0 %v3648
    %3839 = vmatprep.subr.bf16.mxu0 %v3653
    %3840 = vmatpush1.bf16.msra.mxu0 %v3652
    %3841 = vmatprep.subr.bf16.mxu0 %v3657
    %3842 = vmatpush1.bf16.msra.mxu0 %v3656
    %3843 = vmatprep.subr.bf16.mxu0 %v3661
    %3844 = vmatpush1.bf16.msra.mxu0 %v3660
    %3845 = vmatprep.subr.bf16.mxu0 %v3665
    %3846 = vmatpush1.bf16.msra.mxu0 %v3664
    %3847 = vmatprep.subr.bf16.mxu0 %v3669
    %3848 = vmatpush1.bf16.msra.mxu0 %v3668
    %3849 = vmatprep.subr.bf16.mxu0 0
    %3850 = vmatpush1.bf16.msra.mxu0 0
    %3851 = vmatprep.subr.bf16.mxu0 0
    %3852 = vmatpush1.bf16.msra.mxu0 0
    %3853 = vmatprep.subr.bf16.mxu0 0
    %3854 = vmatpush1.bf16.msra.mxu0 0
    %3855 = vmatprep.subr.bf16.mxu0 0
    %3856 = vmatpush1.bf16.msra.mxu0 0
    %3857 = vmatprep.subr.bf16.mxu0 0
    %3858 = vmatpush1.bf16.msra.mxu0 0
    %3859 = vmatprep.subr.bf16.mxu0 0
    %3860 = vmatpush1.bf16.msra.mxu0 0
    %3861 = vmatprep.subr.bf16.mxu0 0
    %3862 = vmatpush1.bf16.msra.mxu0 0
    %3863 = vmatprep.mubr.bf16.mxu0 %v3773
    %3864 = vmatmul.mubr.bf16.gmra.mrb[0].mxu0 %v3250
    %v3865 = vpop.f32.mrb[0].mxu0
    %v3866 = vadd.f32 %v3813, %v3865
    %v3867 = vpop.f32.mrb[0].mxu0
    %v3868 = vadd.f32 %v3815, %v3867
    %v3869 = vpop.f32.mrb[0].mxu0
    %v3870 = vadd.f32 %v3817, %v3869
    %v3871 = vpop.f32.mrb[0].mxu0
    %v3872 = vadd.f32 %v3819, %v3871
    %3873 = vmatprep.mubr.bf16.mxu0 %v3776
    %3874 = vmatmul.mubr.bf16.gmra.mrb[0].mxu0 %v3254
    %v3875 = vpop.f32.mrb[0].mxu0
    %v3876 = vadd.f32 %v3823, %v3875
    %v3877 = vpop.f32.mrb[0].mxu0
    %v3878 = vadd.f32 %v3825, %v3877
    %v3879 = vpop.f32.mrb[0].mxu0
    %v3880 = vadd.f32 %v3827, %v3879
    %v3881 = vpop.f32.mrb[0].mxu0
    %v3882 = vadd.f32 %v3829, %v3881
    %3883 = vdwg.mxu0
    %3884 = vmatprep.subr.bf16.mxu0 %v3575
    %3885 = vmatpush1.bf16.msra.mxu0 %v3574
    %3886 = vmatprep.subr.bf16.mxu0 %v3579
    %3887 = vmatpush1.bf16.msra.mxu0 %v3578
    %3888 = vmatprep.subr.bf16.mxu0 %v3583
    %3889 = vmatpush1.bf16.msra.mxu0 %v3582
    %3890 = vmatprep.subr.bf16.mxu0 %v3587
    %3891 = vmatpush1.bf16.msra.mxu0 %v3586
    %3892 = vmatprep.subr.bf16.mxu0 %v3591
    %3893 = vmatpush1.bf16.msra.mxu0 %v3590
    %3894 = vmatprep.subr.bf16.mxu0 %v3595
    %3895 = vmatpush1.bf16.msra.mxu0 %v3594
    %3896 = vmatprep.subr.bf16.mxu0 %v3599
    %3897 = vmatpush1.bf16.msra.mxu0 %v3598
    %3898 = vmatprep.subr.bf16.mxu0 %v3603
    %3899 = vmatpush1.bf16.msra.mxu0 %v3602
    %3900 = vmatprep.subr.bf16.mxu0 %v3607
    %3901 = vmatpush1.bf16.msra.mxu0 %v3606
    %3902 = vmatprep.subr.bf16.mxu0 %v3611
    %3903 = vmatpush1.bf16.msra.mxu0 %v3610
    %3904 = vmatprep.subr.bf16.mxu0 %v3615
    %3905 = vmatpush1.bf16.msra.mxu0 %v3614
    %3906 = vmatprep.subr.bf16.mxu0 %v3619
    %3907 = vmatpush1.bf16.msra.mxu0 %v3618
    %3908 = vmatprep.subr.bf16.mxu0 %v3623
    %3909 = vmatpush1.bf16.msra.mxu0 %v3622
    %3910 = vmatprep.subr.bf16.mxu0 %v3627
    %3911 = vmatpush1.bf16.msra.mxu0 %v3626
    %3912 = vmatprep.subr.bf16.mxu0 %v3631
    %3913 = vmatpush1.bf16.msra.mxu0 %v3630
    %3914 = vmatprep.subr.bf16.mxu0 %v3635
    %3915 = vmatpush1.bf16.msra.mxu0 %v3634
    %3916 = vmatprep.mubr.bf16.mxu0 %v3249
    %3917 = vmatmul.mubr.bf16.gmra.mrb[0].mxu0 %v3248
    %v3918 = vpop.f32.mrb[0].mxu0
    %v3919 = vadd.f32 %v3267, %v3918
    %v3920 = vpop.f32.mrb[0].mxu0
    %v3921 = vadd.f32 %v3271, %v3920
    %v3922 = vpop.f32.mrb[0].mxu0
    %v3923 = vadd.f32 %v3267, %v3922
    %v3924 = vpop.f32.mrb[0].mxu0
    %v3925 = vadd.f32 %v3271, %v3924
    %3926 = vmatprep.mubr.bf16.mxu0 %v3253
    %3927 = vmatmul.mubr.bf16.gmra.mrb[0].mxu0 %v3252
    %v3928 = vpop.f32.mrb[0].mxu0
    %v3929 = vadd.f32 %v3267, %v3928
    %v3930 = vpop.f32.mrb[0].mxu0
    %v3931 = vadd.f32 %v3271, %v3930
    %v3932 = vpop.f32.mrb[0].mxu0
    %v3933 = vadd.f32 %v3267, %v3932
    %v3934 = vpop.f32.mrb[0].mxu0
    %v3935 = vadd.f32 %v3271, %v3934
    %3936 = vdwg.mxu0
    %3937 = vmatprep.subr.bf16.mxu0 %v3639
    %3938 = vmatpush1.bf16.msra.mxu0 %v3638
    %3939 = vmatprep.subr.bf16.mxu0 %v3643
    %3940 = vmatpush1.bf16.msra.mxu0 %v3642
    %3941 = vmatprep.subr.bf16.mxu0 %v3647
    %3942 = vmatpush1.bf16.msra.mxu0 %v3646
    %3943 = vmatprep.subr.bf16.mxu0 %v3651
    %3944 = vmatpush1.bf16.msra.mxu0 %v3650
    %3945 = vmatprep.subr.bf16.mxu0 %v3655
    %3946 = vmatpush1.bf16.msra.mxu0 %v3654
    %3947 = vmatprep.subr.bf16.mxu0 %v3659
    %3948 = vmatpush1.bf16.msra.mxu0 %v3658
    %3949 = vmatprep.subr.bf16.mxu0 %v3663
    %3950 = vmatpush1.bf16.msra.mxu0 %v3662
    %3951 = vmatprep.subr.bf16.mxu0 %v3667
    %3952 = vmatpush1.bf16.msra.mxu0 %v3666
    %3953 = vmatprep.subr.bf16.mxu0 %v3671
    %3954 = vmatpush1.bf16.msra.mxu0 %v3670
    %3955 = vmatprep.subr.bf16.mxu0 0
    %3956 = vmatpush1.bf16.msra.mxu0 0
    %3957 = vmatprep.subr.bf16.mxu0 0
    %3958 = vmatpush1.bf16.msra.mxu0 0
    %3959 = vmatprep.subr.bf16.mxu0 0
    %3960 = vmatpush1.bf16.msra.mxu0 0
    %3961 = vmatprep.subr.bf16.mxu0 0
    %3962 = vmatpush1.bf16.msra.mxu0 0
    %3963 = vmatprep.subr.bf16.mxu0 0
    %3964 = vmatpush1.bf16.msra.mxu0 0
    %3965 = vmatprep.subr.bf16.mxu0 0
    %3966 = vmatpush1.bf16.msra.mxu0 0
    %3967 = vmatprep.subr.bf16.mxu0 0
    %3968 = vmatpush1.bf16.msra.mxu0 0
    %3969 = vmatprep.mubr.bf16.mxu0 %v3773
    %3970 = vmatmul.mubr.bf16.gmra.mrb[0].mxu0 %v3250
    %v3971 = vpop.f32.mrb[0].mxu0
    %v3972 = vadd.f32 %v3919, %v3971
    %v3973 = vpop.f32.mrb[0].mxu0
    %v3974 = vadd.f32 %v3921, %v3973
    %v3975 = vpop.f32.mrb[0].mxu0
    %v3976 = vadd.f32 %v3923, %v3975
    %v3977 = vpop.f32.mrb[0].mxu0
    %v3978 = vadd.f32 %v3925, %v3977
    %3979 = vmatprep.mubr.bf16.mxu0 %v3776
    %3980 = vmatmul.mubr.bf16.gmra.mrb[0].mxu0 %v3254
    %v3981 = vpop.f32.mrb[0].mxu0
    %v3982 = vadd.f32 %v3929, %v3981
    %v3983 = vpop.f32.mrb[0].mxu0
    %v3984 = vadd.f32 %v3931, %v3983
    %v3985 = vpop.f32.mrb[0].mxu0
    %v3986 = vadd.f32 %v3933, %v3985
    %v3987 = vpop.f32.mrb[0].mxu0
    %v3988 = vadd.f32 %v3935, %v3987
    %3989 = vdwg.mxu0
    %v3990 = vmax.f32 %v3866, 0.0
    %v3991 = vmax.f32 %v3868, 0.0
    %v3992 = vmax.f32 %v3972, 0.0
    %v3993 = vmax.f32 %v3974, 0.0
    %v3994 = vmax.f32 %v3870, 0.0
    %v3995 = vmax.f32 %v3872, 0.0
    %v3996 = vmax.f32 %v3976, 0.0
    %v3997 = vmax.f32 %v3978, 0.0
    %v3998 = vmax.f32 %v3876, 0.0
    %v3999 = vmax.f32 %v3878, 0.0
    %v4000 = vmax.f32 %v3982, 0.0
    %v4001 = vmax.f32 %v3984, 0.0
    %v4002 = vmax.f32 %v3880, 0.0
    %v4003 = vmax.f32 %v3882, 0.0
    %v4004 = vmax.f32 %v3986, 0.0
    %v4005 = vmax.f32 %v3988, 0.0
    %s4006 = scalar_lea.vmem [#allocation11], 2400
    %v4007 = vld [vmem:[%s4006] sm:$0xff]
    %v4008 = vld [vmem:[%s4006 + $0x8] sm:$0xff]
    %v4009 = vld [vmem:[%s4006 + $0x10] sm:$0xff]
    %v4010 = vld [vmem:[%s4006 + $0x18] sm:$0xff]
    %v4011 = vld [vmem:[%s4006 + $0x20] sm:$0xff]
    %v4012 = vld [vmem:[%s4006 + $0x28] sm:$0xff]
    %v4013 = vld [vmem:[%s4006 + $0x30] sm:$0xff]
    %v4014 = vld [vmem:[%s4006 + $0x38] sm:$0xff]
    %v4015 = vld [vmem:[%s4006 + $0x40] sm:$0xff]
    %v4016 = vld [vmem:[%s4006 + $0x48] sm:$0xff]
    %v4017 = vld [vmem:[%s4006 + $0x50] sm:$0xff]
    %v4018 = vld [vmem:[%s4006 + $0x58] sm:$0xff]
    %v4019 = vld [vmem:[%s4006 + $0x60] sm:$0xff]
    %v4020 = vld [vmem:[%s4006 + $0x68] sm:$0xff]
    %v4021 = vld [vmem:[%s4006 + $0x70] sm:$0xff]
    %v4022 = vld [vmem:[%s4006 + $0x78] sm:$0xff]
    %v4023 = vld [vmem:[%s4006 + $0x80] sm:$0xff]
    %v4024 = vld [vmem:[%s4006 + $0x88] sm:$0xff]
    %v4025 = vld [vmem:[%s4006 + $0x90] sm:$0xff]
    %v4026 = vld [vmem:[%s4006 + $0x98] sm:$0xff]
    %v4027 = vld [vmem:[%s4006 + $0xa0] sm:$0xff]
    %v4028 = vld [vmem:[%s4006 + $0xa8] sm:$0xff]
    %v4029 = vld [vmem:[%s4006 + $0xb0] sm:$0xff]
    %v4030 = vld [vmem:[%s4006 + $0xb8] sm:$0xff]
    %v4031 = vld [vmem:[%s4006 + $0xc0] sm:$0xff]
    %v4032 = vld [vmem:[%s4006 + $0xc8] sm:$0xff]
    %v4033 = vld [vmem:[%s4006 + $0xd0] sm:$0xff]
    %v4034 = vld [vmem:[%s4006 + $0xd8] sm:$0xff]
    %v4035 = vld [vmem:[%s4006 + $0xe0] sm:$0xff]
    %v4036 = vld [vmem:[%s4006 + $0xe8] sm:$0xff]
    %v4037 = vld [vmem:[%s4006 + $0xf0] sm:$0xff]
    %v4038 = vld [vmem:[%s4006 + $0xf8] sm:$0xff]
    %v4039 = vld [vmem:[%s4006 + $0x100] sm:$0xff]
    %v4040 = vld [vmem:[%s4006 + $0x108] sm:$0xff]
    %v4041 = vld [vmem:[%s4006 + $0x110] sm:$0xff]
    %v4042 = vld [vmem:[%s4006 + $0x118] sm:$0xff]
    %v4043 = vld [vmem:[%s4006 + $0x120] sm:$0xff]
    %v4044 = vld [vmem:[%s4006 + $0x128] sm:$0xff]
    %v4045 = vld [vmem:[%s4006 + $0x130] sm:$0xff]
    %v4046 = vld [vmem:[%s4006 + $0x138] sm:$0xff]
    %v4047 = vld [vmem:[%s4006 + $0x140] sm:$0xff]
    %v4048 = vld [vmem:[%s4006 + $0x148] sm:$0xff]
    %v4049 = vld [vmem:[%s4006 + $0x150] sm:$0xff]
    %v4050 = vld [vmem:[%s4006 + $0x158] sm:$0xff]
    %v4051 = vld [vmem:[%s4006 + $0x160] sm:$0xff]
    %v4052 = vld [vmem:[%s4006 + $0x168] sm:$0xff]
    %v4053 = vld [vmem:[%s4006 + $0x170] sm:$0xff]
    %v4054 = vld [vmem:[%s4006 + $0x178] sm:$0xff]
    %v4055 = vld [vmem:[%s4006 + $0x180] sm:$0xff]
    %v4056 = vld [vmem:[%s4006 + $0x188] sm:$0xff]
    %v4057 = vld [vmem:[%s4006 + $0x190] sm:$0xff]
    %v4058 = vld [vmem:[%s4006 + $0x198] sm:$0xff]
    %v4059 = vld [vmem:[%s4006 + $0x1a0] sm:$0xff]
    %v4060 = vld [vmem:[%s4006 + $0x1a8] sm:$0xff]
    %v4061 = vld [vmem:[%s4006 + $0x1b0] sm:$0xff]
    %v4062 = vld [vmem:[%s4006 + $0x1b8] sm:$0xff]
    %v4063 = vld [vmem:[%s4006 + $0x1c0] sm:$0xff]
    %v4064 = vld [vmem:[%s4006 + $0x1c8] sm:$0xff]
    %v4065 = vld [vmem:[%s4006 + $0x1d0] sm:$0xff]
    %v4066 = vld [vmem:[%s4006 + $0x1d8] sm:$0xff]
    %v4067 = vld [vmem:[%s4006 + $0x1e0] sm:$0xff]
    %v4068 = vld [vmem:[%s4006 + $0x1e8] sm:$0xff]
    %v4069 = vld [vmem:[%s4006 + $0x1f0] sm:$0xff]
    %v4070 = vld [vmem:[%s4006 + $0x1f8] sm:$0xff]
    %v4071 = vld [vmem:[%s4006 + $0x200] sm:$0xff]
    %v4072 = vld [vmem:[%s4006 + $0x208] sm:$0xff]
    %v4073 = vld [vmem:[%s4006 + $0x210] sm:$0xff]
    %v4074 = vld [vmem:[%s4006 + $0x218] sm:$0xff]
    %v4075 = vld [vmem:[%s4006 + $0x220] sm:$0xff]
    %v4076 = vld [vmem:[%s4006 + $0x228] sm:$0xff]
    %v4077 = vld [vmem:[%s4006 + $0x230] sm:$0xff]
    %v4078 = vld [vmem:[%s4006 + $0x238] sm:$0xff]
    %v4079 = vld [vmem:[%s4006 + $0x240] sm:$0xff]
    %v4080 = vld [vmem:[%s4006 + $0x248] sm:$0xff]
    %v4081 = vld [vmem:[%s4006 + $0x250] sm:$0xff]
    %v4082 = vld [vmem:[%s4006 + $0x258] sm:$0xff]
    %v4083 = vld [vmem:[%s4006 + $0x260] sm:$0xff]
    %v4084 = vld [vmem:[%s4006 + $0x268] sm:$0xff]
    %v4085 = vld [vmem:[%s4006 + $0x270] sm:$0xff]
    %v4086 = vld [vmem:[%s4006 + $0x278] sm:$0xff]
    %v4087 = vld [vmem:[%s4006 + $0x280] sm:$0xff]
    %v4088 = vld [vmem:[%s4006 + $0x288] sm:$0xff]
    %v4089 = vld [vmem:[%s4006 + $0x290] sm:$0xff]
    %v4090 = vld [vmem:[%s4006 + $0x298] sm:$0xff]
    %v4091 = vld [vmem:[%s4006 + $0x2a0] sm:$0xff]
    %v4092 = vld [vmem:[%s4006 + $0x2a8] sm:$0xff]
    %v4093 = vld [vmem:[%s4006 + $0x2b0] sm:$0xff]
    %v4094 = vld [vmem:[%s4006 + $0x2b8] sm:$0xff]
    %v4095 = vld [vmem:[%s4006 + $0x2c0] sm:$0xff]
    %v4096 = vld [vmem:[%s4006 + $0x2c8] sm:$0xff]
    %v4097 = vld [vmem:[%s4006 + $0x2d0] sm:$0xff]
    %v4098 = vld [vmem:[%s4006 + $0x2d8] sm:$0xff]
    %v4099 = vld [vmem:[%s4006 + $0x2e0] sm:$0xff]
    %v4100 = vld [vmem:[%s4006 + $0x2e8] sm:$0xff]
    %v4101 = vld [vmem:[%s4006 + $0x2f0] sm:$0xff]
    %v4102 = vld [vmem:[%s4006 + $0x2f8] sm:$0xff]
    %v4103 = vld [vmem:[%s4006 + $0x300] sm:$0xff]
    %v4104 = vld [vmem:[%s4006 + $0x308] sm:$0xff]
    %v4105 = vld [vmem:[%s4006 + $0x310] sm:$0xff]
    %v4106 = vld [vmem:[%s4006 + $0x318] sm:$0xff]
    %v4107 = vpack.c.bf16 %v3994, %v3990
    %v4108 = vpack.c.bf16 %v3995, %v3991
    %v4109 = vpack.c.bf16 %v3996, %v3992
    %v4110 = vpack.c.bf16 %v3997, %v3993
    %v4111 = vpack.c.bf16 %v4002, %v3998
    %v4112 = vpack.c.bf16 %v4003, %v3999
    %v4113 = vpack.c.bf16 %v4004, %v4000
    %v4114 = vpack.c.bf16 %v4005, %v4001
    %v4115 = vlaneseq
    %v4116 = vshrl.u32 %v4115, 7
    %v4117 = vsub.s32 5, %v4116
    %v4118 = vrot.slane %v183, %v4117
    %v4119 = vlaneseq
    %v4120 = vshrl.u32 %v4119, 7
    %v4121 = vsub.s32 5, %v4120
    %v4122 = vrot.slane %v184, %v4121
    %v4123 = vlaneseq
    %v4124 = vshrl.u32 %v4123, 7
    %v4125 = vsub.s32 5, %v4124
    %v4126 = vrot.slane %v185, %v4125
    %v4127 = vlaneseq
    %v4128 = vshrl.u32 %v4127, 7
    %v4129 = vsub.s32 5, %v4128
    %v4130 = vrot.slane %v186, %v4129
    %v4231 = vunpack.c.l.b16 %v4007
    %v4232 = vunpack.c.h.b16 %v4007
    %v4233 = vunpack.c.l.b16 %v4008
    %v4234 = vunpack.c.h.b16 %v4008
    %v4235 = vunpack.c.l.b16 %v4009
    %v4236 = vunpack.c.h.b16 %v4009
    %v4237 = vunpack.c.l.b16 %v4010
    %v4238 = vunpack.c.h.b16 %v4010
    %v4239 = vunpack.c.l.b16 %v4011
    %v4240 = vunpack.c.h.b16 %v4011
    %v4241 = vunpack.c.l.b16 %v4012
    %v4242 = vunpack.c.h.b16 %v4012
    %v4243 = vunpack.c.l.b16 %v4013
    %v4244 = vunpack.c.h.b16 %v4013
    %v4245 = vunpack.c.l.b16 %v4014
    %v4246 = vunpack.c.h.b16 %v4014
    %v4247 = vunpack.c.l.b16 %v4015
    %v4248 = vunpack.c.h.b16 %v4015
    %v4249 = vunpack.c.l.b16 %v4016
    %v4250 = vunpack.c.h.b16 %v4016
    %v4251 = vunpack.c.l.b16 %v4017
    %v4252 = vunpack.c.h.b16 %v4017
    %v4253 = vunpack.c.l.b16 %v4018
    %v4254 = vunpack.c.h.b16 %v4018
    %v4255 = vunpack.c.l.b16 %v4019
    %v4256 = vunpack.c.h.b16 %v4019
    %v4257 = vunpack.c.l.b16 %v4020
    %v4258 = vunpack.c.h.b16 %v4020
    %v4259 = vunpack.c.l.b16 %v4021
    %v4260 = vunpack.c.h.b16 %v4021
    %v4261 = vunpack.c.l.b16 %v4022
    %v4262 = vunpack.c.h.b16 %v4022
    %v4263 = vunpack.c.l.b16 %v4023
    %v4264 = vunpack.c.h.b16 %v4023
    %v4265 = vunpack.c.l.b16 %v4024
    %v4266 = vunpack.c.h.b16 %v4024
    %v4267 = vunpack.c.l.b16 %v4025
    %v4268 = vunpack.c.h.b16 %v4025
    %v4269 = vunpack.c.l.b16 %v4026
    %v4270 = vunpack.c.h.b16 %v4026
    %v4271 = vunpack.c.l.b16 %v4027
    %v4272 = vunpack.c.h.b16 %v4027
    %v4273 = vunpack.c.l.b16 %v4028
    %v4274 = vunpack.c.h.b16 %v4028
    %v4275 = vunpack.c.l.b16 %v4029
    %v4276 = vunpack.c.h.b16 %v4029
    %v4277 = vunpack.c.l.b16 %v4030
    %v4278 = vunpack.c.h.b16 %v4030
    %v4279 = vunpack.c.l.b16 %v4031
    %v4280 = vunpack.c.h.b16 %v4031
    %v4281 = vunpack.c.l.b16 %v4032
    %v4282 = vunpack.c.h.b16 %v4032
    %v4283 = vunpack.c.l.b16 %v4033
    %v4284 = vunpack.c.h.b16 %v4033
    %v4285 = vunpack.c.l.b16 %v4034
    %v4286 = vunpack.c.h.b16 %v4034
    %v4287 = vunpack.c.l.b16 %v4035
    %v4288 = vunpack.c.h.b16 %v4035
    %v4289 = vunpack.c.l.b16 %v4036
    %v4290 = vunpack.c.h.b16 %v4036
    %v4291 = vunpack.c.l.b16 %v4037
    %v4292 = vunpack.c.h.b16 %v4037
    %v4293 = vunpack.c.l.b16 %v4038
    %v4294 = vunpack.c.h.b16 %v4038
    %v4295 = vunpack.c.l.b16 %v4039
    %v4296 = vunpack.c.h.b16 %v4039
    %v4297 = vunpack.c.l.b16 %v4040
    %v4298 = vunpack.c.h.b16 %v4040
    %v4299 = vunpack.c.l.b16 %v4041
    %v4300 = vunpack.c.h.b16 %v4041
    %v4301 = vunpack.c.l.b16 %v4042
    %v4302 = vunpack.c.h.b16 %v4042
    %v4303 = vunpack.c.l.b16 %v4043
    %v4304 = vunpack.c.h.b16 %v4043
    %v4305 = vunpack.c.l.b16 %v4044
    %v4306 = vunpack.c.h.b16 %v4044
    %v4307 = vunpack.c.l.b16 %v4045
    %v4308 = vunpack.c.h.b16 %v4045
    %v4309 = vunpack.c.l.b16 %v4046
    %v4310 = vunpack.c.h.b16 %v4046
    %v4311 = vunpack.c.l.b16 %v4047
    %v4312 = vunpack.c.h.b16 %v4047
    %v4313 = vunpack.c.l.b16 %v4048
    %v4314 = vunpack.c.h.b16 %v4048
    %v4315 = vunpack.c.l.b16 %v4049
    %v4316 = vunpack.c.h.b16 %v4049
    %v4317 = vunpack.c.l.b16 %v4050
    %v4318 = vunpack.c.h.b16 %v4050
    %v4319 = vunpack.c.l.b16 %v4051
    %v4320 = vunpack.c.h.b16 %v4051
    %v4321 = vunpack.c.l.b16 %v4052
    %v4322 = vunpack.c.h.b16 %v4052
    %v4323 = vunpack.c.l.b16 %v4053
    %v4324 = vunpack.c.h.b16 %v4053
    %v4325 = vunpack.c.l.b16 %v4054
    %v4326 = vunpack.c.h.b16 %v4054
    %v4327 = vunpack.c.l.b16 %v4055
    %v4328 = vunpack.c.h.b16 %v4055
    %v4329 = vunpack.c.l.b16 %v4056
    %v4330 = vunpack.c.h.b16 %v4056
    %v4331 = vunpack.c.l.b16 %v4057
    %v4332 = vunpack.c.h.b16 %v4057
    %v4333 = vunpack.c.l.b16 %v4058
    %v4334 = vunpack.c.h.b16 %v4058
    %v4335 = vunpack.c.l.b16 %v4059
    %v4336 = vunpack.c.h.b16 %v4059
    %v4337 = vunpack.c.l.b16 %v4060
    %v4338 = vunpack.c.h.b16 %v4060
    %v4339 = vunpack.c.l.b16 %v4061
    %v4340 = vunpack.c.h.b16 %v4061
    %v4341 = vunpack.c.l.b16 %v4062
    %v4342 = vunpack.c.h.b16 %v4062
    %v4343 = vunpack.c.l.b16 %v4063
    %v4344 = vunpack.c.h.b16 %v4063
    %v4345 = vunpack.c.l.b16 %v4064
    %v4346 = vunpack.c.h.b16 %v4064
    %v4347 = vunpack.c.l.b16 %v4065
    %v4348 = vunpack.c.h.b16 %v4065
    %v4349 = vunpack.c.l.b16 %v4066
    %v4350 = vunpack.c.h.b16 %v4066
    %v4351 = vunpack.c.l.b16 %v4067
    %v4352 = vunpack.c.h.b16 %v4067
    %v4353 = vunpack.c.l.b16 %v4068
    %v4354 = vunpack.c.h.b16 %v4068
    %v4355 = vunpack.c.l.b16 %v4069
    %v4356 = vunpack.c.h.b16 %v4069
    %v4357 = vunpack.c.l.b16 %v4070
    %v4358 = vunpack.c.h.b16 %v4070
    %v4359 = vunpack.c.l.b16 %v4071
    %v4360 = vunpack.c.h.b16 %v4071
    %v4361 = vunpack.c.l.b16 %v4072
    %v4362 = vunpack.c.h.b16 %v4072
    %v4363 = vunpack.c.l.b16 %v4073
    %v4364 = vunpack.c.h.b16 %v4073
    %v4365 = vunpack.c.l.b16 %v4074
    %v4366 = vunpack.c.h.b16 %v4074
    %v4367 = vunpack.c.l.b16 %v4075
    %v4368 = vunpack.c.h.b16 %v4075
    %v4369 = vunpack.c.l.b16 %v4076
    %v4370 = vunpack.c.h.b16 %v4076
    %v4371 = vunpack.c.l.b16 %v4077
    %v4372 = vunpack.c.h.b16 %v4077
    %v4373 = vunpack.c.l.b16 %v4078
    %v4374 = vunpack.c.h.b16 %v4078
    %v4375 = vunpack.c.l.b16 %v4079
    %v4376 = vunpack.c.h.b16 %v4079
    %v4377 = vunpack.c.l.b16 %v4080
    %v4378 = vunpack.c.h.b16 %v4080
    %v4379 = vunpack.c.l.b16 %v4081
    %v4380 = vunpack.c.h.b16 %v4081
    %v4381 = vunpack.c.l.b16 %v4082
    %v4382 = vunpack.c.h.b16 %v4082
    %v4383 = vunpack.c.l.b16 %v4083
    %v4384 = vunpack.c.h.b16 %v4083
    %v4385 = vunpack.c.l.b16 %v4084
    %v4386 = vunpack.c.h.b16 %v4084
    %v4387 = vunpack.c.l.b16 %v4085
    %v4388 = vunpack.c.h.b16 %v4085
    %v4389 = vunpack.c.l.b16 %v4086
    %v4390 = vunpack.c.h.b16 %v4086
    %v4391 = vunpack.c.l.b16 %v4087
    %v4392 = vunpack.c.h.b16 %v4087
    %v4393 = vunpack.c.l.b16 %v4088
    %v4394 = vunpack.c.h.b16 %v4088
    %v4395 = vunpack.c.l.b16 %v4089
    %v4396 = vunpack.c.h.b16 %v4089
    %v4397 = vunpack.c.l.b16 %v4090
    %v4398 = vunpack.c.h.b16 %v4090
    %v4399 = vunpack.c.l.b16 %v4091
    %v4400 = vunpack.c.h.b16 %v4091
    %v4401 = vunpack.c.l.b16 %v4092
    %v4402 = vunpack.c.h.b16 %v4092
    %v4403 = vunpack.c.l.b16 %v4093
    %v4404 = vunpack.c.h.b16 %v4093
    %v4405 = vunpack.c.l.b16 %v4094
    %v4406 = vunpack.c.h.b16 %v4094
    %v4407 = vunpack.c.l.b16 %v4095
    %v4408 = vunpack.c.h.b16 %v4095
    %v4409 = vunpack.c.l.b16 %v4096
    %v4410 = vunpack.c.h.b16 %v4096
    %v4411 = vunpack.c.l.b16 %v4097
    %v4412 = vunpack.c.h.b16 %v4097
    %v4413 = vunpack.c.l.b16 %v4098
    %v4414 = vunpack.c.h.b16 %v4098
    %v4415 = vunpack.c.l.b16 %v4099
    %v4416 = vunpack.c.h.b16 %v4099
    %v4417 = vunpack.c.l.b16 %v4100
    %v4418 = vunpack.c.h.b16 %v4100
    %v4419 = vunpack.c.l.b16 %v4101
    %v4420 = vunpack.c.h.b16 %v4101
    %v4421 = vunpack.c.l.b16 %v4102
    %v4422 = vunpack.c.h.b16 %v4102
    %v4423 = vunpack.c.l.b16 %v4103
    %v4424 = vunpack.c.h.b16 %v4103
    %v4425 = vunpack.c.l.b16 %v4104
    %v4426 = vunpack.c.h.b16 %v4104
    %v4427 = vunpack.c.l.b16 %v4105
    %v4428 = vunpack.c.h.b16 %v4105
    %v4429 = vunpack.c.l.b16 %v4106
    %v4430 = vunpack.c.h.b16 %v4106
    %v4431 = vpack.c.b16 %v4235, %v4231
    %v4432 = vpack.c.b16 %v4236, %v4232
    %v4433 = vpack.c.b16 %v4237, %v4233
    %v4434 = vpack.c.b16 %v4238, %v4234
    %v4435 = vpack.c.b16 %v4243, %v4239
    %v4436 = vpack.c.b16 %v4244, %v4240
    %v4437 = vpack.c.b16 %v4245, %v4241
    %v4438 = vpack.c.b16 %v4246, %v4242
    %v4439 = vpack.c.b16 %v4251, %v4247
    %v4440 = vpack.c.b16 %v4252, %v4248
    %v4441 = vpack.c.b16 %v4253, %v4249
    %v4442 = vpack.c.b16 %v4254, %v4250
    %v4443 = vpack.c.b16 %v4259, %v4255
    %v4444 = vpack.c.b16 %v4260, %v4256
    %v4445 = vpack.c.b16 %v4261, %v4257
    %v4446 = vpack.c.b16 %v4262, %v4258
    %v4447 = vpack.c.b16 %v4267, %v4263
    %v4448 = vpack.c.b16 %v4268, %v4264
    %v4449 = vpack.c.b16 %v4269, %v4265
    %v4450 = vpack.c.b16 %v4270, %v4266
    %v4451 = vpack.c.b16 %v4275, %v4271
    %v4452 = vpack.c.b16 %v4276, %v4272
    %v4453 = vpack.c.b16 %v4277, %v4273
    %v4454 = vpack.c.b16 %v4278, %v4274
    %v4455 = vpack.c.b16 %v4283, %v4279
    %v4456 = vpack.c.b16 %v4284, %v4280
    %v4457 = vpack.c.b16 %v4285, %v4281
    %v4458 = vpack.c.b16 %v4286, %v4282
    %v4459 = vpack.c.b16 %v4291, %v4287
    %v4460 = vpack.c.b16 %v4292, %v4288
    %v4461 = vpack.c.b16 %v4293, %v4289
    %v4462 = vpack.c.b16 %v4294, %v4290
    %v4463 = vpack.c.b16 %v4299, %v4295
    %v4464 = vpack.c.b16 %v4300, %v4296
    %v4465 = vpack.c.b16 %v4301, %v4297
    %v4466 = vpack.c.b16 %v4302, %v4298
    %v4467 = vpack.c.b16 %v4307, %v4303
    %v4468 = vpack.c.b16 %v4308, %v4304
    %v4469 = vpack.c.b16 %v4309, %v4305
    %v4470 = vpack.c.b16 %v4310, %v4306
    %v4471 = vpack.c.b16 %v4315, %v4311
    %v4472 = vpack.c.b16 %v4316, %v4312
    %v4473 = vpack.c.b16 %v4317, %v4313
    %v4474 = vpack.c.b16 %v4318, %v4314
    %v4475 = vpack.c.b16 %v4323, %v4319
    %v4476 = vpack.c.b16 %v4324, %v4320
    %v4477 = vpack.c.b16 %v4325, %v4321
    %v4478 = vpack.c.b16 %v4326, %v4322
    %v4479 = vpack.c.b16 %v4331, %v4327
    %v4480 = vpack.c.b16 %v4332, %v4328
    %v4481 = vpack.c.b16 %v4333, %v4329
    %v4482 = vpack.c.b16 %v4334, %v4330
    %v4483 = vpack.c.b16 %v4339, %v4335
    %v4484 = vpack.c.b16 %v4340, %v4336
    %v4485 = vpack.c.b16 %v4341, %v4337
    %v4486 = vpack.c.b16 %v4342, %v4338
    %v4487 = vpack.c.b16 %v4347, %v4343
    %v4488 = vpack.c.b16 %v4348, %v4344
    %v4489 = vpack.c.b16 %v4349, %v4345
    %v4490 = vpack.c.b16 %v4350, %v4346
    %v4491 = vpack.c.b16 %v4355, %v4351
    %v4492 = vpack.c.b16 %v4356, %v4352
    %v4493 = vpack.c.b16 %v4357, %v4353
    %v4494 = vpack.c.b16 %v4358, %v4354
    %v4495 = vpack.c.b16 %v4363, %v4359
    %v4496 = vpack.c.b16 %v4364, %v4360
    %v4497 = vpack.c.b16 %v4365, %v4361
    %v4498 = vpack.c.b16 %v4366, %v4362
    %v4499 = vpack.c.b16 %v4371, %v4367
    %v4500 = vpack.c.b16 %v4372, %v4368
    %v4501 = vpack.c.b16 %v4373, %v4369
    %v4502 = vpack.c.b16 %v4374, %v4370
    %v4503 = vpack.c.b16 %v4379, %v4375
    %v4504 = vpack.c.b16 %v4380, %v4376
    %v4505 = vpack.c.b16 %v4381, %v4377
    %v4506 = vpack.c.b16 %v4382, %v4378
    %v4507 = vpack.c.b16 %v4387, %v4383
    %v4508 = vpack.c.b16 %v4388, %v4384
    %v4509 = vpack.c.b16 %v4389, %v4385
    %v4510 = vpack.c.b16 %v4390, %v4386
    %v4511 = vpack.c.b16 %v4395, %v4391
    %v4512 = vpack.c.b16 %v4396, %v4392
    %v4513 = vpack.c.b16 %v4397, %v4393
    %v4514 = vpack.c.b16 %v4398, %v4394
    %v4515 = vpack.c.b16 %v4403, %v4399
    %v4516 = vpack.c.b16 %v4404, %v4400
    %v4517 = vpack.c.b16 %v4405, %v4401
    %v4518 = vpack.c.b16 %v4406, %v4402
    %v4519 = vpack.c.b16 %v4411, %v4407
    %v4520 = vpack.c.b16 %v4412, %v4408
    %v4521 = vpack.c.b16 %v4413, %v4409
    %v4522 = vpack.c.b16 %v4414, %v4410
    %v4523 = vpack.c.b16 %v4419, %v4415
    %v4524 = vpack.c.b16 %v4420, %v4416
    %v4525 = vpack.c.b16 %v4421, %v4417
    %v4526 = vpack.c.b16 %v4422, %v4418
    %v4527 = vpack.c.b16 %v4427, %v4423
    %v4528 = vpack.c.b16 %v4428, %v4424
    %v4529 = vpack.c.b16 %v4429, %v4425
    %v4530 = vpack.c.b16 %v4430, %v4426
    %v4632 = vsel %vm1089, %v4110, 0
    %v4635 = vsel %vm1089, %v4114, 0
    %4637 = vmatprep.subr.bf16.mxu0 %v4432
    %4638 = vmatpush1.bf16.msra.mxu0 %v4431
    %4639 = vmatprep.subr.bf16.mxu0 %v4436
    %4640 = vmatpush1.bf16.msra.mxu0 %v4435
    %4641 = vmatprep.subr.bf16.mxu0 %v4440
    %4642 = vmatpush1.bf16.msra.mxu0 %v4439
    %4643 = vmatprep.subr.bf16.mxu0 %v4444
    %4644 = vmatpush1.bf16.msra.mxu0 %v4443
    %4645 = vmatprep.subr.bf16.mxu0 %v4448
    %4646 = vmatpush1.bf16.msra.mxu0 %v4447
    %4647 = vmatprep.subr.bf16.mxu0 %v4452
    %4648 = vmatpush1.bf16.msra.mxu0 %v4451
    %4649 = vmatprep.subr.bf16.mxu0 %v4456
    %4650 = vmatpush1.bf16.msra.mxu0 %v4455
    %4651 = vmatprep.subr.bf16.mxu0 %v4460
    %4652 = vmatpush1.bf16.msra.mxu0 %v4459
    %4653 = vmatprep.subr.bf16.mxu0 %v4464
    %4654 = vmatpush1.bf16.msra.mxu0 %v4463
    %4655 = vmatprep.subr.bf16.mxu0 %v4468
    %4656 = vmatpush1.bf16.msra.mxu0 %v4467
    %4657 = vmatprep.subr.bf16.mxu0 %v4472
    %4658 = vmatpush1.bf16.msra.mxu0 %v4471
    %4659 = vmatprep.subr.bf16.mxu0 %v4476
    %4660 = vmatpush1.bf16.msra.mxu0 %v4475
    %4661 = vmatprep.subr.bf16.mxu0 %v4480
    %4662 = vmatpush1.bf16.msra.mxu0 %v4479
    %4663 = vmatprep.subr.bf16.mxu0 %v4484
    %4664 = vmatpush1.bf16.msra.mxu0 %v4483
    %4665 = vmatprep.subr.bf16.mxu0 %v4488
    %4666 = vmatpush1.bf16.msra.mxu0 %v4487
    %4667 = vmatprep.subr.bf16.mxu0 %v4492
    %4668 = vmatpush1.bf16.msra.mxu0 %v4491
    %4669 = vmatprep.mubr.bf16.mxu0 %v4108
    %4670 = vmatmul.mubr.bf16.gmra.mrb[0].mxu0 %v4107
    %v4671 = vpop.f32.mrb[0].mxu0
    %v4672 = vadd.f32 %v4118, %v4671
    %v4673 = vpop.f32.mrb[0].mxu0
    %v4674 = vadd.f32 %v4122, %v4673
    %v4675 = vpop.f32.mrb[0].mxu0
    %v4676 = vadd.f32 %v4118, %v4675
    %v4677 = vpop.f32.mrb[0].mxu0
    %v4678 = vadd.f32 %v4122, %v4677
    %4679 = vmatprep.mubr.bf16.mxu0 %v4112
    %4680 = vmatmul.mubr.bf16.gmra.mrb[0].mxu0 %v4111
    %v4681 = vpop.f32.mrb[0].mxu0
    %v4682 = vadd.f32 %v4118, %v4681
    %v4683 = vpop.f32.mrb[0].mxu0
    %v4684 = vadd.f32 %v4122, %v4683
    %v4685 = vpop.f32.mrb[0].mxu0
    %v4686 = vadd.f32 %v4118, %v4685
    %v4687 = vpop.f32.mrb[0].mxu0
    %v4688 = vadd.f32 %v4122, %v4687
    %4689 = vdwg.mxu0
    %4690 = vmatprep.subr.bf16.mxu0 %v4496
    %4691 = vmatpush1.bf16.msra.mxu0 %v4495
    %4692 = vmatprep.subr.bf16.mxu0 %v4500
    %4693 = vmatpush1.bf16.msra.mxu0 %v4499
    %4694 = vmatprep.subr.bf16.mxu0 %v4504
    %4695 = vmatpush1.bf16.msra.mxu0 %v4503
    %4696 = vmatprep.subr.bf16.mxu0 %v4508
    %4697 = vmatpush1.bf16.msra.mxu0 %v4507
    %4698 = vmatprep.subr.bf16.mxu0 %v4512
    %4699 = vmatpush1.bf16.msra.mxu0 %v4511
    %4700 = vmatprep.subr.bf16.mxu0 %v4516
    %4701 = vmatpush1.bf16.msra.mxu0 %v4515
    %4702 = vmatprep.subr.bf16.mxu0 %v4520
    %4703 = vmatpush1.bf16.msra.mxu0 %v4519
    %4704 = vmatprep.subr.bf16.mxu0 %v4524
    %4705 = vmatpush1.bf16.msra.mxu0 %v4523
    %4706 = vmatprep.subr.bf16.mxu0 %v4528
    %4707 = vmatpush1.bf16.msra.mxu0 %v4527
    %4708 = vmatprep.subr.bf16.mxu0 0
    %4709 = vmatpush1.bf16.msra.mxu0 0
    %4710 = vmatprep.subr.bf16.mxu0 0
    %4711 = vmatpush1.bf16.msra.mxu0 0
    %4712 = vmatprep.subr.bf16.mxu0 0
    %4713 = vmatpush1.bf16.msra.mxu0 0
    %4714 = vmatprep.subr.bf16.mxu0 0
    %4715 = vmatpush1.bf16.msra.mxu0 0
    %4716 = vmatprep.subr.bf16.mxu0 0
    %4717 = vmatpush1.bf16.msra.mxu0 0
    %4718 = vmatprep.subr.bf16.mxu0 0
    %4719 = vmatpush1.bf16.msra.mxu0 0
    %4720 = vmatprep.subr.bf16.mxu0 0
    %4721 = vmatpush1.bf16.msra.mxu0 0
    %4722 = vmatprep.mubr.bf16.mxu0 %v4632
    %4723 = vmatmul.mubr.bf16.gmra.mrb[0].mxu0 %v4109
    %v4724 = vpop.f32.mrb[0].mxu0
    %v4725 = vadd.f32 %v4672, %v4724
    %v4726 = vpop.f32.mrb[0].mxu0
    %v4727 = vadd.f32 %v4674, %v4726
    %v4728 = vpop.f32.mrb[0].mxu0
    %v4729 = vadd.f32 %v4676, %v4728
    %v4730 = vpop.f32.mrb[0].mxu0
    %v4731 = vadd.f32 %v4678, %v4730
    %4732 = vmatprep.mubr.bf16.mxu0 %v4635
    %4733 = vmatmul.mubr.bf16.gmra.mrb[0].mxu0 %v4113
    %v4734 = vpop.f32.mrb[0].mxu0
    %v4735 = vadd.f32 %v4682, %v4734
    %v4736 = vpop.f32.mrb[0].mxu0
    %v4737 = vadd.f32 %v4684, %v4736
    %v4738 = vpop.f32.mrb[0].mxu0
    %v4739 = vadd.f32 %v4686, %v4738
    %v4740 = vpop.f32.mrb[0].mxu0
    %v4741 = vadd.f32 %v4688, %v4740
    %4742 = vdwg.mxu0
    %4743 = vmatprep.subr.bf16.mxu0 %v4434
    %4744 = vmatpush1.bf16.msra.mxu0 %v4433
    %4745 = vmatprep.subr.bf16.mxu0 %v4438
    %4746 = vmatpush1.bf16.msra.mxu0 %v4437
    %4747 = vmatprep.subr.bf16.mxu0 %v4442
    %4748 = vmatpush1.bf16.msra.mxu0 %v4441
    %4749 = vmatprep.subr.bf16.mxu0 %v4446
    %4750 = vmatpush1.bf16.msra.mxu0 %v4445
    %4751 = vmatprep.subr.bf16.mxu0 %v4450
    %4752 = vmatpush1.bf16.msra.mxu0 %v4449
    %4753 = vmatprep.subr.bf16.mxu0 %v4454
    %4754 = vmatpush1.bf16.msra.mxu0 %v4453
    %4755 = vmatprep.subr.bf16.mxu0 %v4458
    %4756 = vmatpush1.bf16.msra.mxu0 %v4457
    %4757 = vmatprep.subr.bf16.mxu0 %v4462
    %4758 = vmatpush1.bf16.msra.mxu0 %v4461
    %4759 = vmatprep.subr.bf16.mxu0 %v4466
    %4760 = vmatpush1.bf16.msra.mxu0 %v4465
    %4761 = vmatprep.subr.bf16.mxu0 %v4470
    %4762 = vmatpush1.bf16.msra.mxu0 %v4469
    %4763 = vmatprep.subr.bf16.mxu0 %v4474
    %4764 = vmatpush1.bf16.msra.mxu0 %v4473
    %4765 = vmatprep.subr.bf16.mxu0 %v4478
    %4766 = vmatpush1.bf16.msra.mxu0 %v4477
    %4767 = vmatprep.subr.bf16.mxu0 %v4482
    %4768 = vmatpush1.bf16.msra.mxu0 %v4481
    %4769 = vmatprep.subr.bf16.mxu0 %v4486
    %4770 = vmatpush1.bf16.msra.mxu0 %v4485
    %4771 = vmatprep.subr.bf16.mxu0 %v4490
    %4772 = vmatpush1.bf16.msra.mxu0 %v4489
    %4773 = vmatprep.subr.bf16.mxu0 %v4494
    %4774 = vmatpush1.bf16.msra.mxu0 %v4493
    %4775 = vmatprep.mubr.bf16.mxu0 %v4108
    %4776 = vmatmul.mubr.bf16.gmra.mrb[0].mxu0 %v4107
    %v4777 = vpop.f32.mrb[0].mxu0
    %v4778 = vadd.f32 %v4126, %v4777
    %v4779 = vpop.f32.mrb[0].mxu0
    %v4780 = vadd.f32 %v4130, %v4779
    %v4781 = vpop.f32.mrb[0].mxu0
    %v4782 = vadd.f32 %v4126, %v4781
    %v4783 = vpop.f32.mrb[0].mxu0
    %v4784 = vadd.f32 %v4130, %v4783
    %4785 = vmatprep.mubr.bf16.mxu0 %v4112
    %4786 = vmatmul.mubr.bf16.gmra.mrb[0].mxu0 %v4111
    %v4787 = vpop.f32.mrb[0].mxu0
    %v4788 = vadd.f32 %v4126, %v4787
    %v4789 = vpop.f32.mrb[0].mxu0
    %v4790 = vadd.f32 %v4130, %v4789
    %v4791 = vpop.f32.mrb[0].mxu0
    %v4792 = vadd.f32 %v4126, %v4791
    %v4793 = vpop.f32.mrb[0].mxu0
    %v4794 = vadd.f32 %v4130, %v4793
    %4795 = vdwg.mxu0
    %4796 = vmatprep.subr.bf16.mxu0 %v4498
    %4797 = vmatpush1.bf16.msra.mxu0 %v4497
    %4798 = vmatprep.subr.bf16.mxu0 %v4502
    %4799 = vmatpush1.bf16.msra.mxu0 %v4501
    %4800 = vmatprep.subr.bf16.mxu0 %v4506
    %4801 = vmatpush1.bf16.msra.mxu0 %v4505
    %4802 = vmatprep.subr.bf16.mxu0 %v4510
    %4803 = vmatpush1.bf16.msra.mxu0 %v4509
    %4804 = vmatprep.subr.bf16.mxu0 %v4514
    %4805 = vmatpush1.bf16.msra.mxu0 %v4513
    %4806 = vmatprep.subr.bf16.mxu0 %v4518
    %4807 = vmatpush1.bf16.msra.mxu0 %v4517
    %4808 = vmatprep.subr.bf16.mxu0 %v4522
    %4809 = vmatpush1.bf16.msra.mxu0 %v4521
    %4810 = vmatprep.subr.bf16.mxu0 %v4526
    %4811 = vmatpush1.bf16.msra.mxu0 %v4525
    %4812 = vmatprep.subr.bf16.mxu0 %v4530
    %4813 = vmatpush1.bf16.msra.mxu0 %v4529
    %4814 = vmatprep.subr.bf16.mxu0 0
    %4815 = vmatpush1.bf16.msra.mxu0 0
    %4816 = vmatprep.subr.bf16.mxu0 0
    %4817 = vmatpush1.bf16.msra.mxu0 0
    %4818 = vmatprep.subr.bf16.mxu0 0
    %4819 = vmatpush1.bf16.msra.mxu0 0
    %4820 = vmatprep.subr.bf16.mxu0 0
    %4821 = vmatpush1.bf16.msra.mxu0 0
    %4822 = vmatprep.subr.bf16.mxu0 0
    %4823 = vmatpush1.bf16.msra.mxu0 0
    %4824 = vmatprep.subr.bf16.mxu0 0
    %4825 = vmatpush1.bf16.msra.mxu0 0
    %4826 = vmatprep.subr.bf16.mxu0 0
    %4827 = vmatpush1.bf16.msra.mxu0 0
    %4828 = vmatprep.mubr.bf16.mxu0 %v4632
    %4829 = vmatmul.mubr.bf16.gmra.mrb[0].mxu0 %v4109
    %v4830 = vpop.f32.mrb[0].mxu0
    %v4831 = vadd.f32 %v4778, %v4830
    %v4832 = vpop.f32.mrb[0].mxu0
    %v4833 = vadd.f32 %v4780, %v4832
    %v4834 = vpop.f32.mrb[0].mxu0
    %v4835 = vadd.f32 %v4782, %v4834
    %v4836 = vpop.f32.mrb[0].mxu0
    %v4837 = vadd.f32 %v4784, %v4836
    %4838 = vmatprep.mubr.bf16.mxu0 %v4635
    %4839 = vmatmul.mubr.bf16.gmra.mrb[0].mxu0 %v4113
    %v4840 = vpop.f32.mrb[0].mxu0
    %v4841 = vadd.f32 %v4788, %v4840
    %v4842 = vpop.f32.mrb[0].mxu0
    %v4843 = vadd.f32 %v4790, %v4842
    %v4844 = vpop.f32.mrb[0].mxu0
    %v4845 = vadd.f32 %v4792, %v4844
    %v4846 = vpop.f32.mrb[0].mxu0
    %v4847 = vadd.f32 %v4794, %v4846
    %4848 = vdwg.mxu0
    %v4849 = vmax.f32 %v4725, 0.0
    %v4850 = vmax.f32 %v4727, 0.0
    %v4851 = vmax.f32 %v4831, 0.0
    %v4852 = vmax.f32 %v4833, 0.0
    %v4853 = vmax.f32 %v4729, 0.0
    %v4854 = vmax.f32 %v4731, 0.0
    %v4855 = vmax.f32 %v4835, 0.0
    %v4856 = vmax.f32 %v4837, 0.0
    %v4857 = vmax.f32 %v4735, 0.0
    %v4858 = vmax.f32 %v4737, 0.0
    %v4859 = vmax.f32 %v4841, 0.0
    %v4860 = vmax.f32 %v4843, 0.0
    %v4861 = vmax.f32 %v4739, 0.0
    %v4862 = vmax.f32 %v4741, 0.0
    %v4863 = vmax.f32 %v4845, 0.0
    %v4864 = vmax.f32 %v4847, 0.0
    %s4865 = scalar_lea.vmem [#allocation11], 3200
    %v4866 = vld [vmem:[%s4865] sm:$0xff]
    %v4867 = vld [vmem:[%s4865 + $0x8] sm:$0xff]
    %v4868 = vld [vmem:[%s4865 + $0x10] sm:$0xff]
    %v4869 = vld [vmem:[%s4865 + $0x18] sm:$0xff]
    %v4870 = vld [vmem:[%s4865 + $0x20] sm:$0xff]
    %v4871 = vld [vmem:[%s4865 + $0x28] sm:$0xff]
    %v4872 = vld [vmem:[%s4865 + $0x30] sm:$0xff]
    %v4873 = vld [vmem:[%s4865 + $0x38] sm:$0xff]
    %v4874 = vld [vmem:[%s4865 + $0x40] sm:$0xff]
    %v4875 = vld [vmem:[%s4865 + $0x48] sm:$0xff]
    %v4876 = vld [vmem:[%s4865 + $0x50] sm:$0xff]
    %v4877 = vld [vmem:[%s4865 + $0x58] sm:$0xff]
    %v4878 = vld [vmem:[%s4865 + $0x60] sm:$0xff]
    %v4879 = vld [vmem:[%s4865 + $0x68] sm:$0xff]
    %v4880 = vld [vmem:[%s4865 + $0x70] sm:$0xff]
    %v4881 = vld [vmem:[%s4865 + $0x78] sm:$0xff]
    %v4882 = vld [vmem:[%s4865 + $0x80] sm:$0xff]
    %v4883 = vld [vmem:[%s4865 + $0x88] sm:$0xff]
    %v4884 = vld [vmem:[%s4865 + $0x90] sm:$0xff]
    %v4885 = vld [vmem:[%s4865 + $0x98] sm:$0xff]
    %v4886 = vld [vmem:[%s4865 + $0xa0] sm:$0xff]
    %v4887 = vld [vmem:[%s4865 + $0xa8] sm:$0xff]
    %v4888 = vld [vmem:[%s4865 + $0xb0] sm:$0xff]
    %v4889 = vld [vmem:[%s4865 + $0xb8] sm:$0xff]
    %v4890 = vld [vmem:[%s4865 + $0xc0] sm:$0xff]
    %v4891 = vld [vmem:[%s4865 + $0xc8] sm:$0xff]
    %v4892 = vld [vmem:[%s4865 + $0xd0] sm:$0xff]
    %v4893 = vld [vmem:[%s4865 + $0xd8] sm:$0xff]
    %v4894 = vld [vmem:[%s4865 + $0xe0] sm:$0xff]
    %v4895 = vld [vmem:[%s4865 + $0xe8] sm:$0xff]
    %v4896 = vld [vmem:[%s4865 + $0xf0] sm:$0xff]
    %v4897 = vld [vmem:[%s4865 + $0xf8] sm:$0xff]
    %v4898 = vld [vmem:[%s4865 + $0x100] sm:$0xff]
    %v4899 = vld [vmem:[%s4865 + $0x108] sm:$0xff]
    %v4900 = vld [vmem:[%s4865 + $0x110] sm:$0xff]
    %v4901 = vld [vmem:[%s4865 + $0x118] sm:$0xff]
    %v4902 = vld [vmem:[%s4865 + $0x120] sm:$0xff]
    %v4903 = vld [vmem:[%s4865 + $0x128] sm:$0xff]
    %v4904 = vld [vmem:[%s4865 + $0x130] sm:$0xff]
    %v4905 = vld [vmem:[%s4865 + $0x138] sm:$0xff]
    %v4906 = vld [vmem:[%s4865 + $0x140] sm:$0xff]
    %v4907 = vld [vmem:[%s4865 + $0x148] sm:$0xff]
    %v4908 = vld [vmem:[%s4865 + $0x150] sm:$0xff]
    %v4909 = vld [vmem:[%s4865 + $0x158] sm:$0xff]
    %v4910 = vld [vmem:[%s4865 + $0x160] sm:$0xff]
    %v4911 = vld [vmem:[%s4865 + $0x168] sm:$0xff]
    %v4912 = vld [vmem:[%s4865 + $0x170] sm:$0xff]
    %v4913 = vld [vmem:[%s4865 + $0x178] sm:$0xff]
    %v4914 = vld [vmem:[%s4865 + $0x180] sm:$0xff]
    %v4915 = vld [vmem:[%s4865 + $0x188] sm:$0xff]
    %v4916 = vld [vmem:[%s4865 + $0x190] sm:$0xff]
    %v4917 = vld [vmem:[%s4865 + $0x198] sm:$0xff]
    %v4918 = vld [vmem:[%s4865 + $0x1a0] sm:$0xff]
    %v4919 = vld [vmem:[%s4865 + $0x1a8] sm:$0xff]
    %v4920 = vld [vmem:[%s4865 + $0x1b0] sm:$0xff]
    %v4921 = vld [vmem:[%s4865 + $0x1b8] sm:$0xff]
    %v4922 = vld [vmem:[%s4865 + $0x1c0] sm:$0xff]
    %v4923 = vld [vmem:[%s4865 + $0x1c8] sm:$0xff]
    %v4924 = vld [vmem:[%s4865 + $0x1d0] sm:$0xff]
    %v4925 = vld [vmem:[%s4865 + $0x1d8] sm:$0xff]
    %v4926 = vld [vmem:[%s4865 + $0x1e0] sm:$0xff]
    %v4927 = vld [vmem:[%s4865 + $0x1e8] sm:$0xff]
    %v4928 = vld [vmem:[%s4865 + $0x1f0] sm:$0xff]
    %v4929 = vld [vmem:[%s4865 + $0x1f8] sm:$0xff]
    %v4930 = vld [vmem:[%s4865 + $0x200] sm:$0xff]
    %v4931 = vld [vmem:[%s4865 + $0x208] sm:$0xff]
    %v4932 = vld [vmem:[%s4865 + $0x210] sm:$0xff]
    %v4933 = vld [vmem:[%s4865 + $0x218] sm:$0xff]
    %v4934 = vld [vmem:[%s4865 + $0x220] sm:$0xff]
    %v4935 = vld [vmem:[%s4865 + $0x228] sm:$0xff]
    %v4936 = vld [vmem:[%s4865 + $0x230] sm:$0xff]
    %v4937 = vld [vmem:[%s4865 + $0x238] sm:$0xff]
    %v4938 = vld [vmem:[%s4865 + $0x240] sm:$0xff]
    %v4939 = vld [vmem:[%s4865 + $0x248] sm:$0xff]
    %v4940 = vld [vmem:[%s4865 + $0x250] sm:$0xff]
    %v4941 = vld [vmem:[%s4865 + $0x258] sm:$0xff]
    %v4942 = vld [vmem:[%s4865 + $0x260] sm:$0xff]
    %v4943 = vld [vmem:[%s4865 + $0x268] sm:$0xff]
    %v4944 = vld [vmem:[%s4865 + $0x270] sm:$0xff]
    %v4945 = vld [vmem:[%s4865 + $0x278] sm:$0xff]
    %v4946 = vld [vmem:[%s4865 + $0x280] sm:$0xff]
    %v4947 = vld [vmem:[%s4865 + $0x288] sm:$0xff]
    %v4948 = vld [vmem:[%s4865 + $0x290] sm:$0xff]
    %v4949 = vld [vmem:[%s4865 + $0x298] sm:$0xff]
    %v4950 = vld [vmem:[%s4865 + $0x2a0] sm:$0xff]
    %v4951 = vld [vmem:[%s4865 + $0x2a8] sm:$0xff]
    %v4952 = vld [vmem:[%s4865 + $0x2b0] sm:$0xff]
    %v4953 = vld [vmem:[%s4865 + $0x2b8] sm:$0xff]
    %v4954 = vld [vmem:[%s4865 + $0x2c0] sm:$0xff]
    %v4955 = vld [vmem:[%s4865 + $0x2c8] sm:$0xff]
    %v4956 = vld [vmem:[%s4865 + $0x2d0] sm:$0xff]
    %v4957 = vld [vmem:[%s4865 + $0x2d8] sm:$0xff]
    %v4958 = vld [vmem:[%s4865 + $0x2e0] sm:$0xff]
    %v4959 = vld [vmem:[%s4865 + $0x2e8] sm:$0xff]
    %v4960 = vld [vmem:[%s4865 + $0x2f0] sm:$0xff]
    %v4961 = vld [vmem:[%s4865 + $0x2f8] sm:$0xff]
    %v4962 = vld [vmem:[%s4865 + $0x300] sm:$0xff]
    %v4963 = vld [vmem:[%s4865 + $0x308] sm:$0xff]
    %v4964 = vld [vmem:[%s4865 + $0x310] sm:$0xff]
    %v4965 = vld [vmem:[%s4865 + $0x318] sm:$0xff]
    %v4966 = vpack.c.bf16 %v3135, %v3131
    %v4967 = vpack.c.bf16 %v3136, %v3132
    %v4968 = vpack.c.bf16 %v3137, %v3133
    %v4969 = vpack.c.bf16 %v3138, %v3134
    %v4970 = vpack.c.bf16 %v3143, %v3139
    %v4971 = vpack.c.bf16 %v3144, %v3140
    %v4972 = vpack.c.bf16 %v3145, %v3141
    %v4973 = vpack.c.bf16 %v3146, %v3142
    %v4974 = vlaneseq
    %v4975 = vshrl.u32 %v4974, 7
    %v4976 = vsub.s32 7, %v4975
    %v4977 = vrot.slane %v183, %v4976
    %v4978 = vlaneseq
    %v4979 = vshrl.u32 %v4978, 7
    %v4980 = vsub.s32 7, %v4979
    %v4981 = vrot.slane %v184, %v4980
    %v4982 = vlaneseq
    %v4983 = vshrl.u32 %v4982, 7
    %v4984 = vsub.s32 7, %v4983
    %v4985 = vrot.slane %v185, %v4984
    %v4986 = vlaneseq
    %v4987 = vshrl.u32 %v4986, 7
    %v4988 = vsub.s32 7, %v4987
    %v4989 = vrot.slane %v186, %v4988
    %4998 = vrot.lane.b32.xlu0 %v4966, 112
    %v4999 = vpop.permute.xlu0 %4998
    %5000 = vrot.lane.b32.xlu0 %v4967, 112
    %v5001 = vpop.permute.xlu0 %5000
    %5002 = vrot.lane.b32.xlu0 %v4968, 112
    %v5003 = vpop.permute.xlu0 %5002
    %5004 = vrot.lane.b32.xlu0 %v4969, 112
    %v5005 = vpop.permute.xlu0 %5004
    %5006 = vrot.lane.b32.xlu0 %v4970, 112
    %v5007 = vpop.permute.xlu0 %5006
    %5008 = vrot.lane.b32.xlu0 %v4971, 112
    %v5009 = vpop.permute.xlu0 %5008
    %5010 = vrot.lane.b32.xlu0 %v4972, 112
    %v5011 = vpop.permute.xlu0 %5010
    %5012 = vrot.lane.b32.xlu0 %v4973, 112
    %v5013 = vpop.permute.xlu0 %5012
    %vm5014 = vcmask 916480
    %v5015 = vsel %vm5014, %v4999, %v5001
    %v5016 = vsel %vm5014, %v5001, %v5003
    %v5017 = vsel %vm5014, %v5003, %v5005
    %v5018 = vsel %vm5014, %v5007, %v5009
    %v5019 = vsel %vm5014, %v5009, %v5011
    %v5020 = vsel %vm5014, %v5011, %v5013
    %v5127 = vunpack.c.l.b16 %v4866
    %v5128 = vunpack.c.h.b16 %v4866
    %v5129 = vunpack.c.l.b16 %v4867
    %v5130 = vunpack.c.h.b16 %v4867
    %v5131 = vunpack.c.l.b16 %v4868
    %v5132 = vunpack.c.h.b16 %v4868
    %v5133 = vunpack.c.l.b16 %v4869
    %v5134 = vunpack.c.h.b16 %v4869
    %v5135 = vunpack.c.l.b16 %v4870
    %v5136 = vunpack.c.h.b16 %v4870
    %v5137 = vunpack.c.l.b16 %v4871
    %v5138 = vunpack.c.h.b16 %v4871
    %v5139 = vunpack.c.l.b16 %v4872
    %v5140 = vunpack.c.h.b16 %v4872
    %v5141 = vunpack.c.l.b16 %v4873
    %v5142 = vunpack.c.h.b16 %v4873
    %v5143 = vunpack.c.l.b16 %v4874
    %v5144 = vunpack.c.h.b16 %v4874
    %v5145 = vunpack.c.l.b16 %v4875
    %v5146 = vunpack.c.h.b16 %v4875
    %v5147 = vunpack.c.l.b16 %v4876
    %v5148 = vunpack.c.h.b16 %v4876
    %v5149 = vunpack.c.l.b16 %v4877
    %v5150 = vunpack.c.h.b16 %v4877
    %v5151 = vunpack.c.l.b16 %v4878
    %v5152 = vunpack.c.h.b16 %v4878
    %v5153 = vunpack.c.l.b16 %v4879
    %v5154 = vunpack.c.h.b16 %v4879
    %v5155 = vunpack.c.l.b16 %v4880
    %v5156 = vunpack.c.h.b16 %v4880
    %v5157 = vunpack.c.l.b16 %v4881
    %v5158 = vunpack.c.h.b16 %v4881
    %v5159 = vunpack.c.l.b16 %v4882
    %v5160 = vunpack.c.h.b16 %v4882
    %v5161 = vunpack.c.l.b16 %v4883
    %v5162 = vunpack.c.h.b16 %v4883
    %v5163 = vunpack.c.l.b16 %v4884
    %v5164 = vunpack.c.h.b16 %v4884
    %v5165 = vunpack.c.l.b16 %v4885
    %v5166 = vunpack.c.h.b16 %v4885
    %v5167 = vunpack.c.l.b16 %v4886
    %v5168 = vunpack.c.h.b16 %v4886
    %v5169 = vunpack.c.l.b16 %v4887
    %v5170 = vunpack.c.h.b16 %v4887
    %v5171 = vunpack.c.l.b16 %v4888
    %v5172 = vunpack.c.h.b16 %v4888
    %v5173 = vunpack.c.l.b16 %v4889
    %v5174 = vunpack.c.h.b16 %v4889
    %v5175 = vunpack.c.l.b16 %v4890
    %v5176 = vunpack.c.h.b16 %v4890
    %v5177 = vunpack.c.l.b16 %v4891
    %v5178 = vunpack.c.h.b16 %v4891
    %v5179 = vunpack.c.l.b16 %v4892
    %v5180 = vunpack.c.h.b16 %v4892
    %v5181 = vunpack.c.l.b16 %v4893
    %v5182 = vunpack.c.h.b16 %v4893
    %v5183 = vunpack.c.l.b16 %v4894
    %v5184 = vunpack.c.h.b16 %v4894
    %v5185 = vunpack.c.l.b16 %v4895
    %v5186 = vunpack.c.h.b16 %v4895
    %v5187 = vunpack.c.l.b16 %v4896
    %v5188 = vunpack.c.h.b16 %v4896
    %v5189 = vunpack.c.l.b16 %v4897
    %v5190 = vunpack.c.h.b16 %v4897
    %v5191 = vunpack.c.l.b16 %v4898
    %v5192 = vunpack.c.h.b16 %v4898
    %v5193 = vunpack.c.l.b16 %v4899
    %v5194 = vunpack.c.h.b16 %v4899
    %v5195 = vunpack.c.l.b16 %v4900
    %v5196 = vunpack.c.h.b16 %v4900
    %v5197 = vunpack.c.l.b16 %v4901
    %v5198 = vunpack.c.h.b16 %v4901
    %v5199 = vunpack.c.l.b16 %v4902
    %v5200 = vunpack.c.h.b16 %v4902
    %v5201 = vunpack.c.l.b16 %v4903
    %v5202 = vunpack.c.h.b16 %v4903
    %v5203 = vunpack.c.l.b16 %v4904
    %v5204 = vunpack.c.h.b16 %v4904
    %v5205 = vunpack.c.l.b16 %v4905
    %v5206 = vunpack.c.h.b16 %v4905
    %v5207 = vunpack.c.l.b16 %v4906
    %v5208 = vunpack.c.h.b16 %v4906
    %v5209 = vunpack.c.l.b16 %v4907
    %v5210 = vunpack.c.h.b16 %v4907
    %v5211 = vunpack.c.l.b16 %v4908
    %v5212 = vunpack.c.h.b16 %v4908
    %v5213 = vunpack.c.l.b16 %v4909
    %v5214 = vunpack.c.h.b16 %v4909
    %v5215 = vunpack.c.l.b16 %v4910
    %v5216 = vunpack.c.h.b16 %v4910
    %v5217 = vunpack.c.l.b16 %v4911
    %v5218 = vunpack.c.h.b16 %v4911
    %v5219 = vunpack.c.l.b16 %v4912
    %v5220 = vunpack.c.h.b16 %v4912
    %v5221 = vunpack.c.l.b16 %v4913
    %v5222 = vunpack.c.h.b16 %v4913
    %v5223 = vunpack.c.l.b16 %v4914
    %v5224 = vunpack.c.h.b16 %v4914
    %v5225 = vunpack.c.l.b16 %v4915
    %v5226 = vunpack.c.h.b16 %v4915
    %v5227 = vunpack.c.l.b16 %v4916
    %v5228 = vunpack.c.h.b16 %v4916
    %v5229 = vunpack.c.l.b16 %v4917
    %v5230 = vunpack.c.h.b16 %v4917
    %v5231 = vunpack.c.l.b16 %v4918
    %v5232 = vunpack.c.h.b16 %v4918
    %v5233 = vunpack.c.l.b16 %v4919
    %v5234 = vunpack.c.h.b16 %v4919
    %v5235 = vunpack.c.l.b16 %v4920
    %v5236 = vunpack.c.h.b16 %v4920
    %v5237 = vunpack.c.l.b16 %v4921
    %v5238 = vunpack.c.h.b16 %v4921
    %v5239 = vunpack.c.l.b16 %v4922
    %v5240 = vunpack.c.h.b16 %v4922
    %v5241 = vunpack.c.l.b16 %v4923
    %v5242 = vunpack.c.h.b16 %v4923
    %v5243 = vunpack.c.l.b16 %v4924
    %v5244 = vunpack.c.h.b16 %v4924
    %v5245 = vunpack.c.l.b16 %v4925
    %v5246 = vunpack.c.h.b16 %v4925
    %v5247 = vunpack.c.l.b16 %v4926
    %v5248 = vunpack.c.h.b16 %v4926
    %v5249 = vunpack.c.l.b16 %v4927
    %v5250 = vunpack.c.h.b16 %v4927
    %v5251 = vunpack.c.l.b16 %v4928
    %v5252 = vunpack.c.h.b16 %v4928
    %v5253 = vunpack.c.l.b16 %v4929
    %v5254 = vunpack.c.h.b16 %v4929
    %v5255 = vunpack.c.l.b16 %v4930
    %v5256 = vunpack.c.h.b16 %v4930
    %v5257 = vunpack.c.l.b16 %v4931
    %v5258 = vunpack.c.h.b16 %v4931
    %v5259 = vunpack.c.l.b16 %v4932
    %v5260 = vunpack.c.h.b16 %v4932
    %v5261 = vunpack.c.l.b16 %v4933
    %v5262 = vunpack.c.h.b16 %v4933
    %v5263 = vunpack.c.l.b16 %v4934
    %v5264 = vunpack.c.h.b16 %v4934
    %v5265 = vunpack.c.l.b16 %v4935
    %v5266 = vunpack.c.h.b16 %v4935
    %v5267 = vunpack.c.l.b16 %v4936
    %v5268 = vunpack.c.h.b16 %v4936
    %v5269 = vunpack.c.l.b16 %v4937
    %v5270 = vunpack.c.h.b16 %v4937
    %v5271 = vunpack.c.l.b16 %v4938
    %v5272 = vunpack.c.h.b16 %v4938
    %v5273 = vunpack.c.l.b16 %v4939
    %v5274 = vunpack.c.h.b16 %v4939
    %v5275 = vunpack.c.l.b16 %v4940
    %v5276 = vunpack.c.h.b16 %v4940
    %v5277 = vunpack.c.l.b16 %v4941
    %v5278 = vunpack.c.h.b16 %v4941
    %v5279 = vunpack.c.l.b16 %v4942
    %v5280 = vunpack.c.h.b16 %v4942
    %v5281 = vunpack.c.l.b16 %v4943
    %v5282 = vunpack.c.h.b16 %v4943
    %v5283 = vunpack.c.l.b16 %v4944
    %v5284 = vunpack.c.h.b16 %v4944
    %v5285 = vunpack.c.l.b16 %v4945
    %v5286 = vunpack.c.h.b16 %v4945
    %v5287 = vunpack.c.l.b16 %v4946
    %v5288 = vunpack.c.h.b16 %v4946
    %v5289 = vunpack.c.l.b16 %v4947
    %v5290 = vunpack.c.h.b16 %v4947
    %v5291 = vunpack.c.l.b16 %v4948
    %v5292 = vunpack.c.h.b16 %v4948
    %v5293 = vunpack.c.l.b16 %v4949
    %v5294 = vunpack.c.h.b16 %v4949
    %v5295 = vunpack.c.l.b16 %v4950
    %v5296 = vunpack.c.h.b16 %v4950
    %v5297 = vunpack.c.l.b16 %v4951
    %v5298 = vunpack.c.h.b16 %v4951
    %v5299 = vunpack.c.l.b16 %v4952
    %v5300 = vunpack.c.h.b16 %v4952
    %v5301 = vunpack.c.l.b16 %v4953
    %v5302 = vunpack.c.h.b16 %v4953
    %v5303 = vunpack.c.l.b16 %v4954
    %v5304 = vunpack.c.h.b16 %v4954
    %v5305 = vunpack.c.l.b16 %v4955
    %v5306 = vunpack.c.h.b16 %v4955
    %v5307 = vunpack.c.l.b16 %v4956
    %v5308 = vunpack.c.h.b16 %v4956
    %v5309 = vunpack.c.l.b16 %v4957
    %v5310 = vunpack.c.h.b16 %v4957
    %v5311 = vunpack.c.l.b16 %v4958
    %v5312 = vunpack.c.h.b16 %v4958
    %v5313 = vunpack.c.l.b16 %v4959
    %v5314 = vunpack.c.h.b16 %v4959
    %v5315 = vunpack.c.l.b16 %v4960
    %v5316 = vunpack.c.h.b16 %v4960
    %v5317 = vunpack.c.l.b16 %v4961
    %v5318 = vunpack.c.h.b16 %v4961
    %v5319 = vunpack.c.l.b16 %v4962
    %v5320 = vunpack.c.h.b16 %v4962
    %v5321 = vunpack.c.l.b16 %v4963
    %v5322 = vunpack.c.h.b16 %v4963
    %v5323 = vunpack.c.l.b16 %v4964
    %v5324 = vunpack.c.h.b16 %v4964
    %v5325 = vunpack.c.l.b16 %v4965
    %v5326 = vunpack.c.h.b16 %v4965
    %v5327 = vpack.c.b16 %v5131, %v5127
    %v5328 = vpack.c.b16 %v5132, %v5128
    %v5329 = vpack.c.b16 %v5133, %v5129
    %v5330 = vpack.c.b16 %v5134, %v5130
    %v5331 = vpack.c.b16 %v5139, %v5135
    %v5332 = vpack.c.b16 %v5140, %v5136
    %v5333 = vpack.c.b16 %v5141, %v5137
    %v5334 = vpack.c.b16 %v5142, %v5138
    %v5335 = vpack.c.b16 %v5147, %v5143
    %v5336 = vpack.c.b16 %v5148, %v5144
    %v5337 = vpack.c.b16 %v5149, %v5145
    %v5338 = vpack.c.b16 %v5150, %v5146
    %v5339 = vpack.c.b16 %v5155, %v5151
    %v5340 = vpack.c.b16 %v5156, %v5152
    %v5341 = vpack.c.b16 %v5157, %v5153
    %v5342 = vpack.c.b16 %v5158, %v5154
    %v5343 = vpack.c.b16 %v5163, %v5159
    %v5344 = vpack.c.b16 %v5164, %v5160
    %v5345 = vpack.c.b16 %v5165, %v5161
    %v5346 = vpack.c.b16 %v5166, %v5162
    %v5347 = vpack.c.b16 %v5171, %v5167
    %v5348 = vpack.c.b16 %v5172, %v5168
    %v5349 = vpack.c.b16 %v5173, %v5169
    %v5350 = vpack.c.b16 %v5174, %v5170
    %v5351 = vpack.c.b16 %v5179, %v5175
    %v5352 = vpack.c.b16 %v5180, %v5176
    %v5353 = vpack.c.b16 %v5181, %v5177
    %v5354 = vpack.c.b16 %v5182, %v5178
    %v5355 = vpack.c.b16 %v5187, %v5183
    %v5356 = vpack.c.b16 %v5188, %v5184
    %v5357 = vpack.c.b16 %v5189, %v5185
    %v5358 = vpack.c.b16 %v5190, %v5186
    %v5359 = vpack.c.b16 %v5195, %v5191
    %v5360 = vpack.c.b16 %v5196, %v5192
    %v5361 = vpack.c.b16 %v5197, %v5193
    %v5362 = vpack.c.b16 %v5198, %v5194
    %v5363 = vpack.c.b16 %v5203, %v5199
    %v5364 = vpack.c.b16 %v5204, %v5200
    %v5365 = vpack.c.b16 %v5205, %v5201
    %v5366 = vpack.c.b16 %v5206, %v5202
    %v5367 = vpack.c.b16 %v5211, %v5207
    %v5368 = vpack.c.b16 %v5212, %v5208
    %v5369 = vpack.c.b16 %v5213, %v5209
    %v5370 = vpack.c.b16 %v5214, %v5210
    %v5371 = vpack.c.b16 %v5219, %v5215
    %v5372 = vpack.c.b16 %v5220, %v5216
    %v5373 = vpack.c.b16 %v5221, %v5217
    %v5374 = vpack.c.b16 %v5222, %v5218
    %v5375 = vpack.c.b16 %v5227, %v5223
    %v5376 = vpack.c.b16 %v5228, %v5224
    %v5377 = vpack.c.b16 %v5229, %v5225
    %v5378 = vpack.c.b16 %v5230, %v5226
    %v5379 = vpack.c.b16 %v5235, %v5231
    %v5380 = vpack.c.b16 %v5236, %v5232
    %v5381 = vpack.c.b16 %v5237, %v5233
    %v5382 = vpack.c.b16 %v5238, %v5234
    %v5383 = vpack.c.b16 %v5243, %v5239
    %v5384 = vpack.c.b16 %v5244, %v5240
    %v5385 = vpack.c.b16 %v5245, %v5241
    %v5386 = vpack.c.b16 %v5246, %v5242
    %v5387 = vpack.c.b16 %v5251, %v5247
    %v5388 = vpack.c.b16 %v5252, %v5248
    %v5389 = vpack.c.b16 %v5253, %v5249
    %v5390 = vpack.c.b16 %v5254, %v5250
    %v5391 = vpack.c.b16 %v5259, %v5255
    %v5392 = vpack.c.b16 %v5260, %v5256
    %v5393 = vpack.c.b16 %v5261, %v5257
    %v5394 = vpack.c.b16 %v5262, %v5258
    %v5395 = vpack.c.b16 %v5267, %v5263
    %v5396 = vpack.c.b16 %v5268, %v5264
    %v5397 = vpack.c.b16 %v5269, %v5265
    %v5398 = vpack.c.b16 %v5270, %v5266
    %v5399 = vpack.c.b16 %v5275, %v5271
    %v5400 = vpack.c.b16 %v5276, %v5272
    %v5401 = vpack.c.b16 %v5277, %v5273
    %v5402 = vpack.c.b16 %v5278, %v5274
    %v5403 = vpack.c.b16 %v5283, %v5279
    %v5404 = vpack.c.b16 %v5284, %v5280
    %v5405 = vpack.c.b16 %v5285, %v5281
    %v5406 = vpack.c.b16 %v5286, %v5282
    %v5407 = vpack.c.b16 %v5291, %v5287
    %v5408 = vpack.c.b16 %v5292, %v5288
    %v5409 = vpack.c.b16 %v5293, %v5289
    %v5410 = vpack.c.b16 %v5294, %v5290
    %v5411 = vpack.c.b16 %v5299, %v5295
    %v5412 = vpack.c.b16 %v5300, %v5296
    %v5413 = vpack.c.b16 %v5301, %v5297
    %v5414 = vpack.c.b16 %v5302, %v5298
    %v5415 = vpack.c.b16 %v5307, %v5303
    %v5416 = vpack.c.b16 %v5308, %v5304
    %v5417 = vpack.c.b16 %v5309, %v5305
    %v5418 = vpack.c.b16 %v5310, %v5306
    %v5419 = vpack.c.b16 %v5315, %v5311
    %v5420 = vpack.c.b16 %v5316, %v5312
    %v5421 = vpack.c.b16 %v5317, %v5313
    %v5422 = vpack.c.b16 %v5318, %v5314
    %v5423 = vpack.c.b16 %v5323, %v5319
    %v5424 = vpack.c.b16 %v5324, %v5320
    %v5425 = vpack.c.b16 %v5325, %v5321
    %v5426 = vpack.c.b16 %v5326, %v5322
    %v5528 = vsel %vm1089, %v5005, 0
    %v5531 = vsel %vm1089, %v5013, 0
    %5533 = vmatprep.subr.bf16.mxu0 %v5328
    %5534 = vmatpush1.bf16.msra.mxu0 %v5327
    %5535 = vmatprep.subr.bf16.mxu0 %v5332
    %5536 = vmatpush1.bf16.msra.mxu0 %v5331
    %5537 = vmatprep.subr.bf16.mxu0 %v5336
    %5538 = vmatpush1.bf16.msra.mxu0 %v5335
    %5539 = vmatprep.subr.bf16.mxu0 %v5340
    %5540 = vmatpush1.bf16.msra.mxu0 %v5339
    %5541 = vmatprep.subr.bf16.mxu0 %v5344
    %5542 = vmatpush1.bf16.msra.mxu0 %v5343
    %5543 = vmatprep.subr.bf16.mxu0 %v5348
    %5544 = vmatpush1.bf16.msra.mxu0 %v5347
    %5545 = vmatprep.subr.bf16.mxu0 %v5352
    %5546 = vmatpush1.bf16.msra.mxu0 %v5351
    %5547 = vmatprep.subr.bf16.mxu0 %v5356
    %5548 = vmatpush1.bf16.msra.mxu0 %v5355
    %5549 = vmatprep.subr.bf16.mxu0 %v5360
    %5550 = vmatpush1.bf16.msra.mxu0 %v5359
    %5551 = vmatprep.subr.bf16.mxu0 %v5364
    %5552 = vmatpush1.bf16.msra.mxu0 %v5363
    %5553 = vmatprep.subr.bf16.mxu0 %v5368
    %5554 = vmatpush1.bf16.msra.mxu0 %v5367
    %5555 = vmatprep.subr.bf16.mxu0 %v5372
    %5556 = vmatpush1.bf16.msra.mxu0 %v5371
    %5557 = vmatprep.subr.bf16.mxu0 %v5376
    %5558 = vmatpush1.bf16.msra.mxu0 %v5375
    %5559 = vmatprep.subr.bf16.mxu0 %v5380
    %5560 = vmatpush1.bf16.msra.mxu0 %v5379
    %5561 = vmatprep.subr.bf16.mxu0 %v5384
    %5562 = vmatpush1.bf16.msra.mxu0 %v5383
    %5563 = vmatprep.subr.bf16.mxu0 %v5388
    %5564 = vmatpush1.bf16.msra.mxu0 %v5387
    %5565 = vmatprep.mubr.bf16.mxu0 %v5016
    %5566 = vmatmul.mubr.bf16.gmra.mrb[0].mxu0 %v5015
    %v5567 = vpop.f32.mrb[0].mxu0
    %v5568 = vadd.f32 %v4977, %v5567
    %v5569 = vpop.f32.mrb[0].mxu0
    %v5570 = vadd.f32 %v4981, %v5569
    %v5571 = vpop.f32.mrb[0].mxu0
    %v5572 = vadd.f32 %v4977, %v5571
    %v5573 = vpop.f32.mrb[0].mxu0
    %v5574 = vadd.f32 %v4981, %v5573
    %5575 = vmatprep.mubr.bf16.mxu0 %v5019
    %5576 = vmatmul.mubr.bf16.gmra.mrb[0].mxu0 %v5018
    %v5577 = vpop.f32.mrb[0].mxu0
    %v5578 = vadd.f32 %v4977, %v5577
    %v5579 = vpop.f32.mrb[0].mxu0
    %v5580 = vadd.f32 %v4981, %v5579
    %v5581 = vpop.f32.mrb[0].mxu0
    %v5582 = vadd.f32 %v4977, %v5581
    %v5583 = vpop.f32.mrb[0].mxu0
    %v5584 = vadd.f32 %v4981, %v5583
    %5585 = vdwg.mxu0
    %5586 = vmatprep.subr.bf16.mxu0 %v5392
    %5587 = vmatpush1.bf16.msra.mxu0 %v5391
    %5588 = vmatprep.subr.bf16.mxu0 %v5396
    %5589 = vmatpush1.bf16.msra.mxu0 %v5395
    %5590 = vmatprep.subr.bf16.mxu0 %v5400
    %5591 = vmatpush1.bf16.msra.mxu0 %v5399
    %5592 = vmatprep.subr.bf16.mxu0 %v5404
    %5593 = vmatpush1.bf16.msra.mxu0 %v5403
    %5594 = vmatprep.subr.bf16.mxu0 %v5408
    %5595 = vmatpush1.bf16.msra.mxu0 %v5407
    %5596 = vmatprep.subr.bf16.mxu0 %v5412
    %5597 = vmatpush1.bf16.msra.mxu0 %v5411
    %5598 = vmatprep.subr.bf16.mxu0 %v5416
    %5599 = vmatpush1.bf16.msra.mxu0 %v5415
    %5600 = vmatprep.subr.bf16.mxu0 %v5420
    %5601 = vmatpush1.bf16.msra.mxu0 %v5419
    %5602 = vmatprep.subr.bf16.mxu0 %v5424
    %5603 = vmatpush1.bf16.msra.mxu0 %v5423
    %5604 = vmatprep.subr.bf16.mxu0 0
    %5605 = vmatpush1.bf16.msra.mxu0 0
    %5606 = vmatprep.subr.bf16.mxu0 0
    %5607 = vmatpush1.bf16.msra.mxu0 0
    %5608 = vmatprep.subr.bf16.mxu0 0
    %5609 = vmatpush1.bf16.msra.mxu0 0
    %5610 = vmatprep.subr.bf16.mxu0 0
    %5611 = vmatpush1.bf16.msra.mxu0 0
    %5612 = vmatprep.subr.bf16.mxu0 0
    %5613 = vmatpush1.bf16.msra.mxu0 0
    %5614 = vmatprep.subr.bf16.mxu0 0
    %5615 = vmatpush1.bf16.msra.mxu0 0
    %5616 = vmatprep.subr.bf16.mxu0 0
    %5617 = vmatpush1.bf16.msra.mxu0 0
    %5618 = vmatprep.mubr.bf16.mxu0 %v5528
    %5619 = vmatmul.mubr.bf16.gmra.mrb[0].mxu0 %v5017
    %v5620 = vpop.f32.mrb[0].mxu0
    %v5621 = vadd.f32 %v5568, %v5620
    %v5622 = vpop.f32.mrb[0].mxu0
    %v5623 = vadd.f32 %v5570, %v5622
    %v5624 = vpop.f32.mrb[0].mxu0
    %v5625 = vadd.f32 %v5572, %v5624
    %v5626 = vpop.f32.mrb[0].mxu0
    %v5627 = vadd.f32 %v5574, %v5626
    %5628 = vmatprep.mubr.bf16.mxu0 %v5531
    %5629 = vmatmul.mubr.bf16.gmra.mrb[0].mxu0 %v5020
    %v5630 = vpop.f32.mrb[0].mxu0
    %v5631 = vadd.f32 %v5578, %v5630
    %v5632 = vpop.f32.mrb[0].mxu0
    %v5633 = vadd.f32 %v5580, %v5632
    %v5634 = vpop.f32.mrb[0].mxu0
    %v5635 = vadd.f32 %v5582, %v5634
    %v5636 = vpop.f32.mrb[0].mxu0
    %v5637 = vadd.f32 %v5584, %v5636
    %5638 = vdwg.mxu0
    %5639 = vmatprep.subr.bf16.mxu0 %v5330
    %5640 = vmatpush1.bf16.msra.mxu0 %v5329
    %5641 = vmatprep.subr.bf16.mxu0 %v5334
    %5642 = vmatpush1.bf16.msra.mxu0 %v5333
    %5643 = vmatprep.subr.bf16.mxu0 %v5338
    %5644 = vmatpush1.bf16.msra.mxu0 %v5337
    %5645 = vmatprep.subr.bf16.mxu0 %v5342
    %5646 = vmatpush1.bf16.msra.mxu0 %v5341
    %5647 = vmatprep.subr.bf16.mxu0 %v5346
    %5648 = vmatpush1.bf16.msra.mxu0 %v5345
    %5649 = vmatprep.subr.bf16.mxu0 %v5350
    %5650 = vmatpush1.bf16.msra.mxu0 %v5349
    %5651 = vmatprep.subr.bf16.mxu0 %v5354
    %5652 = vmatpush1.bf16.msra.mxu0 %v5353
    %5653 = vmatprep.subr.bf16.mxu0 %v5358
    %5654 = vmatpush1.bf16.msra.mxu0 %v5357
    %5655 = vmatprep.subr.bf16.mxu0 %v5362
    %5656 = vmatpush1.bf16.msra.mxu0 %v5361
    %5657 = vmatprep.subr.bf16.mxu0 %v5366
    %5658 = vmatpush1.bf16.msra.mxu0 %v5365
    %5659 = vmatprep.subr.bf16.mxu0 %v5370
    %5660 = vmatpush1.bf16.msra.mxu0 %v5369
    %5661 = vmatprep.subr.bf16.mxu0 %v5374
    %5662 = vmatpush1.bf16.msra.mxu0 %v5373
    %5663 = vmatprep.subr.bf16.mxu0 %v5378
    %5664 = vmatpush1.bf16.msra.mxu0 %v5377
    %5665 = vmatprep.subr.bf16.mxu0 %v5382
    %5666 = vmatpush1.bf16.msra.mxu0 %v5381
    %5667 = vmatprep.subr.bf16.mxu0 %v5386
    %5668 = vmatpush1.bf16.msra.mxu0 %v5385
    %5669 = vmatprep.subr.bf16.mxu0 %v5390
    %5670 = vmatpush1.bf16.msra.mxu0 %v5389
    %5671 = vmatprep.mubr.bf16.mxu0 %v5016
    %5672 = vmatmul.mubr.bf16.gmra.mrb[0].mxu0 %v5015
    %v5673 = vpop.f32.mrb[0].mxu0
    %v5674 = vadd.f32 %v4985, %v5673
    %v5675 = vpop.f32.mrb[0].mxu0
    %v5676 = vadd.f32 %v4989, %v5675
    %v5677 = vpop.f32.mrb[0].mxu0
    %v5678 = vadd.f32 %v4985, %v5677
    %v5679 = vpop.f32.mrb[0].mxu0
    %v5680 = vadd.f32 %v4989, %v5679
    %5681 = vmatprep.mubr.bf16.mxu0 %v5019
    %5682 = vmatmul.mubr.bf16.gmra.mrb[0].mxu0 %v5018
    %v5683 = vpop.f32.mrb[0].mxu0
    %v5684 = vadd.f32 %v4985, %v5683
    %v5685 = vpop.f32.mrb[0].mxu0
    %v5686 = vadd.f32 %v4989, %v5685
    %v5687 = vpop.f32.mrb[0].mxu0
    %v5688 = vadd.f32 %v4985, %v5687
    %v5689 = vpop.f32.mrb[0].mxu0
    %v5690 = vadd.f32 %v4989, %v5689
    %5691 = vdwg.mxu0
    %5692 = vmatprep.subr.bf16.mxu0 %v5394
    %5693 = vmatpush1.bf16.msra.mxu0 %v5393
    %5694 = vmatprep.subr.bf16.mxu0 %v5398
    %5695 = vmatpush1.bf16.msra.mxu0 %v5397
    %5696 = vmatprep.subr.bf16.mxu0 %v5402
    %5697 = vmatpush1.bf16.msra.mxu0 %v5401
    %5698 = vmatprep.subr.bf16.mxu0 %v5406
    %5699 = vmatpush1.bf16.msra.mxu0 %v5405
    %5700 = vmatprep.subr.bf16.mxu0 %v5410
    %5701 = vmatpush1.bf16.msra.mxu0 %v5409
    %5702 = vmatprep.subr.bf16.mxu0 %v5414
    %5703 = vmatpush1.bf16.msra.mxu0 %v5413
    %5704 = vmatprep.subr.bf16.mxu0 %v5418
    %5705 = vmatpush1.bf16.msra.mxu0 %v5417
    %5706 = vmatprep.subr.bf16.mxu0 %v5422
    %5707 = vmatpush1.bf16.msra.mxu0 %v5421
    %5708 = vmatprep.subr.bf16.mxu0 %v5426
    %5709 = vmatpush1.bf16.msra.mxu0 %v5425
    %5710 = vmatprep.subr.bf16.mxu0 0
    %5711 = vmatpush1.bf16.msra.mxu0 0
    %5712 = vmatprep.subr.bf16.mxu0 0
    %5713 = vmatpush1.bf16.msra.mxu0 0
    %5714 = vmatprep.subr.bf16.mxu0 0
    %5715 = vmatpush1.bf16.msra.mxu0 0
    %5716 = vmatprep.subr.bf16.mxu0 0
    %5717 = vmatpush1.bf16.msra.mxu0 0
    %5718 = vmatprep.subr.bf16.mxu0 0
    %5719 = vmatpush1.bf16.msra.mxu0 0
    %5720 = vmatprep.subr.bf16.mxu0 0
    %5721 = vmatpush1.bf16.msra.mxu0 0
    %5722 = vmatprep.subr.bf16.mxu0 0
    %5723 = vmatpush1.bf16.msra.mxu0 0
    %5724 = vmatprep.mubr.bf16.mxu0 %v5528
    %5725 = vmatmul.mubr.bf16.gmra.mrb[0].mxu0 %v5017
    %v5726 = vpop.f32.mrb[0].mxu0
    %v5727 = vadd.f32 %v5674, %v5726
    %v5728 = vpop.f32.mrb[0].mxu0
    %v5729 = vadd.f32 %v5676, %v5728
    %v5730 = vpop.f32.mrb[0].mxu0
    %v5731 = vadd.f32 %v5678, %v5730
    %v5732 = vpop.f32.mrb[0].mxu0
    %v5733 = vadd.f32 %v5680, %v5732
    %5734 = vmatprep.mubr.bf16.mxu0 %v5531
    %5735 = vmatmul.mubr.bf16.gmra.mrb[0].mxu0 %v5020
    %v5736 = vpop.f32.mrb[0].mxu0
    %v5737 = vadd.f32 %v5684, %v5736
    %v5738 = vpop.f32.mrb[0].mxu0
    %v5739 = vadd.f32 %v5686, %v5738
    %v5740 = vpop.f32.mrb[0].mxu0
    %v5741 = vadd.f32 %v5688, %v5740
    %v5742 = vpop.f32.mrb[0].mxu0
    %v5743 = vadd.f32 %v5690, %v5742
    %5744 = vdwg.mxu0
    %v5745 = vmax.f32 %v5621, 0.0
    %v5746 = vmax.f32 %v5623, 0.0
    %v5747 = vmax.f32 %v5727, 0.0
    %v5748 = vmax.f32 %v5729, 0.0
    %v5749 = vmax.f32 %v5625, 0.0
    %v5750 = vmax.f32 %v5627, 0.0
    %v5751 = vmax.f32 %v5731, 0.0
    %v5752 = vmax.f32 %v5733, 0.0
    %v5753 = vmax.f32 %v5631, 0.0
    %v5754 = vmax.f32 %v5633, 0.0
    %v5755 = vmax.f32 %v5737, 0.0
    %v5756 = vmax.f32 %v5739, 0.0
    %v5757 = vmax.f32 %v5635, 0.0
    %v5758 = vmax.f32 %v5637, 0.0
    %v5759 = vmax.f32 %v5741, 0.0
    %v5760 = vmax.f32 %v5743, 0.0
    %s5761 = scalar_lea.vmem [#allocation11], 4000
    %v5762 = vld [vmem:[%s5761] sm:$0xff]
    %v5763 = vld [vmem:[%s5761 + $0x8] sm:$0xff]
    %v5764 = vld [vmem:[%s5761 + $0x10] sm:$0xff]
    %v5765 = vld [vmem:[%s5761 + $0x18] sm:$0xff]
    %v5766 = vld [vmem:[%s5761 + $0x20] sm:$0xff]
    %v5767 = vld [vmem:[%s5761 + $0x28] sm:$0xff]
    %v5768 = vld [vmem:[%s5761 + $0x30] sm:$0xff]
    %v5769 = vld [vmem:[%s5761 + $0x38] sm:$0xff]
    %v5770 = vld [vmem:[%s5761 + $0x40] sm:$0xff]
    %v5771 = vld [vmem:[%s5761 + $0x48] sm:$0xff]
    %v5772 = vld [vmem:[%s5761 + $0x50] sm:$0xff]
    %v5773 = vld [vmem:[%s5761 + $0x58] sm:$0xff]
    %v5774 = vld [vmem:[%s5761 + $0x60] sm:$0xff]
    %v5775 = vld [vmem:[%s5761 + $0x68] sm:$0xff]
    %v5776 = vld [vmem:[%s5761 + $0x70] sm:$0xff]
    %v5777 = vld [vmem:[%s5761 + $0x78] sm:$0xff]
    %v5778 = vld [vmem:[%s5761 + $0x80] sm:$0xff]
    %v5779 = vld [vmem:[%s5761 + $0x88] sm:$0xff]
    %v5780 = vld [vmem:[%s5761 + $0x90] sm:$0xff]
    %v5781 = vld [vmem:[%s5761 + $0x98] sm:$0xff]
    %v5782 = vld [vmem:[%s5761 + $0xa0] sm:$0xff]
    %v5783 = vld [vmem:[%s5761 + $0xa8] sm:$0xff]
    %v5784 = vld [vmem:[%s5761 + $0xb0] sm:$0xff]
    %v5785 = vld [vmem:[%s5761 + $0xb8] sm:$0xff]
    %v5786 = vld [vmem:[%s5761 + $0xc0] sm:$0xff]
    %v5787 = vld [vmem:[%s5761 + $0xc8] sm:$0xff]
    %v5788 = vld [vmem:[%s5761 + $0xd0] sm:$0xff]
    %v5789 = vld [vmem:[%s5761 + $0xd8] sm:$0xff]
    %v5790 = vld [vmem:[%s5761 + $0xe0] sm:$0xff]
    %v5791 = vld [vmem:[%s5761 + $0xe8] sm:$0xff]
    %v5792 = vld [vmem:[%s5761 + $0xf0] sm:$0xff]
    %v5793 = vld [vmem:[%s5761 + $0xf8] sm:$0xff]
    %v5794 = vld [vmem:[%s5761 + $0x100] sm:$0xff]
    %v5795 = vld [vmem:[%s5761 + $0x108] sm:$0xff]
    %v5796 = vld [vmem:[%s5761 + $0x110] sm:$0xff]
    %v5797 = vld [vmem:[%s5761 + $0x118] sm:$0xff]
    %v5798 = vld [vmem:[%s5761 + $0x120] sm:$0xff]
    %v5799 = vld [vmem:[%s5761 + $0x128] sm:$0xff]
    %v5800 = vld [vmem:[%s5761 + $0x130] sm:$0xff]
    %v5801 = vld [vmem:[%s5761 + $0x138] sm:$0xff]
    %v5802 = vld [vmem:[%s5761 + $0x140] sm:$0xff]
    %v5803 = vld [vmem:[%s5761 + $0x148] sm:$0xff]
    %v5804 = vld [vmem:[%s5761 + $0x150] sm:$0xff]
    %v5805 = vld [vmem:[%s5761 + $0x158] sm:$0xff]
    %v5806 = vld [vmem:[%s5761 + $0x160] sm:$0xff]
    %v5807 = vld [vmem:[%s5761 + $0x168] sm:$0xff]
    %v5808 = vld [vmem:[%s5761 + $0x170] sm:$0xff]
    %v5809 = vld [vmem:[%s5761 + $0x178] sm:$0xff]
    %v5810 = vld [vmem:[%s5761 + $0x180] sm:$0xff]
    %v5811 = vld [vmem:[%s5761 + $0x188] sm:$0xff]
    %v5812 = vld [vmem:[%s5761 + $0x190] sm:$0xff]
    %v5813 = vld [vmem:[%s5761 + $0x198] sm:$0xff]
    %v5814 = vld [vmem:[%s5761 + $0x1a0] sm:$0xff]
    %v5815 = vld [vmem:[%s5761 + $0x1a8] sm:$0xff]
    %v5816 = vld [vmem:[%s5761 + $0x1b0] sm:$0xff]
    %v5817 = vld [vmem:[%s5761 + $0x1b8] sm:$0xff]
    %v5818 = vld [vmem:[%s5761 + $0x1c0] sm:$0xff]
    %v5819 = vld [vmem:[%s5761 + $0x1c8] sm:$0xff]
    %v5820 = vld [vmem:[%s5761 + $0x1d0] sm:$0xff]
    %v5821 = vld [vmem:[%s5761 + $0x1d8] sm:$0xff]
    %v5822 = vld [vmem:[%s5761 + $0x1e0] sm:$0xff]
    %v5823 = vld [vmem:[%s5761 + $0x1e8] sm:$0xff]
    %v5824 = vld [vmem:[%s5761 + $0x1f0] sm:$0xff]
    %v5825 = vld [vmem:[%s5761 + $0x1f8] sm:$0xff]
    %v5826 = vld [vmem:[%s5761 + $0x200] sm:$0xff]
    %v5827 = vld [vmem:[%s5761 + $0x208] sm:$0xff]
    %v5828 = vld [vmem:[%s5761 + $0x210] sm:$0xff]
    %v5829 = vld [vmem:[%s5761 + $0x218] sm:$0xff]
    %v5830 = vld [vmem:[%s5761 + $0x220] sm:$0xff]
    %v5831 = vld [vmem:[%s5761 + $0x228] sm:$0xff]
    %v5832 = vld [vmem:[%s5761 + $0x230] sm:$0xff]
    %v5833 = vld [vmem:[%s5761 + $0x238] sm:$0xff]
    %v5834 = vld [vmem:[%s5761 + $0x240] sm:$0xff]
    %v5835 = vld [vmem:[%s5761 + $0x248] sm:$0xff]
    %v5836 = vld [vmem:[%s5761 + $0x250] sm:$0xff]
    %v5837 = vld [vmem:[%s5761 + $0x258] sm:$0xff]
    %v5838 = vld [vmem:[%s5761 + $0x260] sm:$0xff]
    %v5839 = vld [vmem:[%s5761 + $0x268] sm:$0xff]
    %v5840 = vld [vmem:[%s5761 + $0x270] sm:$0xff]
    %v5841 = vld [vmem:[%s5761 + $0x278] sm:$0xff]
    %v5842 = vld [vmem:[%s5761 + $0x280] sm:$0xff]
    %v5843 = vld [vmem:[%s5761 + $0x288] sm:$0xff]
    %v5844 = vld [vmem:[%s5761 + $0x290] sm:$0xff]
    %v5845 = vld [vmem:[%s5761 + $0x298] sm:$0xff]
    %v5846 = vld [vmem:[%s5761 + $0x2a0] sm:$0xff]
    %v5847 = vld [vmem:[%s5761 + $0x2a8] sm:$0xff]
    %v5848 = vld [vmem:[%s5761 + $0x2b0] sm:$0xff]
    %v5849 = vld [vmem:[%s5761 + $0x2b8] sm:$0xff]
    %v5850 = vld [vmem:[%s5761 + $0x2c0] sm:$0xff]
    %v5851 = vld [vmem:[%s5761 + $0x2c8] sm:$0xff]
    %v5852 = vld [vmem:[%s5761 + $0x2d0] sm:$0xff]
    %v5853 = vld [vmem:[%s5761 + $0x2d8] sm:$0xff]
    %v5854 = vld [vmem:[%s5761 + $0x2e0] sm:$0xff]
    %v5855 = vld [vmem:[%s5761 + $0x2e8] sm:$0xff]
    %v5856 = vld [vmem:[%s5761 + $0x2f0] sm:$0xff]
    %v5857 = vld [vmem:[%s5761 + $0x2f8] sm:$0xff]
    %v5858 = vld [vmem:[%s5761 + $0x300] sm:$0xff]
    %v5859 = vld [vmem:[%s5761 + $0x308] sm:$0xff]
    %v5860 = vld [vmem:[%s5761 + $0x310] sm:$0xff]
    %v5861 = vld [vmem:[%s5761 + $0x318] sm:$0xff]
    %v5862 = vpack.c.bf16 %v5749, %v5745
    %v5863 = vpack.c.bf16 %v5750, %v5746
    %v5864 = vpack.c.bf16 %v5751, %v5747
    %v5865 = vpack.c.bf16 %v5752, %v5748
    %v5866 = vpack.c.bf16 %v5757, %v5753
    %v5867 = vpack.c.bf16 %v5758, %v5754
    %v5868 = vpack.c.bf16 %v5759, %v5755
    %v5869 = vpack.c.bf16 %v5760, %v5756
    %v5870 = vlaneseq
    %v5871 = vshrl.u32 %v5870, 7
    %v5872 = vsub.s32 0, %v5871
    %v5873 = vrot.slane %v187, %v5872
    %v5874 = vlaneseq
    %v5875 = vshrl.u32 %v5874, 7
    %v5876 = vsub.s32 0, %v5875
    %v5877 = vrot.slane %v188, %v5876
    %v5878 = vlaneseq
    %v5879 = vshrl.u32 %v5878, 7
    %v5880 = vsub.s32 0, %v5879
    %v5881 = vrot.slane %v189, %v5880
    %v5882 = vlaneseq
    %v5883 = vshrl.u32 %v5882, 7
    %v5884 = vsub.s32 0, %v5883
    %v5885 = vrot.slane %v190, %v5884
    %v5986 = vunpack.c.l.b16 %v5762
    %v5987 = vunpack.c.h.b16 %v5762
    %v5988 = vunpack.c.l.b16 %v5763
    %v5989 = vunpack.c.h.b16 %v5763
    %v5990 = vunpack.c.l.b16 %v5764
    %v5991 = vunpack.c.h.b16 %v5764
    %v5992 = vunpack.c.l.b16 %v5765
    %v5993 = vunpack.c.h.b16 %v5765
    %v5994 = vunpack.c.l.b16 %v5766
    %v5995 = vunpack.c.h.b16 %v5766
    %v5996 = vunpack.c.l.b16 %v5767
    %v5997 = vunpack.c.h.b16 %v5767
    %v5998 = vunpack.c.l.b16 %v5768
    %v5999 = vunpack.c.h.b16 %v5768
    %v6000 = vunpack.c.l.b16 %v5769
    %v6001 = vunpack.c.h.b16 %v5769
    %v6002 = vunpack.c.l.b16 %v5770
    %v6003 = vunpack.c.h.b16 %v5770
    %v6004 = vunpack.c.l.b16 %v5771
    %v6005 = vunpack.c.h.b16 %v5771
    %v6006 = vunpack.c.l.b16 %v5772
    %v6007 = vunpack.c.h.b16 %v5772
    %v6008 = vunpack.c.l.b16 %v5773
    %v6009 = vunpack.c.h.b16 %v5773
    %v6010 = vunpack.c.l.b16 %v5774
    %v6011 = vunpack.c.h.b16 %v5774
    %v6012 = vunpack.c.l.b16 %v5775
    %v6013 = vunpack.c.h.b16 %v5775
    %v6014 = vunpack.c.l.b16 %v5776
    %v6015 = vunpack.c.h.b16 %v5776
    %v6016 = vunpack.c.l.b16 %v5777
    %v6017 = vunpack.c.h.b16 %v5777
    %v6018 = vunpack.c.l.b16 %v5778
    %v6019 = vunpack.c.h.b16 %v5778
    %v6020 = vunpack.c.l.b16 %v5779
    %v6021 = vunpack.c.h.b16 %v5779
    %v6022 = vunpack.c.l.b16 %v5780
    %v6023 = vunpack.c.h.b16 %v5780
    %v6024 = vunpack.c.l.b16 %v5781
    %v6025 = vunpack.c.h.b16 %v5781
    %v6026 = vunpack.c.l.b16 %v5782
    %v6027 = vunpack.c.h.b16 %v5782
    %v6028 = vunpack.c.l.b16 %v5783
    %v6029 = vunpack.c.h.b16 %v5783
    %v6030 = vunpack.c.l.b16 %v5784
    %v6031 = vunpack.c.h.b16 %v5784
    %v6032 = vunpack.c.l.b16 %v5785
    %v6033 = vunpack.c.h.b16 %v5785
    %v6034 = vunpack.c.l.b16 %v5786
    %v6035 = vunpack.c.h.b16 %v5786
    %v6036 = vunpack.c.l.b16 %v5787
    %v6037 = vunpack.c.h.b16 %v5787
    %v6038 = vunpack.c.l.b16 %v5788
    %v6039 = vunpack.c.h.b16 %v5788
    %v6040 = vunpack.c.l.b16 %v5789
    %v6041 = vunpack.c.h.b16 %v5789
    %v6042 = vunpack.c.l.b16 %v5790
    %v6043 = vunpack.c.h.b16 %v5790
    %v6044 = vunpack.c.l.b16 %v5791
    %v6045 = vunpack.c.h.b16 %v5791
    %v6046 = vunpack.c.l.b16 %v5792
    %v6047 = vunpack.c.h.b16 %v5792
    %v6048 = vunpack.c.l.b16 %v5793
    %v6049 = vunpack.c.h.b16 %v5793
    %v6050 = vunpack.c.l.b16 %v5794
    %v6051 = vunpack.c.h.b16 %v5794
    %v6052 = vunpack.c.l.b16 %v5795
    %v6053 = vunpack.c.h.b16 %v5795
    %v6054 = vunpack.c.l.b16 %v5796
    %v6055 = vunpack.c.h.b16 %v5796
    %v6056 = vunpack.c.l.b16 %v5797
    %v6057 = vunpack.c.h.b16 %v5797
    %v6058 = vunpack.c.l.b16 %v5798
    %v6059 = vunpack.c.h.b16 %v5798
    %v6060 = vunpack.c.l.b16 %v5799
    %v6061 = vunpack.c.h.b16 %v5799
    %v6062 = vunpack.c.l.b16 %v5800
    %v6063 = vunpack.c.h.b16 %v5800
    %v6064 = vunpack.c.l.b16 %v5801
    %v6065 = vunpack.c.h.b16 %v5801
    %v6066 = vunpack.c.l.b16 %v5802
    %v6067 = vunpack.c.h.b16 %v5802
    %v6068 = vunpack.c.l.b16 %v5803
    %v6069 = vunpack.c.h.b16 %v5803
    %v6070 = vunpack.c.l.b16 %v5804
    %v6071 = vunpack.c.h.b16 %v5804
    %v6072 = vunpack.c.l.b16 %v5805
    %v6073 = vunpack.c.h.b16 %v5805
    %v6074 = vunpack.c.l.b16 %v5806
    %v6075 = vunpack.c.h.b16 %v5806
    %v6076 = vunpack.c.l.b16 %v5807
    %v6077 = vunpack.c.h.b16 %v5807
    %v6078 = vunpack.c.l.b16 %v5808
    %v6079 = vunpack.c.h.b16 %v5808
    %v6080 = vunpack.c.l.b16 %v5809
    %v6081 = vunpack.c.h.b16 %v5809
    %v6082 = vunpack.c.l.b16 %v5810
    %v6083 = vunpack.c.h.b16 %v5810
    %v6084 = vunpack.c.l.b16 %v5811
    %v6085 = vunpack.c.h.b16 %v5811
    %v6086 = vunpack.c.l.b16 %v5812
    %v6087 = vunpack.c.h.b16 %v5812
    %v6088 = vunpack.c.l.b16 %v5813
    %v6089 = vunpack.c.h.b16 %v5813
    %v6090 = vunpack.c.l.b16 %v5814
    %v6091 = vunpack.c.h.b16 %v5814
    %v6092 = vunpack.c.l.b16 %v5815
    %v6093 = vunpack.c.h.b16 %v5815
    %v6094 = vunpack.c.l.b16 %v5816
    %v6095 = vunpack.c.h.b16 %v5816
    %v6096 = vunpack.c.l.b16 %v5817
    %v6097 = vunpack.c.h.b16 %v5817
    %v6098 = vunpack.c.l.b16 %v5818
    %v6099 = vunpack.c.h.b16 %v5818
    %v6100 = vunpack.c.l.b16 %v5819
    %v6101 = vunpack.c.h.b16 %v5819
    %v6102 = vunpack.c.l.b16 %v5820
    %v6103 = vunpack.c.h.b16 %v5820
    %v6104 = vunpack.c.l.b16 %v5821
    %v6105 = vunpack.c.h.b16 %v5821
    %v6106 = vunpack.c.l.b16 %v5822
    %v6107 = vunpack.c.h.b16 %v5822
    %v6108 = vunpack.c.l.b16 %v5823
    %v6109 = vunpack.c.h.b16 %v5823
    %v6110 = vunpack.c.l.b16 %v5824
    %v6111 = vunpack.c.h.b16 %v5824
    %v6112 = vunpack.c.l.b16 %v5825
    %v6113 = vunpack.c.h.b16 %v5825
    %v6114 = vunpack.c.l.b16 %v5826
    %v6115 = vunpack.c.h.b16 %v5826
    %v6116 = vunpack.c.l.b16 %v5827
    %v6117 = vunpack.c.h.b16 %v5827
    %v6118 = vunpack.c.l.b16 %v5828
    %v6119 = vunpack.c.h.b16 %v5828
    %v6120 = vunpack.c.l.b16 %v5829
    %v6121 = vunpack.c.h.b16 %v5829
    %v6122 = vunpack.c.l.b16 %v5830
    %v6123 = vunpack.c.h.b16 %v5830
    %v6124 = vunpack.c.l.b16 %v5831
    %v6125 = vunpack.c.h.b16 %v5831
    %v6126 = vunpack.c.l.b16 %v5832
    %v6127 = vunpack.c.h.b16 %v5832
    %v6128 = vunpack.c.l.b16 %v5833
    %v6129 = vunpack.c.h.b16 %v5833
    %v6130 = vunpack.c.l.b16 %v5834
    %v6131 = vunpack.c.h.b16 %v5834
    %v6132 = vunpack.c.l.b16 %v5835
    %v6133 = vunpack.c.h.b16 %v5835
    %v6134 = vunpack.c.l.b16 %v5836
    %v6135 = vunpack.c.h.b16 %v5836
    %v6136 = vunpack.c.l.b16 %v5837
    %v6137 = vunpack.c.h.b16 %v5837
    %v6138 = vunpack.c.l.b16 %v5838
    %v6139 = vunpack.c.h.b16 %v5838
    %v6140 = vunpack.c.l.b16 %v5839
    %v6141 = vunpack.c.h.b16 %v5839
    %v6142 = vunpack.c.l.b16 %v5840
    %v6143 = vunpack.c.h.b16 %v5840
    %v6144 = vunpack.c.l.b16 %v5841
    %v6145 = vunpack.c.h.b16 %v5841
    %v6146 = vunpack.c.l.b16 %v5842
    %v6147 = vunpack.c.h.b16 %v5842
    %v6148 = vunpack.c.l.b16 %v5843
    %v6149 = vunpack.c.h.b16 %v5843
    %v6150 = vunpack.c.l.b16 %v5844
    %v6151 = vunpack.c.h.b16 %v5844
    %v6152 = vunpack.c.l.b16 %v5845
    %v6153 = vunpack.c.h.b16 %v5845
    %v6154 = vunpack.c.l.b16 %v5846
    %v6155 = vunpack.c.h.b16 %v5846
    %v6156 = vunpack.c.l.b16 %v5847
    %v6157 = vunpack.c.h.b16 %v5847
    %v6158 = vunpack.c.l.b16 %v5848
    %v6159 = vunpack.c.h.b16 %v5848
    %v6160 = vunpack.c.l.b16 %v5849
    %v6161 = vunpack.c.h.b16 %v5849
    %v6162 = vunpack.c.l.b16 %v5850
    %v6163 = vunpack.c.h.b16 %v5850
    %v6164 = vunpack.c.l.b16 %v5851
    %v6165 = vunpack.c.h.b16 %v5851
    %v6166 = vunpack.c.l.b16 %v5852
    %v6167 = vunpack.c.h.b16 %v5852
    %v6168 = vunpack.c.l.b16 %v5853
    %v6169 = vunpack.c.h.b16 %v5853
    %v6170 = vunpack.c.l.b16 %v5854
    %v6171 = vunpack.c.h.b16 %v5854
    %v6172 = vunpack.c.l.b16 %v5855
    %v6173 = vunpack.c.h.b16 %v5855
    %v6174 = vunpack.c.l.b16 %v5856
    %v6175 = vunpack.c.h.b16 %v5856
    %v6176 = vunpack.c.l.b16 %v5857
    %v6177 = vunpack.c.h.b16 %v5857
    %v6178 = vunpack.c.l.b16 %v5858
    %v6179 = vunpack.c.h.b16 %v5858
    %v6180 = vunpack.c.l.b16 %v5859
    %v6181 = vunpack.c.h.b16 %v5859
    %v6182 = vunpack.c.l.b16 %v5860
    %v6183 = vunpack.c.h.b16 %v5860
    %v6184 = vunpack.c.l.b16 %v5861
    %v6185 = vunpack.c.h.b16 %v5861
    %v6186 = vpack.c.b16 %v5990, %v5986
    %v6187 = vpack.c.b16 %v5991, %v5987
    %v6188 = vpack.c.b16 %v5992, %v5988
    %v6189 = vpack.c.b16 %v5993, %v5989
    %v6190 = vpack.c.b16 %v5998, %v5994
    %v6191 = vpack.c.b16 %v5999, %v5995
    %v6192 = vpack.c.b16 %v6000, %v5996
    %v6193 = vpack.c.b16 %v6001, %v5997
    %v6194 = vpack.c.b16 %v6006, %v6002
    %v6195 = vpack.c.b16 %v6007, %v6003
    %v6196 = vpack.c.b16 %v6008, %v6004
    %v6197 = vpack.c.b16 %v6009, %v6005
    %v6198 = vpack.c.b16 %v6014, %v6010
    %v6199 = vpack.c.b16 %v6015, %v6011
    %v6200 = vpack.c.b16 %v6016, %v6012
    %v6201 = vpack.c.b16 %v6017, %v6013
    %v6202 = vpack.c.b16 %v6022, %v6018
    %v6203 = vpack.c.b16 %v6023, %v6019
    %v6204 = vpack.c.b16 %v6024, %v6020
    %v6205 = vpack.c.b16 %v6025, %v6021
    %v6206 = vpack.c.b16 %v6030, %v6026
    %v6207 = vpack.c.b16 %v6031, %v6027
    %v6208 = vpack.c.b16 %v6032, %v6028
    %v6209 = vpack.c.b16 %v6033, %v6029
    %v6210 = vpack.c.b16 %v6038, %v6034
    %v6211 = vpack.c.b16 %v6039, %v6035
    %v6212 = vpack.c.b16 %v6040, %v6036
    %v6213 = vpack.c.b16 %v6041, %v6037
    %v6214 = vpack.c.b16 %v6046, %v6042
    %v6215 = vpack.c.b16 %v6047, %v6043
    %v6216 = vpack.c.b16 %v6048, %v6044
    %v6217 = vpack.c.b16 %v6049, %v6045
    %v6218 = vpack.c.b16 %v6054, %v6050
    %v6219 = vpack.c.b16 %v6055, %v6051
    %v6220 = vpack.c.b16 %v6056, %v6052
    %v6221 = vpack.c.b16 %v6057, %v6053
    %v6222 = vpack.c.b16 %v6062, %v6058
    %v6223 = vpack.c.b16 %v6063, %v6059
    %v6224 = vpack.c.b16 %v6064, %v6060
    %v6225 = vpack.c.b16 %v6065, %v6061
    %v6226 = vpack.c.b16 %v6070, %v6066
    %v6227 = vpack.c.b16 %v6071, %v6067
    %v6228 = vpack.c.b16 %v6072, %v6068
    %v6229 = vpack.c.b16 %v6073, %v6069
    %v6230 = vpack.c.b16 %v6078, %v6074
    %v6231 = vpack.c.b16 %v6079, %v6075
    %v6232 = vpack.c.b16 %v6080, %v6076
    %v6233 = vpack.c.b16 %v6081, %v6077
    %v6234 = vpack.c.b16 %v6086, %v6082
    %v6235 = vpack.c.b16 %v6087, %v6083
    %v6236 = vpack.c.b16 %v6088, %v6084
    %v6237 = vpack.c.b16 %v6089, %v6085
    %v6238 = vpack.c.b16 %v6094, %v6090
    %v6239 = vpack.c.b16 %v6095, %v6091
    %v6240 = vpack.c.b16 %v6096, %v6092
    %v6241 = vpack.c.b16 %v6097, %v6093
    %v6242 = vpack.c.b16 %v6102, %v6098
    %v6243 = vpack.c.b16 %v6103, %v6099
    %v6244 = vpack.c.b16 %v6104, %v6100
    %v6245 = vpack.c.b16 %v6105, %v6101
    %v6246 = vpack.c.b16 %v6110, %v6106
    %v6247 = vpack.c.b16 %v6111, %v6107
    %v6248 = vpack.c.b16 %v6112, %v6108
    %v6249 = vpack.c.b16 %v6113, %v6109
    %v6250 = vpack.c.b16 %v6118, %v6114
    %v6251 = vpack.c.b16 %v6119, %v6115
    %v6252 = vpack.c.b16 %v6120, %v6116
    %v6253 = vpack.c.b16 %v6121, %v6117
    %v6254 = vpack.c.b16 %v6126, %v6122
    %v6255 = vpack.c.b16 %v6127, %v6123
    %v6256 = vpack.c.b16 %v6128, %v6124
    %v6257 = vpack.c.b16 %v6129, %v6125
    %v6258 = vpack.c.b16 %v6134, %v6130
    %v6259 = vpack.c.b16 %v6135, %v6131
    %v6260 = vpack.c.b16 %v6136, %v6132
    %v6261 = vpack.c.b16 %v6137, %v6133
    %v6262 = vpack.c.b16 %v6142, %v6138
    %v6263 = vpack.c.b16 %v6143, %v6139
    %v6264 = vpack.c.b16 %v6144, %v6140
    %v6265 = vpack.c.b16 %v6145, %v6141
    %v6266 = vpack.c.b16 %v6150, %v6146
    %v6267 = vpack.c.b16 %v6151, %v6147
    %v6268 = vpack.c.b16 %v6152, %v6148
    %v6269 = vpack.c.b16 %v6153, %v6149
    %v6270 = vpack.c.b16 %v6158, %v6154
    %v6271 = vpack.c.b16 %v6159, %v6155
    %v6272 = vpack.c.b16 %v6160, %v6156
    %v6273 = vpack.c.b16 %v6161, %v6157
    %v6274 = vpack.c.b16 %v6166, %v6162
    %v6275 = vpack.c.b16 %v6167, %v6163
    %v6276 = vpack.c.b16 %v6168, %v6164
    %v6277 = vpack.c.b16 %v6169, %v6165
    %v6278 = vpack.c.b16 %v6174, %v6170
    %v6279 = vpack.c.b16 %v6175, %v6171
    %v6280 = vpack.c.b16 %v6176, %v6172
    %v6281 = vpack.c.b16 %v6177, %v6173
    %v6282 = vpack.c.b16 %v6182, %v6178
    %v6283 = vpack.c.b16 %v6183, %v6179
    %v6284 = vpack.c.b16 %v6184, %v6180
    %v6285 = vpack.c.b16 %v6185, %v6181
    %v6387 = vsel %vm1089, %v5865, 0
    %v6390 = vsel %vm1089, %v5869, 0
    %6392 = vmatprep.subr.bf16.mxu0 %v6187
    %6393 = vmatpush1.bf16.msra.mxu0 %v6186
    %6394 = vmatprep.subr.bf16.mxu0 %v6191
    %6395 = vmatpush1.bf16.msra.mxu0 %v6190
    %6396 = vmatprep.subr.bf16.mxu0 %v6195
    %6397 = vmatpush1.bf16.msra.mxu0 %v6194
    %6398 = vmatprep.subr.bf16.mxu0 %v6199
    %6399 = vmatpush1.bf16.msra.mxu0 %v6198
    %6400 = vmatprep.subr.bf16.mxu0 %v6203
    %6401 = vmatpush1.bf16.msra.mxu0 %v6202
    %6402 = vmatprep.subr.bf16.mxu0 %v6207
    %6403 = vmatpush1.bf16.msra.mxu0 %v6206
    %6404 = vmatprep.subr.bf16.mxu0 %v6211
    %6405 = vmatpush1.bf16.msra.mxu0 %v6210
    %6406 = vmatprep.subr.bf16.mxu0 %v6215
    %6407 = vmatpush1.bf16.msra.mxu0 %v6214
    %6408 = vmatprep.subr.bf16.mxu0 %v6219
    %6409 = vmatpush1.bf16.msra.mxu0 %v6218
    %6410 = vmatprep.subr.bf16.mxu0 %v6223
    %6411 = vmatpush1.bf16.msra.mxu0 %v6222
    %6412 = vmatprep.subr.bf16.mxu0 %v6227
    %6413 = vmatpush1.bf16.msra.mxu0 %v6226
    %6414 = vmatprep.subr.bf16.mxu0 %v6231
    %6415 = vmatpush1.bf16.msra.mxu0 %v6230
    %6416 = vmatprep.subr.bf16.mxu0 %v6235
    %6417 = vmatpush1.bf16.msra.mxu0 %v6234
    %6418 = vmatprep.subr.bf16.mxu0 %v6239
    %6419 = vmatpush1.bf16.msra.mxu0 %v6238
    %6420 = vmatprep.subr.bf16.mxu0 %v6243
    %6421 = vmatpush1.bf16.msra.mxu0 %v6242
    %6422 = vmatprep.subr.bf16.mxu0 %v6247
    %6423 = vmatpush1.bf16.msra.mxu0 %v6246
    %6424 = vmatprep.mubr.bf16.mxu0 %v5863
    %6425 = vmatmul.mubr.bf16.gmra.mrb[0].mxu0 %v5862
    %v6426 = vpop.f32.mrb[0].mxu0
    %v6427 = vadd.f32 %v5873, %v6426
    %v6428 = vpop.f32.mrb[0].mxu0
    %v6429 = vadd.f32 %v5877, %v6428
    %v6430 = vpop.f32.mrb[0].mxu0
    %v6431 = vadd.f32 %v5873, %v6430
    %v6432 = vpop.f32.mrb[0].mxu0
    %v6433 = vadd.f32 %v5877, %v6432
    %6434 = vmatprep.mubr.bf16.mxu0 %v5867
    %6435 = vmatmul.mubr.bf16.gmra.mrb[0].mxu0 %v5866
    %v6436 = vpop.f32.mrb[0].mxu0
    %v6437 = vadd.f32 %v5873, %v6436
    %v6438 = vpop.f32.mrb[0].mxu0
    %v6439 = vadd.f32 %v5877, %v6438
    %v6440 = vpop.f32.mrb[0].mxu0
    %v6441 = vadd.f32 %v5873, %v6440
    %v6442 = vpop.f32.mrb[0].mxu0
    %v6443 = vadd.f32 %v5877, %v6442
    %6444 = vdwg.mxu0
    %6445 = vmatprep.subr.bf16.mxu0 %v6251
    %6446 = vmatpush1.bf16.msra.mxu0 %v6250
    %6447 = vmatprep.subr.bf16.mxu0 %v6255
    %6448 = vmatpush1.bf16.msra.mxu0 %v6254
    %6449 = vmatprep.subr.bf16.mxu0 %v6259
    %6450 = vmatpush1.bf16.msra.mxu0 %v6258
    %6451 = vmatprep.subr.bf16.mxu0 %v6263
    %6452 = vmatpush1.bf16.msra.mxu0 %v6262
    %6453 = vmatprep.subr.bf16.mxu0 %v6267
    %6454 = vmatpush1.bf16.msra.mxu0 %v6266
    %6455 = vmatprep.subr.bf16.mxu0 %v6271
    %6456 = vmatpush1.bf16.msra.mxu0 %v6270
    %6457 = vmatprep.subr.bf16.mxu0 %v6275
    %6458 = vmatpush1.bf16.msra.mxu0 %v6274
    %6459 = vmatprep.subr.bf16.mxu0 %v6279
    %6460 = vmatpush1.bf16.msra.mxu0 %v6278
    %6461 = vmatprep.subr.bf16.mxu0 %v6283
    %6462 = vmatpush1.bf16.msra.mxu0 %v6282
    %6463 = vmatprep.subr.bf16.mxu0 0
    %6464 = vmatpush1.bf16.msra.mxu0 0
    %6465 = vmatprep.subr.bf16.mxu0 0
    %6466 = vmatpush1.bf16.msra.mxu0 0
    %6467 = vmatprep.subr.bf16.mxu0 0
    %6468 = vmatpush1.bf16.msra.mxu0 0
    %6469 = vmatprep.subr.bf16.mxu0 0
    %6470 = vmatpush1.bf16.msra.mxu0 0
    %6471 = vmatprep.subr.bf16.mxu0 0
    %6472 = vmatpush1.bf16.msra.mxu0 0
    %6473 = vmatprep.subr.bf16.mxu0 0
    %6474 = vmatpush1.bf16.msra.mxu0 0
    %6475 = vmatprep.subr.bf16.mxu0 0
    %6476 = vmatpush1.bf16.msra.mxu0 0
    %6477 = vmatprep.mubr.bf16.mxu0 %v6387
    %6478 = vmatmul.mubr.bf16.gmra.mrb[0].mxu0 %v5864
    %v6479 = vpop.f32.mrb[0].mxu0
    %v6480 = vadd.f32 %v6427, %v6479
    %v6481 = vpop.f32.mrb[0].mxu0
    %v6482 = vadd.f32 %v6429, %v6481
    %v6483 = vpop.f32.mrb[0].mxu0
    %v6484 = vadd.f32 %v6431, %v6483
    %v6485 = vpop.f32.mrb[0].mxu0
    %v6486 = vadd.f32 %v6433, %v6485
    %6487 = vmatprep.mubr.bf16.mxu0 %v6390
    %6488 = vmatmul.mubr.bf16.gmra.mrb[0].mxu0 %v5868
    %v6489 = vpop.f32.mrb[0].mxu0
    %v6490 = vadd.f32 %v6437, %v6489
    %v6491 = vpop.f32.mrb[0].mxu0
    %v6492 = vadd.f32 %v6439, %v6491
    %v6493 = vpop.f32.mrb[0].mxu0
    %v6494 = vadd.f32 %v6441, %v6493
    %v6495 = vpop.f32.mrb[0].mxu0
    %v6496 = vadd.f32 %v6443, %v6495
    %6497 = vdwg.mxu0
    %6498 = vmatprep.subr.bf16.mxu0 %v6189
    %6499 = vmatpush1.bf16.msra.mxu0 %v6188
    %6500 = vmatprep.subr.bf16.mxu0 %v6193
    %6501 = vmatpush1.bf16.msra.mxu0 %v6192
    %6502 = vmatprep.subr.bf16.mxu0 %v6197
    %6503 = vmatpush1.bf16.msra.mxu0 %v6196
    %6504 = vmatprep.subr.bf16.mxu0 %v6201
    %6505 = vmatpush1.bf16.msra.mxu0 %v6200
    %6506 = vmatprep.subr.bf16.mxu0 %v6205
    %6507 = vmatpush1.bf16.msra.mxu0 %v6204
    %6508 = vmatprep.subr.bf16.mxu0 %v6209
    %6509 = vmatpush1.bf16.msra.mxu0 %v6208
    %6510 = vmatprep.subr.bf16.mxu0 %v6213
    %6511 = vmatpush1.bf16.msra.mxu0 %v6212
    %6512 = vmatprep.subr.bf16.mxu0 %v6217
    %6513 = vmatpush1.bf16.msra.mxu0 %v6216
    %6514 = vmatprep.subr.bf16.mxu0 %v6221
    %6515 = vmatpush1.bf16.msra.mxu0 %v6220
    %6516 = vmatprep.subr.bf16.mxu0 %v6225
    %6517 = vmatpush1.bf16.msra.mxu0 %v6224
    %6518 = vmatprep.subr.bf16.mxu0 %v6229
    %6519 = vmatpush1.bf16.msra.mxu0 %v6228
    %6520 = vmatprep.subr.bf16.mxu0 %v6233
    %6521 = vmatpush1.bf16.msra.mxu0 %v6232
    %6522 = vmatprep.subr.bf16.mxu0 %v6237
    %6523 = vmatpush1.bf16.msra.mxu0 %v6236
    %6524 = vmatprep.subr.bf16.mxu0 %v6241
    %6525 = vmatpush1.bf16.msra.mxu0 %v6240
    %6526 = vmatprep.subr.bf16.mxu0 %v6245
    %6527 = vmatpush1.bf16.msra.mxu0 %v6244
    %6528 = vmatprep.subr.bf16.mxu0 %v6249
    %6529 = vmatpush1.bf16.msra.mxu0 %v6248
    %6530 = vmatprep.mubr.bf16.mxu0 %v5863
    %6531 = vmatmul.mubr.bf16.gmra.mrb[0].mxu0 %v5862
    %v6532 = vpop.f32.mrb[0].mxu0
    %v6533 = vadd.f32 %v5881, %v6532
    %v6534 = vpop.f32.mrb[0].mxu0
    %v6535 = vadd.f32 %v5885, %v6534
    %v6536 = vpop.f32.mrb[0].mxu0
    %v6537 = vadd.f32 %v5881, %v6536
    %v6538 = vpop.f32.mrb[0].mxu0
    %v6539 = vadd.f32 %v5885, %v6538
    %6540 = vmatprep.mubr.bf16.mxu0 %v5867
    %6541 = vmatmul.mubr.bf16.gmra.mrb[0].mxu0 %v5866
    %v6542 = vpop.f32.mrb[0].mxu0
    %v6543 = vadd.f32 %v5881, %v6542
    %v6544 = vpop.f32.mrb[0].mxu0
    %v6545 = vadd.f32 %v5885, %v6544
    %v6546 = vpop.f32.mrb[0].mxu0
    %v6547 = vadd.f32 %v5881, %v6546
    %v6548 = vpop.f32.mrb[0].mxu0
    %v6549 = vadd.f32 %v5885, %v6548
    %6550 = vdwg.mxu0
    %6551 = vmatprep.subr.bf16.mxu0 %v6253
    %6552 = vmatpush1.bf16.msra.mxu0 %v6252
    %6553 = vmatprep.subr.bf16.mxu0 %v6257
    %6554 = vmatpush1.bf16.msra.mxu0 %v6256
    %6555 = vmatprep.subr.bf16.mxu0 %v6261
    %6556 = vmatpush1.bf16.msra.mxu0 %v6260
    %6557 = vmatprep.subr.bf16.mxu0 %v6265
    %6558 = vmatpush1.bf16.msra.mxu0 %v6264
    %6559 = vmatprep.subr.bf16.mxu0 %v6269
    %6560 = vmatpush1.bf16.msra.mxu0 %v6268
    %6561 = vmatprep.subr.bf16.mxu0 %v6273
    %6562 = vmatpush1.bf16.msra.mxu0 %v6272
    %6563 = vmatprep.subr.bf16.mxu0 %v6277
    %6564 = vmatpush1.bf16.msra.mxu0 %v6276
    %6565 = vmatprep.subr.bf16.mxu0 %v6281
    %6566 = vmatpush1.bf16.msra.mxu0 %v6280
    %6567 = vmatprep.subr.bf16.mxu0 %v6285
    %6568 = vmatpush1.bf16.msra.mxu0 %v6284
    %6569 = vmatprep.subr.bf16.mxu0 0
    %6570 = vmatpush1.bf16.msra.mxu0 0
    %6571 = vmatprep.subr.bf16.mxu0 0
    %6572 = vmatpush1.bf16.msra.mxu0 0
    %6573 = vmatprep.subr.bf16.mxu0 0
    %6574 = vmatpush1.bf16.msra.mxu0 0
    %6575 = vmatprep.subr.bf16.mxu0 0
    %6576 = vmatpush1.bf16.msra.mxu0 0
    %6577 = vmatprep.subr.bf16.mxu0 0
    %6578 = vmatpush1.bf16.msra.mxu0 0
    %6579 = vmatprep.subr.bf16.mxu0 0
    %6580 = vmatpush1.bf16.msra.mxu0 0
    %6581 = vmatprep.subr.bf16.mxu0 0
    %6582 = vmatpush1.bf16.msra.mxu0 0
    %6583 = vmatprep.mubr.bf16.mxu0 %v6387
    %6584 = vmatmul.mubr.bf16.gmra.mrb[0].mxu0 %v5864
    %v6585 = vpop.f32.mrb[0].mxu0
    %v6586 = vadd.f32 %v6533, %v6585
    %v6587 = vpop.f32.mrb[0].mxu0
    %v6588 = vadd.f32 %v6535, %v6587
    %v6589 = vpop.f32.mrb[0].mxu0
    %v6590 = vadd.f32 %v6537, %v6589
    %v6591 = vpop.f32.mrb[0].mxu0
    %v6592 = vadd.f32 %v6539, %v6591
    %6593 = vmatprep.mubr.bf16.mxu0 %v6390
    %6594 = vmatmul.mubr.bf16.gmra.mrb[0].mxu0 %v5868
    %v6595 = vpop.f32.mrb[0].mxu0
    %v6596 = vadd.f32 %v6543, %v6595
    %v6597 = vpop.f32.mrb[0].mxu0
    %v6598 = vadd.f32 %v6545, %v6597
    %v6599 = vpop.f32.mrb[0].mxu0
    %v6600 = vadd.f32 %v6547, %v6599
    %v6601 = vpop.f32.mrb[0].mxu0
    %v6602 = vadd.f32 %v6549, %v6601
    %6603 = vdwg.mxu0
    %v6604 = vmax.f32 %v6480, 0.0
    %v6605 = vmax.f32 %v6482, 0.0
    %v6606 = vmax.f32 %v6586, 0.0
    %v6607 = vmax.f32 %v6588, 0.0
    %v6608 = vmax.f32 %v6484, 0.0
    %v6609 = vmax.f32 %v6486, 0.0
    %v6610 = vmax.f32 %v6590, 0.0
    %v6611 = vmax.f32 %v6592, 0.0
    %v6612 = vmax.f32 %v6490, 0.0
    %v6613 = vmax.f32 %v6492, 0.0
    %v6614 = vmax.f32 %v6596, 0.0
    %v6615 = vmax.f32 %v6598, 0.0
    %v6616 = vmax.f32 %v6494, 0.0
    %v6617 = vmax.f32 %v6496, 0.0
    %v6618 = vmax.f32 %v6600, 0.0
    %v6619 = vmax.f32 %v6602, 0.0
    %v6620 = vpack.c.bf16 %v4853, %v4849
    %v6621 = vpack.c.bf16 %v4854, %v4850
    %v6622 = vpack.c.bf16 %v4855, %v4851
    %v6623 = vpack.c.bf16 %v4856, %v4852
    %v6624 = vpack.c.bf16 %v4861, %v4857
    %v6625 = vpack.c.bf16 %v4862, %v4858
    %v6626 = vpack.c.bf16 %v4863, %v4859
    %v6627 = vpack.c.bf16 %v4864, %v4860
    %v6629 = vsel %vm1089, %v6623, 0
    %v6632 = vsel %vm1089, %v6627, 0
    %6634 = vmatprep.subr.bf16.mxu0 0
    %6635 = vmatpush1.bf16.msra.mxu0 %v2295
    %6636 = vmatprep.subr.bf16.mxu0 0
    %6637 = vmatpush1.bf16.msra.mxu0 %v2296
    %6638 = vmatprep.subr.bf16.mxu0 0
    %6639 = vmatpush1.bf16.msra.mxu0 %v2297
    %6640 = vmatprep.subr.bf16.mxu0 0
    %6641 = vmatpush1.bf16.msra.mxu0 %v2298
    %6642 = vmatprep.subr.bf16.mxu0 0
    %6643 = vmatpush1.bf16.msra.mxu0 %v2299
    %6644 = vmatprep.subr.bf16.mxu0 0
    %6645 = vmatpush1.bf16.msra.mxu0 %v2300
    %6646 = vmatprep.subr.bf16.mxu0 0
    %6647 = vmatpush1.bf16.msra.mxu0 %v2301
    %6648 = vmatprep.subr.bf16.mxu0 0
    %6649 = vmatpush1.bf16.msra.mxu0 %v2302
    %6650 = vmatprep.subr.bf16.mxu0 0
    %6651 = vmatpush1.bf16.msra.mxu0 %v2303
    %6652 = vmatprep.subr.bf16.mxu0 0
    %6653 = vmatpush1.bf16.msra.mxu0 %v2304
    %6654 = vmatprep.subr.bf16.mxu0 0
    %6655 = vmatpush1.bf16.msra.mxu0 %v2305
    %6656 = vmatprep.subr.bf16.mxu0 0
    %6657 = vmatpush1.bf16.msra.mxu0 %v2306
    %6658 = vmatprep.subr.bf16.mxu0 0
    %6659 = vmatpush1.bf16.msra.mxu0 %v2307
    %6660 = vmatprep.subr.bf16.mxu0 0
    %6661 = vmatpush1.bf16.msra.mxu0 %v2308
    %6662 = vmatprep.subr.bf16.mxu0 0
    %6663 = vmatpush1.bf16.msra.mxu0 %v2309
    %6664 = vmatprep.subr.bf16.mxu0 0
    %6665 = vmatpush1.bf16.msra.mxu0 %v2310
    %6666 = vmatprep.mubr.bf16.mxu0 %v6621
    %6667 = vmatmul.mubr.bf16.gmra.mrb[0].mxu0 %v6620
    %v6668 = vpop.f32.mrb[0].mxu0
    %v6669 = vadd.f32 %v2194, %v6668
    %v6670 = vpop.f32.mrb[0].mxu0
    %v6671 = vpop.f32.mrb[0].mxu0
    %v6672 = vadd.f32 %v2194, %v6671
    %v6673 = vpop.f32.mrb[0].mxu0
    %6674 = vmatprep.mubr.bf16.mxu0 %v6625
    %6675 = vmatmul.mubr.bf16.gmra.mrb[0].mxu0 %v6624
    %v6676 = vpop.f32.mrb[0].mxu0
    %v6677 = vadd.f32 %v2194, %v6676
    %v6678 = vpop.f32.mrb[0].mxu0
    %v6679 = vpop.f32.mrb[0].mxu0
    %v6680 = vadd.f32 %v2194, %v6679
    %v6681 = vpop.f32.mrb[0].mxu0
    %6682 = vdwg.mxu0
    %6683 = vmatprep.subr.bf16.mxu0 0
    %6684 = vmatpush1.bf16.msra.mxu0 %v2311
    %6685 = vmatprep.subr.bf16.mxu0 0
    %6686 = vmatpush1.bf16.msra.mxu0 %v2312
    %6687 = vmatprep.subr.bf16.mxu0 0
    %6688 = vmatpush1.bf16.msra.mxu0 %v2313
    %6689 = vmatprep.subr.bf16.mxu0 0
    %6690 = vmatpush1.bf16.msra.mxu0 %v2314
    %6691 = vmatprep.subr.bf16.mxu0 0
    %6692 = vmatpush1.bf16.msra.mxu0 %v2315
    %6693 = vmatprep.subr.bf16.mxu0 0
    %6694 = vmatpush1.bf16.msra.mxu0 %v2316
    %6695 = vmatprep.subr.bf16.mxu0 0
    %6696 = vmatpush1.bf16.msra.mxu0 %v2317
    %6697 = vmatprep.subr.bf16.mxu0 0
    %6698 = vmatpush1.bf16.msra.mxu0 %v2318
    %6699 = vmatprep.subr.bf16.mxu0 0
    %6700 = vmatpush1.bf16.msra.mxu0 %v2319
    %6701 = vmatprep.subr.bf16.mxu0 0
    %6702 = vmatpush1.bf16.msra.mxu0 0
    %6703 = vmatprep.subr.bf16.mxu0 0
    %6704 = vmatpush1.bf16.msra.mxu0 0
    %6705 = vmatprep.subr.bf16.mxu0 0
    %6706 = vmatpush1.bf16.msra.mxu0 0
    %6707 = vmatprep.subr.bf16.mxu0 0
    %6708 = vmatpush1.bf16.msra.mxu0 0
    %6709 = vmatprep.subr.bf16.mxu0 0
    %6710 = vmatpush1.bf16.msra.mxu0 0
    %6711 = vmatprep.subr.bf16.mxu0 0
    %6712 = vmatpush1.bf16.msra.mxu0 0
    %6713 = vmatprep.subr.bf16.mxu0 0
    %6714 = vmatpush1.bf16.msra.mxu0 0
    %6715 = vmatprep.mubr.bf16.mxu0 %v6629
    %6716 = vmatmul.mubr.bf16.gmra.mrb[0].mxu0 %v6622
    %v6717 = vpop.f32.mrb[0].mxu0
    %v6718 = vadd.f32 %v6669, %v6717
    %v6719 = vpop.f32.mrb[0].mxu0
    %v6720 = vpop.f32.mrb[0].mxu0
    %v6721 = vadd.f32 %v6672, %v6720
    %v6722 = vpop.f32.mrb[0].mxu0
    %6723 = vmatprep.mubr.bf16.mxu0 %v6632
    %6724 = vmatmul.mubr.bf16.gmra.mrb[0].mxu0 %v6626
    %v6725 = vpop.f32.mrb[0].mxu0
    %v6726 = vadd.f32 %v6677, %v6725
    %v6727 = vpop.f32.mrb[0].mxu0
    %v6728 = vpop.f32.mrb[0].mxu0
    %v6729 = vadd.f32 %v6680, %v6728
    %v6730 = vpop.f32.mrb[0].mxu0
    %6731 = vdwg.mxu0
    %v6732 = vpack.c.bf16 %v6608, %v6604
    %v6733 = vpack.c.bf16 %v6609, %v6605
    %v6734 = vpack.c.bf16 %v6610, %v6606
    %v6735 = vpack.c.bf16 %v6611, %v6607
    %v6736 = vpack.c.bf16 %v6616, %v6612
    %v6737 = vpack.c.bf16 %v6617, %v6613
    %v6738 = vpack.c.bf16 %v6618, %v6614
    %v6739 = vpack.c.bf16 %v6619, %v6615
    %v6741 = vsel %vm1089, %v6735, 0
    %v6744 = vsel %vm1089, %v6739, 0
    %6746 = vmatprep.subr.bf16.mxu0 0
    %6747 = vmatpush1.bf16.msra.mxu0 %v2295
    %6748 = vmatprep.subr.bf16.mxu0 0
    %6749 = vmatpush1.bf16.msra.mxu0 %v2296
    %6750 = vmatprep.subr.bf16.mxu0 0
    %6751 = vmatpush1.bf16.msra.mxu0 %v2297
    %6752 = vmatprep.subr.bf16.mxu0 0
    %6753 = vmatpush1.bf16.msra.mxu0 %v2298
    %6754 = vmatprep.subr.bf16.mxu0 0
    %6755 = vmatpush1.bf16.msra.mxu0 %v2299
    %6756 = vmatprep.subr.bf16.mxu0 0
    %6757 = vmatpush1.bf16.msra.mxu0 %v2300
    %6758 = vmatprep.subr.bf16.mxu0 0
    %6759 = vmatpush1.bf16.msra.mxu0 %v2301
    %6760 = vmatprep.subr.bf16.mxu0 0
    %6761 = vmatpush1.bf16.msra.mxu0 %v2302
    %6762 = vmatprep.subr.bf16.mxu0 0
    %6763 = vmatpush1.bf16.msra.mxu0 %v2303
    %6764 = vmatprep.subr.bf16.mxu0 0
    %6765 = vmatpush1.bf16.msra.mxu0 %v2304
    %6766 = vmatprep.subr.bf16.mxu0 0
    %6767 = vmatpush1.bf16.msra.mxu0 %v2305
    %6768 = vmatprep.subr.bf16.mxu0 0
    %6769 = vmatpush1.bf16.msra.mxu0 %v2306
    %6770 = vmatprep.subr.bf16.mxu0 0
    %6771 = vmatpush1.bf16.msra.mxu0 %v2307
    %6772 = vmatprep.subr.bf16.mxu0 0
    %6773 = vmatpush1.bf16.msra.mxu0 %v2308
    %6774 = vmatprep.subr.bf16.mxu0 0
    %6775 = vmatpush1.bf16.msra.mxu0 %v2309
    %6776 = vmatprep.subr.bf16.mxu0 0
    %6777 = vmatpush1.bf16.msra.mxu0 %v2310
    %6778 = vmatprep.mubr.bf16.mxu0 %v6733
    %6779 = vmatmul.mubr.bf16.gmra.mrb[0].mxu0 %v6732
    %v6780 = vpop.f32.mrb[0].mxu0
    %v6781 = vadd.f32 %v2194, %v6780
    %v6782 = vpop.f32.mrb[0].mxu0
    %v6783 = vpop.f32.mrb[0].mxu0
    %v6784 = vadd.f32 %v2194, %v6783
    %v6785 = vpop.f32.mrb[0].mxu0
    %6786 = vmatprep.mubr.bf16.mxu0 %v6737
    %6787 = vmatmul.mubr.bf16.gmra.mrb[0].mxu0 %v6736
    %v6788 = vpop.f32.mrb[0].mxu0
    %v6789 = vadd.f32 %v2194, %v6788
    %v6790 = vpop.f32.mrb[0].mxu0
    %v6791 = vpop.f32.mrb[0].mxu0
    %v6792 = vadd.f32 %v2194, %v6791
    %v6793 = vpop.f32.mrb[0].mxu0
    %6794 = vdwg.mxu0
    %6795 = vmatprep.subr.bf16.mxu0 0
    %6796 = vmatpush1.bf16.msra.mxu0 %v2311
    %6797 = vmatprep.subr.bf16.mxu0 0
    %6798 = vmatpush1.bf16.msra.mxu0 %v2312
    %6799 = vmatprep.subr.bf16.mxu0 0
    %6800 = vmatpush1.bf16.msra.mxu0 %v2313
    %6801 = vmatprep.subr.bf16.mxu0 0
    %6802 = vmatpush1.bf16.msra.mxu0 %v2314
    %6803 = vmatprep.subr.bf16.mxu0 0
    %6804 = vmatpush1.bf16.msra.mxu0 %v2315
    %6805 = vmatprep.subr.bf16.mxu0 0
    %6806 = vmatpush1.bf16.msra.mxu0 %v2316
    %6807 = vmatprep.subr.bf16.mxu0 0
    %6808 = vmatpush1.bf16.msra.mxu0 %v2317
    %6809 = vmatprep.subr.bf16.mxu0 0
    %6810 = vmatpush1.bf16.msra.mxu0 %v2318
    %6811 = vmatprep.subr.bf16.mxu0 0
    %6812 = vmatpush1.bf16.msra.mxu0 %v2319
    %6813 = vmatprep.subr.bf16.mxu0 0
    %6814 = vmatpush1.bf16.msra.mxu0 0
    %6815 = vmatprep.subr.bf16.mxu0 0
    %6816 = vmatpush1.bf16.msra.mxu0 0
    %6817 = vmatprep.subr.bf16.mxu0 0
    %6818 = vmatpush1.bf16.msra.mxu0 0
    %6819 = vmatprep.subr.bf16.mxu0 0
    %6820 = vmatpush1.bf16.msra.mxu0 0
    %6821 = vmatprep.subr.bf16.mxu0 0
    %6822 = vmatpush1.bf16.msra.mxu0 0
    %6823 = vmatprep.subr.bf16.mxu0 0
    %6824 = vmatpush1.bf16.msra.mxu0 0
    %6825 = vmatprep.subr.bf16.mxu0 0
    %6826 = vmatpush1.bf16.msra.mxu0 0
    %6827 = vmatprep.mubr.bf16.mxu0 %v6741
    %6828 = vmatmul.mubr.bf16.gmra.mrb[0].mxu0 %v6734
    %v6829 = vpop.f32.mrb[0].mxu0
    %v6830 = vadd.f32 %v6781, %v6829
    %v6831 = vpop.f32.mrb[0].mxu0
    %v6832 = vpop.f32.mrb[0].mxu0
    %v6833 = vadd.f32 %v6784, %v6832
    %v6834 = vpop.f32.mrb[0].mxu0
    %6835 = vmatprep.mubr.bf16.mxu0 %v6744
    %6836 = vmatmul.mubr.bf16.gmra.mrb[0].mxu0 %v6738
    %v6837 = vpop.f32.mrb[0].mxu0
    %v6838 = vadd.f32 %v6789, %v6837
    %v6839 = vpop.f32.mrb[0].mxu0
    %v6840 = vpop.f32.mrb[0].mxu0
    %v6841 = vadd.f32 %v6792, %v6840
    %v6842 = vpop.f32.mrb[0].mxu0
    %6843 = vdwg.mxu0
    %6848 = vrot.lane.b32.xlu0 %v6830, 120
    %v6849 = vpop.permute.xlu0 %6848
    %6850 = vrot.lane.b32.xlu0 %v6833, 120
    %v6851 = vpop.permute.xlu0 %6850
    %6852 = vrot.lane.b32.xlu0 %v6838, 120
    %v6853 = vpop.permute.xlu0 %6852
    %6854 = vrot.lane.b32.xlu0 %v6841, 120
    %v6855 = vpop.permute.xlu0 %6854
    %v6860 = vmin.f32 %v6718, %v6849
    %v6861 = vmin.f32 %v6721, %v6851
    %v6862 = vmin.f32 %v6726, %v6853
    %v6863 = vmin.f32 %v6729, %v6855
    %6868 = vrot.lane.b32.xlu0 %v6860, 125
    %v6869 = vpop.permute.xlu0 %6868
    %6870 = vrot.lane.b32.xlu0 %v6861, 125
    %v6871 = vpop.permute.xlu0 %6870
    %6872 = vrot.lane.b32.xlu0 %v6862, 125
    %v6873 = vpop.permute.xlu0 %6872
    %6874 = vrot.lane.b32.xlu0 %v6863, 125
    %v6875 = vpop.permute.xlu0 %6874
    %v6880 = vsel %vm2597, %v2505, %v2600
    %v6881 = vsel %vm2597, %v2506, %v2603
    %v6882 = vsel %vm2597, %v2507, %v2606
    %v6883 = vsel %vm2597, %v2508, %v2609
    %vm6884 = vcmask 39936
    %v6885 = vsel %vm6884, %v6880, %v6869
    %v6886 = vsel %vm6884, %v6881, %v6871
    %v6887 = vsel %vm6884, %v6882, %v6873
    %v6888 = vsel %vm6884, %v6883, %v6875
    %vm6889 = vcmask 48128
    %v6890 = vsel %vm6889, %v6885, 0.0
    %v6891 = vsel %vm6889, %v6886, 0.0
    %v6892 = vsel %vm6889, %v6887, 0.0
    %v6893 = vsel %vm6889, %v6888, 0.0
    %6894 = vst [vmem:[#allocation14] sm:$0xff] %v6890
    %6895 = vst [vmem:[#allocation14 + $0x8] sm:$0xff] %v6891
    %6896 = vst [vmem:[#allocation14 + $0x10] sm:$0xff] %v6892
    %6897 = vst [vmem:[#allocation14 + $0x18] sm:$0xff] %v6893
    // Predicated region
    $region62: #{tpu_custom_call.1} parent=1 // pred_check
      _
    $region63: #{tpu_custom_call.1} parent=1 // pred_check_branch
      %6899 = sbr.rel (0) target = $region65
    $region64: #{tpu_custom_call.1} parent=1 // pred_region
      %s6901 = ssub.s32 512, 512
      %6902 = vsyncadd [#allocation4], %s6901
      %s6903 = sshll.u32 [#allocation14], 4
      %s6904 = int_to_ptr.vmem [resolvable:$true] %s6903
      %6909 = dma.vmem_to_hbm [thread:$0]  %s6904, 512, %s8, [#allocation4], 128, 128, 8
    $region65: #{tpu_custom_call.1} parent=1 // pred_fallthru
      _
    // Predicated region
    $region66: #{tpu_custom_call.1} parent=1 // pred_check
      _
    $region67: #{tpu_custom_call.1} parent=1 // pred_check_branch
      %6911 = sbr.rel (0) target = $region69
    $region68: #{tpu_custom_call.1} parent=1 // pred_region
      %6912 = dma.done [#allocation4], 512
    $region69: #{tpu_custom_call.1} parent=1 // pred_fallthru
      _
    %6913 = vsyncpa [#allocation3], 1
    %6914 = vsyncpa [#allocation6], 1
    %6915 = vsyncpa [#allocation9], 1
    %6916 = vsyncpa [#allocation12], 1
    %6917 = vsyncpa [#allocation4], 1

</llo_original>
